<compile_context>
chip_gen: v5e
topology: v5e:2x2
jax: 0.10.0
libtpu: 0.0.40
codegen_flags: <defaults>
</compile_context>

<pallas_src>
import math
import functools

import jax
import jax.numpy as jnp
from jax import lax
from jax.experimental import pallas as pl
from jax.experimental.pallas import tpu as pltpu


_MASK_VALUE = -1e30  # large-negative key mask (avoids -inf - -inf NaNs)


def mhsa_kernel(x_ref, wqkv_ref, bqkv_ref, wo_ref, bo_ref,
                out_ref, attn_ref,
                q_s, k_s, v_s,
                *, num_groups, heads_per_step, head_dim, embed_dim,
                seq_len, seq_pad):
    """Grid = (batch, head_group). One step = `heads_per_step` heads of one row.

    x_ref:    (Sp, E)          bf16  (constant over g -> DMA'd once per batch row)
    wqkv_ref: (E, 3E)          bf16  (constant block -> DMA'd once)
    bqkv_ref: (1, 3E)          f32
    wo_ref:   (nh*Dh, E)       bf16  (per-group slice of Wo)
    bo_ref:   (1, E)           f32
    out_ref:  (Sp, E)          f32   resident accumulator (same block for all g)
    attn_ref: (nh, Sp, Sp)     bf16  per-(b, g) block, lane-dense stores
    q_s/k_s/v_s: (G, Sp, nh*Dh) bf16 scratch slabs, filled once at g == 0
    """
    g = pl.program_id(1)
    nh = heads_per_step
    gdim = nh * head_dim
    inv_scale = 1.0 / math.sqrt(head_dim)

    @pl.when(g == 0)
    def _():
        # Fused Q/K/V projection once per batch row: one (Sp, E) x (E, 3E) MXU
        # pass, bf16 operands, f32 accumulation, fused bias.
        x = x_ref[...]                                               # (Sp, E) bf16
        qkv = jnp.dot(x, wqkv_ref[...],
                      preferred_element_type=jnp.float32) + bqkv_ref[...]
        # Lane-aligned slab stores: 3*G stores of (Sp, nh*Dh) at offsets that
        # are multiples of nh*Dh (vs. 3*H misaligned (S, Dh) stores before).
        for gg in range(num_groups):
            lo = gg * gdim
            q_s[gg] = (qkv[:, lo:lo + gdim] * inv_scale).astype(jnp.bfloat16)
            k_s[gg] = qkv[:, embed_dim + lo:
                          embed_dim + lo + gdim].astype(jnp.bfloat16)
            v_s[gg] = qkv[:, 2 * embed_dim + lo:
                          2 * embed_dim + lo + gdim].astype(jnp.bfloat16)
        out_ref[...] = jnp.zeros_like(out_ref)

    qg = q_s[g]                                                      # (Sp, nh*Dh)
    kg = k_s[g]
    vg = v_s[g]

    if seq_pad:
        # Key-side padding mask: padded key columns pushed to ~-inf pre-softmax.
        col = lax.broadcasted_iota(jnp.int32, (1, seq_len + seq_pad), 1)
        key_mask = jnp.where(col < seq_len, 0.0, _MASK_VALUE).astype(jnp.float32)

    attended = []
    for hh in range(nh):                                             # static unroll
        lo = hh * head_dim
        q_h = qg[:, lo:lo + head_dim]                                # (Sp, Dh) bf16
        k_h = kg[:, lo:lo + head_dim]
        v_h = vg[:, lo:lo + head_dim]

        # (Q / sqrt(Dh)) K^T — contract the last dims, no XLU transpose.
        s = lax.dot_general(q_h, k_h, (((1,), (1,)), ((), ())),
                            preferred_element_type=jnp.float32)     # (Sp, Sp) f32
        if seq_pad:
            s = s + key_mask

        # Numerically stable softmax; exact reciprocal on an (Sp, 1) column is
        # ~free and keeps the exported attention rows exactly normalized.
        m = jnp.max(s, axis=-1, keepdims=True)
        p = jnp.exp(s - m)
        w = p * pl.reciprocal(jnp.sum(p, axis=-1, keepdims=True))

        attn_ref[hh] = w.astype(attn_ref.dtype)                      # lane-dense store

        attended.append(jnp.dot(w.astype(jnp.bfloat16), v_h,
                                preferred_element_type=jnp.float32))  # (Sp, Dh) f32

    # One output-projection matmul per group with K = nh*Dh (full MXU depth on
    # v6e/v7x when nh*Dh == 256), accumulated into the resident f32 out block.
    att_cat = jnp.concatenate(attended, axis=-1).astype(jnp.bfloat16)  # (Sp, nh*Dh)
    out_ref[...] += jnp.dot(att_cat, wo_ref[...],
                            preferred_element_type=jnp.float32)

    @pl.when(g == num_groups - 1)
    def _():
        out_ref[...] += bo_ref[...]


def _round_up(x, m):
    return (x + m - 1) // m * m


def _pick_heads_per_step(num_heads, head_dim, target_k=256):
    """Batch heads so the out-projection contraction K = nh*Dh approaches the
    MXU depth (256 on v6e/v7x; pass heads_per_step=2 explicitly for v5e)."""
    nh = max(1, min(num_heads, target_k // max(head_dim, 1)))
    while num_heads % nh:
        nh -= 1
    return nh


def multi_head_self_attention(x, params, *, num_heads, heads_per_step=None,
                              attn_dtype=jnp.bfloat16):
    """x: [B, S, E]. Returns (output [B, S, E], attn_weights [B, H, S, S]).

    attn_weights are returned in `attn_dtype` (bf16 halves the dominant HBM
    writeback; pass jnp.float32 for exact dtype parity with the module)."""
    B, S, E = x.shape
    assert E % num_heads == 0
    head_dim = E // num_heads
    if heads_per_step is None:
        heads_per_step = _pick_heads_per_step(num_heads, head_dim)
    assert num_heads % heads_per_step == 0
    num_groups = num_heads // heads_per_step
    gdim = heads_per_step * head_dim

    # Pad the sequence to a lane-dense multiple of 128 (ViT: 197 -> 256); padded
    # key columns are masked in the kernel, padded rows sliced off below.
    Sp = _round_up(S, 128)
    seq_pad = Sp - S
    x_p = x if seq_pad == 0 else jnp.pad(x, ((0, 0), (0, seq_pad), (0, 0)))
    x_bf16 = x_p.astype(jnp.bfloat16)

    wq, bq, wk, bk, wv, bv, wo, bo = params

    # Fuse QKV weights/biases; group Wo by head-group (rows are head-major).
    wqkv = jnp.concatenate([wq, wk, wv], axis=1).astype(jnp.bfloat16)    # (E, 3E)
    bqkv = jnp.concatenate([bq, bk, bv], axis=1).astype(jnp.float32)     # (1, 3E)
    wo_g = wo.reshape(num_groups, gdim, E).astype(jnp.bfloat16)          # (G, nh*Dh, E)
    bo = bo.astype(jnp.float32)                                          # (1, E)

    kernel = functools.partial(
        mhsa_kernel, num_groups=num_groups, heads_per_step=heads_per_step,
        head_dim=head_dim, embed_dim=E, seq_len=S, seq_pad=seq_pad)

    out, attn = pl.pallas_call(
        kernel,
        out_shape=(
            jax.ShapeDtypeStruct((B, Sp, E), jnp.float32),
            jax.ShapeDtypeStruct((B, num_heads, Sp, Sp), attn_dtype),
        ),
        grid_spec=pltpu.PrefetchScalarGridSpec(
            num_scalar_prefetch=0,
            grid=(B, num_groups),
            in_specs=[
                pl.BlockSpec((None, Sp, E), lambda b, g: (b, 0, 0)),       # x
                pl.BlockSpec((E, 3 * E), lambda b, g: (0, 0)),             # Wqkv
                pl.BlockSpec((1, 3 * E), lambda b, g: (0, 0)),             # bqkv
                pl.BlockSpec((None, gdim, E), lambda b, g: (g, 0, 0)),     # Wo[g]
                pl.BlockSpec((1, E), lambda b, g: (0, 0)),                 # bo
            ],
            out_specs=[
                pl.BlockSpec((None, Sp, E), lambda b, g: (b, 0, 0)),
                pl.BlockSpec((None, heads_per_step, Sp, Sp),
                             lambda b, g: (b, g, 0, 0)),
            ],
            scratch_shapes=[
                pltpu.VMEM((num_groups, Sp, gdim), jnp.bfloat16),  # Q (pre-scaled)
                pltpu.VMEM((num_groups, Sp, gdim), jnp.bfloat16),  # K
                pltpu.VMEM((num_groups, Sp, gdim), jnp.bfloat16),  # V
            ],
        ),
        compiler_params=pltpu.CompilerParams(
            dimension_semantics=("parallel", "arbitrary"),
            # Resident set at ViT-B scale is ~10 MiB; 32 MiB is safe on every
            # generation (can be raised on v5e/v6e for deeper buffering).
            vmem_limit_bytes=32 * 1024 * 1024),
    )(x_bf16, wqkv, bqkv, wo_g, bo)

    out = out[:, :S, :].astype(x.dtype)
    attn = attn[:, :, :S, :S]
    return out, attn


def init_params(key, embed_dim):
    """Xavier-uniform weights (bias = 0), stored as [in, out] (pre-transposed)."""
    bound = math.sqrt(6.0 / (embed_dim + embed_dim))
    keys = jax.random.split(key, 4)
    weights = [
        jax.random.uniform(k, (embed_dim, embed_dim), jnp.float32,
                           minval=-bound, maxval=bound)
        for k in keys
    ]
    wq, wk, wv, wo = weights
    bq, bk, bv, bo = [jnp.zeros((1, embed_dim), jnp.float32) for _ in range(4)]
    return (wq, bq, wk, bk, wv, bv, wo, bo)


def reference(x, params, num_heads):
    """Plain-JAX f32 reference (mirrors the PyTorch forward, dropout=identity)."""
    wq, bq, wk, bk, wv, bv, wo, bo = params
    B, S, E = x.shape
    Dh = E // num_heads
    q = x @ wq + bq
    k = x @ wk + bk
    v = x @ wv + bv
    q = q.reshape(B, S, num_heads, Dh).transpose(0, 2, 1, 3)
    k = k.reshape(B, S, num_heads, Dh).transpose(0, 2, 1, 3)
    v = v.reshape(B, S, num_heads, Dh).transpose(0, 2, 1, 3)
    scores = jnp.einsum("bhqd,bhkd->bhqk", q, k) / math.sqrt(Dh)
    attn = jax.nn.softmax(scores, axis=-1)
    attended = jnp.einsum("bhqk,bhkd->bhqd", attn, v)
    attended = attended.transpose(0, 2, 1, 3).reshape(B, S, E)
    out = attended @ wo + bo
    return out, attn


if __name__ == "__main__":
    # Small shapes consistent with the module's [B, S, E] interface.
    # (Internally the sequence is padded to 128 lanes and masked.)
    B, S, E, H = 2, 8, 32, 4

    key = jax.random.PRNGKey(0)
    k_x, k_p = jax.random.split(key)
    x = jax.random.normal(k_x, (B, S, E), jnp.float32)
    params = init_params(k_p, E)

    out, attn = multi_head_self_attention(x, params, num_heads=H)
    out = jax.block_until_ready(out)
    attn = jax.block_until_ready(attn)

    out_ref, attn_ref = reference(x, params, H)
    assert out.shape == (B, S, E) and attn.shape == (B, H, S, S)
    # bf16 MXU operands / bf16 attention storage -> slightly looser tolerances.
    assert jnp.allclose(out, out_ref, atol=3e-2, rtol=3e-2), \
        float(jnp.max(jnp.abs(out - out_ref)))
    assert jnp.allclose(attn.astype(jnp.float32), attn_ref, atol=3e-2, rtol=3e-2), \
        float(jnp.max(jnp.abs(attn.astype(jnp.float32) - attn_ref)))

    print("KERNEL_OK")
</pallas_src>

<mosaic_0001>
module attributes {stable_mosaic.version = 11 : i64} {
  func.func @mhsa_kernel(%arg0: i32, %arg1: i32, %arg2: memref<1x128x32xbf16, #tpu.memory_space<vmem>>, %arg3: memref<32x96xbf16, #tpu.memory_space<vmem>>, %arg4: memref<1x96xf32, #tpu.memory_space<vmem>>, %arg5: memref<1x32x32xbf16, #tpu.memory_space<vmem>>, %arg6: memref<1x32xf32, #tpu.memory_space<vmem>>, %arg7: memref<1x128x32xf32, #tpu.memory_space<vmem>>, %arg8: memref<1x4x128x128xbf16, #tpu.memory_space<vmem>>, %arg9: memref<1x128x32xbf16, #tpu.memory_space<vmem>>, %arg10: memref<1x128x32xbf16, #tpu.memory_space<vmem>>, %arg11: memref<1x128x32xbf16, #tpu.memory_space<vmem>>) attributes {dimension_semantics = [#tpu.dimension_semantics<parallel>, #tpu.dimension_semantics<arbitrary>], iteration_bounds = array<i64: 2, 1>, scalar_prefetch = 0 : i64, scratch_operands = 3 : i64, tpu.core_type = #tpu.core_type<tc>, window_params = [{transform_indices = @transform_0, window_bounds = array<i64: 1, 128, 32>}, {pipeline_mode = #tpu.pipeline_mode<synchronous>, transform_indices = @transform_1, window_bounds = array<i64: 32, 96>}, {pipeline_mode = #tpu.pipeline_mode<synchronous>, transform_indices = @transform_2, window_bounds = array<i64: 1, 96>}, {transform_indices = @transform_3, window_bounds = array<i64: 1, 32, 32>}, {pipeline_mode = #tpu.pipeline_mode<synchronous>, transform_indices = @transform_4, window_bounds = array<i64: 1, 32>}, {transform_indices = @transform_5, window_bounds = array<i64: 1, 128, 32>}, {transform_indices = @transform_6, window_bounds = array<i64: 1, 4, 128, 128>}]} {
    %c0_i32 = arith.constant 0 : i32
    %0 = arith.cmpi eq, %arg1, %c0_i32 : i32
    %1 = arith.extui %0 : i1 to i32
    %c0_i32_0 = arith.constant 0 : i32
    %2 = arith.cmpi ne, %1, %c0_i32_0 : i32
    scf.if %2 {
      %c0_48 = arith.constant 0 : index
      %c0_49 = arith.constant 0 : index
      %c0_50 = arith.constant 0 : index
      %120 = vector.load %arg2[%c0_48, %c0_49, %c0_50] : memref<1x128x32xbf16, #tpu.memory_space<vmem>>, vector<1x128x32xbf16>
      %121 = vector.shape_cast %120 : vector<1x128x32xbf16> to vector<128x32xbf16>
      %c0_51 = arith.constant 0 : index
      %c0_52 = arith.constant 0 : index
      %122 = vector.load %arg3[%c0_51, %c0_52] : memref<32x96xbf16, #tpu.memory_space<vmem>>, vector<32x96xbf16>
      %cst_53 = arith.constant dense<0.000000e+00> : vector<128x96xf32>
      %123 = tpu.matmul %121, %122, %cst_53 {dimension_numbers = #tpu.dot_dimension_numbers<[1], [0], [0], [1], [0, 0, 1, 1], [], []>} : vector<128x32xbf16>, vector<32x96xbf16>, vector<128x96xf32> -> vector<128x96xf32>
      %c0_54 = arith.constant 0 : index
      %c0_55 = arith.constant 0 : index
      %124 = vector.load %arg4[%c0_54, %c0_55] : memref<1x96xf32, #tpu.memory_space<vmem>>, vector<1x96xf32>
      %125 = vector.broadcast %124 : vector<1x96xf32> to vector<128x96xf32>
      %126 = arith.addf %123, %125 : vector<128x96xf32>
      %127 = vector.extract_strided_slice %126 {offsets = [0, 0], sizes = [128, 32], strides = [1, 1]} : vector<128x96xf32> to vector<128x32xf32>
      %cst_56 = arith.constant 0.353553385 : f32
      %128 = vector.broadcast %cst_56 : f32 to vector<128x32xf32>
      %129 = arith.mulf %127, %128 : vector<128x32xf32>
      %130 = arith.truncf %129 : vector<128x32xf32> to vector<128x32xbf16>
      %c0_57 = arith.constant 0 : index
      %c0_58 = arith.constant 0 : index
      %c0_59 = arith.constant 0 : index
      %131 = vector.load %arg9[%c0_57, %c0_58, %c0_59] : memref<1x128x32xbf16, #tpu.memory_space<vmem>>, vector<1x128x32xbf16>
      %132 = vector.shape_cast %131 : vector<1x128x32xbf16> to vector<128x32xbf16>
      %133 = vector.shape_cast %130 : vector<128x32xbf16> to vector<1x128x32xbf16>
      tpu.vector_store %arg9[%c0_57, %c0_58, %c0_59], %133 {strides = array<i32>} : memref<1x128x32xbf16, #tpu.memory_space<vmem>>, vector<1x128x32xbf16>,
      %134 = vector.extract_strided_slice %126 {offsets = [0, 32], sizes = [128, 32], strides = [1, 1]} : vector<128x96xf32> to vector<128x32xf32>
      %135 = arith.truncf %134 : vector<128x32xf32> to vector<128x32xbf16>
      %c0_60 = arith.constant 0 : index
      %c0_61 = arith.constant 0 : index
      %c0_62 = arith.constant 0 : index
      %136 = vector.load %arg10[%c0_60, %c0_61, %c0_62] : memref<1x128x32xbf16, #tpu.memory_space<vmem>>, vector<1x128x32xbf16>
      %137 = vector.shape_cast %136 : vector<1x128x32xbf16> to vector<128x32xbf16>
      %138 = vector.shape_cast %135 : vector<128x32xbf16> to vector<1x128x32xbf16>
      tpu.vector_store %arg10[%c0_60, %c0_61, %c0_62], %138 {strides = array<i32>} : memref<1x128x32xbf16, #tpu.memory_space<vmem>>, vector<1x128x32xbf16>,
      %139 = vector.extract_strided_slice %126 {offsets = [0, 64], sizes = [128, 32], strides = [1, 1]} : vector<128x96xf32> to vector<128x32xf32>
      %140 = arith.truncf %139 : vector<128x32xf32> to vector<128x32xbf16>
      %c0_63 = arith.constant 0 : index
      %c0_64 = arith.constant 0 : index
      %c0_65 = arith.constant 0 : index
      %141 = vector.load %arg11[%c0_63, %c0_64, %c0_65] : memref<1x128x32xbf16, #tpu.memory_space<vmem>>, vector<1x128x32xbf16>
      %142 = vector.shape_cast %141 : vector<1x128x32xbf16> to vector<128x32xbf16>
      %143 = vector.shape_cast %140 : vector<128x32xbf16> to vector<1x128x32xbf16>
      tpu.vector_store %arg11[%c0_63, %c0_64, %c0_65], %143 {strides = array<i32>} : memref<1x128x32xbf16, #tpu.memory_space<vmem>>, vector<1x128x32xbf16>,
      %cst_66 = arith.constant 0.000000e+00 : f32
      %144 = vector.broadcast %cst_66 : f32 to vector<128x32xf32>
      %c0_67 = arith.constant 0 : index
      %c0_68 = arith.constant 0 : index
      %c0_69 = arith.constant 0 : index
      %145 = vector.load %arg7[%c0_67, %c0_68, %c0_69] : memref<1x128x32xf32, #tpu.memory_space<vmem>>, vector<1x128x32xf32>
      %146 = vector.shape_cast %145 : vector<1x128x32xf32> to vector<128x32xf32>
      %147 = vector.shape_cast %144 : vector<128x32xf32> to vector<1x128x32xf32>
      tpu.vector_store %arg7[%c0_67, %c0_68, %c0_69], %147 {strides = array<i32>} : memref<1x128x32xf32, #tpu.memory_space<vmem>>, vector<1x128x32xf32>,
    } else {
    }
    %3 = arith.index_cast %arg1 : i32 to index
    %c0 = arith.constant 0 : index
    %c0_1 = arith.constant 0 : index
    %4 = vector.load %arg9[%3, %c0, %c0_1] : memref<1x128x32xbf16, #tpu.memory_space<vmem>>, vector<1x128x32xbf16>
    %5 = vector.shape_cast %4 : vector<1x128x32xbf16> to vector<128x32xbf16>
    %6 = arith.index_cast %arg1 : i32 to index
    %c0_2 = arith.constant 0 : index
    %c0_3 = arith.constant 0 : index
    %7 = vector.load %arg10[%6, %c0_2, %c0_3] : memref<1x128x32xbf16, #tpu.memory_space<vmem>>, vector<1x128x32xbf16>
    %8 = vector.shape_cast %7 : vector<1x128x32xbf16> to vector<128x32xbf16>
    %9 = arith.index_cast %arg1 : i32 to index
    %c0_4 = arith.constant 0 : index
    %c0_5 = arith.constant 0 : index
    %10 = vector.load %arg11[%9, %c0_4, %c0_5] : memref<1x128x32xbf16, #tpu.memory_space<vmem>>, vector<1x128x32xbf16>
    %11 = vector.shape_cast %10 : vector<1x128x32xbf16> to vector<128x32xbf16>
    %12 = tpu.iota {dimensions = array<i32: 1>} : vector<1x128xi32>
    %c8_i32 = arith.constant 8 : i32
    %13 = vector.broadcast %c8_i32 : i32 to vector<1x128xi32>
    %14 = arith.cmpi slt, %12, %13 : vector<1x128xi32>
    %cst = arith.constant 0.000000e+00 : f32
    %cst_6 = arith.constant -1.000000e+30 : f32
    %15 = vector.broadcast %cst : f32 to vector<1x128xf32>
    %16 = vector.broadcast %cst_6 : f32 to vector<1x128xf32>
    %17 = arith.select %14, %15, %16 : vector<1x128xi1>, vector<1x128xf32>
    %18 = vector.extract_strided_slice %5 {offsets = [0, 0], sizes = [128, 8], strides = [1, 1]} : vector<128x32xbf16> to vector<128x8xbf16>
    %19 = vector.extract_strided_slice %8 {offsets = [0, 0], sizes = [128, 8], strides = [1, 1]} : vector<128x32xbf16> to vector<128x8xbf16>
    %20 = vector.extract_strided_slice %11 {offsets = [0, 0], sizes = [128, 8], strides = [1, 1]} : vector<128x32xbf16> to vector<128x8xbf16>
    %cst_7 = arith.constant dense<0.000000e+00> : vector<128x128xf32>
    %21 = tpu.matmul %18, %19, %cst_7 {dimension_numbers = #tpu.dot_dimension_numbers<[1], [1], [0], [0], [0, 0, 1, 0], [], []>} : vector<128x8xbf16>, vector<128x8xbf16>, vector<128x128xf32> -> vector<128x128xf32>
    %22 = vector.broadcast %17 : vector<1x128xf32> to vector<128x128xf32>
    %23 = arith.addf %21, %22 : vector<128x128xf32>
    %cst_8 = arith.constant dense<0xFF800000> : vector<128xf32>
    %24 = vector.multi_reduction <maximumf>, %23, %cst_8 [1] : vector<128x128xf32> to vector<128xf32>
    %25 = vector.shape_cast %24 : vector<128xf32> to vector<128x1xf32>
    %26 = vector.broadcast %25 : vector<128x1xf32> to vector<128x128xf32>
    %27 = arith.subf %23, %26 : vector<128x128xf32>
    %28 = math.exp %27 : vector<128x128xf32>
    %cst_9 = arith.constant dense<0.000000e+00> : vector<128xf32>
    %29 = vector.multi_reduction <add>, %28, %cst_9 [1] : vector<128x128xf32> to vector<128xf32>
    %30 = vector.shape_cast %29 : vector<128xf32> to vector<128x1xf32>
    %31 = tpu.reciprocal %30 : vector<128x1xf32> -> vector<128x1xf32>
    %32 = vector.broadcast %31 : vector<128x1xf32> to vector<128x128xf32>
    %33 = arith.mulf %28, %32 : vector<128x128xf32>
    %34 = arith.truncf %33 : vector<128x128xf32> to vector<128x128xbf16>
    %c0_10 = arith.constant 0 : index
    %c0_11 = arith.constant 0 : index
    %c0_12 = arith.constant 0 : index
    %c0_13 = arith.constant 0 : index
    %35 = vector.load %arg8[%c0_10, %c0_11, %c0_12, %c0_13] : memref<1x4x128x128xbf16, #tpu.memory_space<vmem>>, vector<1x1x128x128xbf16>
    %36 = vector.shape_cast %35 : vector<1x1x128x128xbf16> to vector<128x128xbf16>
    %37 = vector.shape_cast %34 : vector<128x128xbf16> to vector<1x1x128x128xbf16>
    tpu.vector_store %arg8[%c0_10, %c0_11, %c0_12, %c0_13], %37 {strides = array<i32>} : memref<1x4x128x128xbf16, #tpu.memory_space<vmem>>, vector<1x1x128x128xbf16>,
    %38 = arith.truncf %33 : vector<128x128xf32> to vector<128x128xbf16>
    %cst_14 = arith.constant dense<0.000000e+00> : vector<128x8xf32>
    %39 = tpu.matmul %38, %20, %cst_14 {dimension_numbers = #tpu.dot_dimension_numbers<[1], [0], [0], [1], [0, 0, 1, 1], [], []>} : vector<128x128xbf16>, vector<128x8xbf16>, vector<128x8xf32> -> vector<128x8xf32>
    %40 = vector.extract_strided_slice %5 {offsets = [0, 8], sizes = [128, 8], strides = [1, 1]} : vector<128x32xbf16> to vector<128x8xbf16>
    %41 = vector.extract_strided_slice %8 {offsets = [0, 8], sizes = [128, 8], strides = [1, 1]} : vector<128x32xbf16> to vector<128x8xbf16>
    %42 = vector.extract_strided_slice %11 {offsets = [0, 8], sizes = [128, 8], strides = [1, 1]} : vector<128x32xbf16> to vector<128x8xbf16>
    %cst_15 = arith.constant dense<0.000000e+00> : vector<128x128xf32>
    %43 = tpu.matmul %40, %41, %cst_15 {dimension_numbers = #tpu.dot_dimension_numbers<[1], [1], [0], [0], [0, 0, 1, 0], [], []>} : vector<128x8xbf16>, vector<128x8xbf16>, vector<128x128xf32> -> vector<128x128xf32>
    %44 = vector.broadcast %17 : vector<1x128xf32> to vector<128x128xf32>
    %45 = arith.addf %43, %44 : vector<128x128xf32>
    %cst_16 = arith.constant dense<0xFF800000> : vector<128xf32>
    %46 = vector.multi_reduction <maximumf>, %45, %cst_16 [1] : vector<128x128xf32> to vector<128xf32>
    %47 = vector.shape_cast %46 : vector<128xf32> to vector<128x1xf32>
    %48 = vector.broadcast %47 : vector<128x1xf32> to vector<128x128xf32>
    %49 = arith.subf %45, %48 : vector<128x128xf32>
    %50 = math.exp %49 : vector<128x128xf32>
    %cst_17 = arith.constant dense<0.000000e+00> : vector<128xf32>
    %51 = vector.multi_reduction <add>, %50, %cst_17 [1] : vector<128x128xf32> to vector<128xf32>
    %52 = vector.shape_cast %51 : vector<128xf32> to vector<128x1xf32>
    %53 = tpu.reciprocal %52 : vector<128x1xf32> -> vector<128x1xf32>
    %54 = vector.broadcast %53 : vector<128x1xf32> to vector<128x128xf32>
    %55 = arith.mulf %50, %54 : vector<128x128xf32>
    %56 = arith.truncf %55 : vector<128x128xf32> to vector<128x128xbf16>
    %c0_18 = arith.constant 0 : index
    %c1 = arith.constant 1 : index
    %c0_19 = arith.constant 0 : index
    %c0_20 = arith.constant 0 : index
    %57 = vector.load %arg8[%c0_18, %c1, %c0_19, %c0_20] : memref<1x4x128x128xbf16, #tpu.memory_space<vmem>>, vector<1x1x128x128xbf16>
    %58 = vector.shape_cast %57 : vector<1x1x128x128xbf16> to vector<128x128xbf16>
    %59 = vector.shape_cast %56 : vector<128x128xbf16> to vector<1x1x128x128xbf16>
    tpu.vector_store %arg8[%c0_18, %c1, %c0_19, %c0_20], %59 {strides = array<i32>} : memref<1x4x128x128xbf16, #tpu.memory_space<vmem>>, vector<1x1x128x128xbf16>,
    %60 = arith.truncf %55 : vector<128x128xf32> to vector<128x128xbf16>
    %cst_21 = arith.constant dense<0.000000e+00> : vector<128x8xf32>
    %61 = tpu.matmul %60, %42, %cst_21 {dimension_numbers = #tpu.dot_dimension_numbers<[1], [0], [0], [1], [0, 0, 1, 1], [], []>} : vector<128x128xbf16>, vector<128x8xbf16>, vector<128x8xf32> -> vector<128x8xf32>
    %62 = vector.extract_strided_slice %5 {offsets = [0, 16], sizes = [128, 8], strides = [1, 1]} : vector<128x32xbf16> to vector<128x8xbf16>
    %63 = vector.extract_strided_slice %8 {offsets = [0, 16], sizes = [128, 8], strides = [1, 1]} : vector<128x32xbf16> to vector<128x8xbf16>
    %64 = vector.extract_strided_slice %11 {offsets = [0, 16], sizes = [128, 8], strides = [1, 1]} : vector<128x32xbf16> to vector<128x8xbf16>
    %cst_22 = arith.constant dense<0.000000e+00> : vector<128x128xf32>
    %65 = tpu.matmul %62, %63, %cst_22 {dimension_numbers = #tpu.dot_dimension_numbers<[1], [1], [0], [0], [0, 0, 1, 0], [], []>} : vector<128x8xbf16>, vector<128x8xbf16>, vector<128x128xf32> -> vector<128x128xf32>
    %66 = vector.broadcast %17 : vector<1x128xf32> to vector<128x128xf32>
    %67 = arith.addf %65, %66 : vector<128x128xf32>
    %cst_23 = arith.constant dense<0xFF800000> : vector<128xf32>
    %68 = vector.multi_reduction <maximumf>, %67, %cst_23 [1] : vector<128x128xf32> to vector<128xf32>
    %69 = vector.shape_cast %68 : vector<128xf32> to vector<128x1xf32>
    %70 = vector.broadcast %69 : vector<128x1xf32> to vector<128x128xf32>
    %71 = arith.subf %67, %70 : vector<128x128xf32>
    %72 = math.exp %71 : vector<128x128xf32>
    %cst_24 = arith.constant dense<0.000000e+00> : vector<128xf32>
    %73 = vector.multi_reduction <add>, %72, %cst_24 [1] : vector<128x128xf32> to vector<128xf32>
    %74 = vector.shape_cast %73 : vector<128xf32> to vector<128x1xf32>
    %75 = tpu.reciprocal %74 : vector<128x1xf32> -> vector<128x1xf32>
    %76 = vector.broadcast %75 : vector<128x1xf32> to vector<128x128xf32>
    %77 = arith.mulf %72, %76 : vector<128x128xf32>
    %78 = arith.truncf %77 : vector<128x128xf32> to vector<128x128xbf16>
    %c0_25 = arith.constant 0 : index
    %c2 = arith.constant 2 : index
    %c0_26 = arith.constant 0 : index
    %c0_27 = arith.constant 0 : index
    %79 = vector.load %arg8[%c0_25, %c2, %c0_26, %c0_27] : memref<1x4x128x128xbf16, #tpu.memory_space<vmem>>, vector<1x1x128x128xbf16>
    %80 = vector.shape_cast %79 : vector<1x1x128x128xbf16> to vector<128x128xbf16>
    %81 = vector.shape_cast %78 : vector<128x128xbf16> to vector<1x1x128x128xbf16>
    tpu.vector_store %arg8[%c0_25, %c2, %c0_26, %c0_27], %81 {strides = array<i32>} : memref<1x4x128x128xbf16, #tpu.memory_space<vmem>>, vector<1x1x128x128xbf16>,
    %82 = arith.truncf %77 : vector<128x128xf32> to vector<128x128xbf16>
    %cst_28 = arith.constant dense<0.000000e+00> : vector<128x8xf32>
    %83 = tpu.matmul %82, %64, %cst_28 {dimension_numbers = #tpu.dot_dimension_numbers<[1], [0], [0], [1], [0, 0, 1, 1], [], []>} : vector<128x128xbf16>, vector<128x8xbf16>, vector<128x8xf32> -> vector<128x8xf32>
    %84 = vector.extract_strided_slice %5 {offsets = [0, 24], sizes = [128, 8], strides = [1, 1]} : vector<128x32xbf16> to vector<128x8xbf16>
    %85 = vector.extract_strided_slice %8 {offsets = [0, 24], sizes = [128, 8], strides = [1, 1]} : vector<128x32xbf16> to vector<128x8xbf16>
    %86 = vector.extract_strided_slice %11 {offsets = [0, 24], sizes = [128, 8], strides = [1, 1]} : vector<128x32xbf16> to vector<128x8xbf16>
    %cst_29 = arith.constant dense<0.000000e+00> : vector<128x128xf32>
    %87 = tpu.matmul %84, %85, %cst_29 {dimension_numbers = #tpu.dot_dimension_numbers<[1], [1], [0], [0], [0, 0, 1, 0], [], []>} : vector<128x8xbf16>, vector<128x8xbf16>, vector<128x128xf32> -> vector<128x128xf32>
    %88 = vector.broadcast %17 : vector<1x128xf32> to vector<128x128xf32>
    %89 = arith.addf %87, %88 : vector<128x128xf32>
    %cst_30 = arith.constant dense<0xFF800000> : vector<128xf32>
    %90 = vector.multi_reduction <maximumf>, %89, %cst_30 [1] : vector<128x128xf32> to vector<128xf32>
    %91 = vector.shape_cast %90 : vector<128xf32> to vector<128x1xf32>
    %92 = vector.broadcast %91 : vector<128x1xf32> to vector<128x128xf32>
    %93 = arith.subf %89, %92 : vector<128x128xf32>
    %94 = math.exp %93 : vector<128x128xf32>
    %cst_31 = arith.constant dense<0.000000e+00> : vector<128xf32>
    %95 = vector.multi_reduction <add>, %94, %cst_31 [1] : vector<128x128xf32> to vector<128xf32>
    %96 = vector.shape_cast %95 : vector<128xf32> to vector<128x1xf32>
    %97 = tpu.reciprocal %96 : vector<128x1xf32> -> vector<128x1xf32>
    %98 = vector.broadcast %97 : vector<128x1xf32> to vector<128x128xf32>
    %99 = arith.mulf %94, %98 : vector<128x128xf32>
    %100 = arith.truncf %99 : vector<128x128xf32> to vector<128x128xbf16>
    %c0_32 = arith.constant 0 : index
    %c3 = arith.constant 3 : index
    %c0_33 = arith.constant 0 : index
    %c0_34 = arith.constant 0 : index
    %101 = vector.load %arg8[%c0_32, %c3, %c0_33, %c0_34] : memref<1x4x128x128xbf16, #tpu.memory_space<vmem>>, vector<1x1x128x128xbf16>
    %102 = vector.shape_cast %101 : vector<1x1x128x128xbf16> to vector<128x128xbf16>
    %103 = vector.shape_cast %100 : vector<128x128xbf16> to vector<1x1x128x128xbf16>
    tpu.vector_store %arg8[%c0_32, %c3, %c0_33, %c0_34], %103 {strides = array<i32>} : memref<1x4x128x128xbf16, #tpu.memory_space<vmem>>, vector<1x1x128x128xbf16>,
    %104 = arith.truncf %99 : vector<128x128xf32> to vector<128x128xbf16>
    %cst_35 = arith.constant dense<0.000000e+00> : vector<128x8xf32>
    %105 = tpu.matmul %104, %86, %cst_35 {dimension_numbers = #tpu.dot_dimension_numbers<[1], [0], [0], [1], [0, 0, 1, 1], [], []>} : vector<128x128xbf16>, vector<128x8xbf16>, vector<128x8xf32> -> vector<128x8xf32>
    %106 = tpu.concatenate %39, %61, %83, %105 in 1 : vector<128x8xf32>, vector<128x8xf32>, vector<128x8xf32>, vector<128x8xf32> -> vector<128x32xf32>
    %107 = arith.truncf %106 : vector<128x32xf32> to vector<128x32xbf16>
    %c0_36 = arith.constant 0 : index
    %c0_37 = arith.constant 0 : index
    %c0_38 = arith.constant 0 : index
    %108 = vector.load %arg7[%c0_36, %c0_37, %c0_38] : memref<1x128x32xf32, #tpu.memory_space<vmem>>, vector<1x128x32xf32>
    %109 = vector.shape_cast %108 : vector<1x128x32xf32> to vector<128x32xf32>
    %c0_39 = arith.constant 0 : index
    %c0_40 = arith.constant 0 : index
    %c0_41 = arith.constant 0 : index
    %110 = vector.load %arg5[%c0_39, %c0_40, %c0_41] : memref<1x32x32xbf16, #tpu.memory_space<vmem>>, vector<1x32x32xbf16>
    %111 = vector.shape_cast %110 : vector<1x32x32xbf16> to vector<32x32xbf16>
    %cst_42 = arith.constant dense<0.000000e+00> : vector<128x32xf32>
    %112 = tpu.matmul %107, %111, %cst_42 {dimension_numbers = #tpu.dot_dimension_numbers<[1], [0], [0], [1], [0, 0, 1, 1], [], []>} : vector<128x32xbf16>, vector<32x32xbf16>, vector<128x32xf32> -> vector<128x32xf32>
    %113 = arith.addf %109, %112 : vector<128x32xf32>
    %c0_43 = arith.constant 0 : index
    %c0_44 = arith.constant 0 : index
    %c0_45 = arith.constant 0 : index
    %114 = vector.load %arg7[%c0_43, %c0_44, %c0_45] : memref<1x128x32xf32, #tpu.memory_space<vmem>>, vector<1x128x32xf32>
    %115 = vector.shape_cast %114 : vector<1x128x32xf32> to vector<128x32xf32>
    %116 = vector.shape_cast %113 : vector<128x32xf32> to vector<1x128x32xf32>
    tpu.vector_store %arg7[%c0_43, %c0_44, %c0_45], %116 {strides = array<i32>} : memref<1x128x32xf32, #tpu.memory_space<vmem>>, vector<1x128x32xf32>,
    %c0_i32_46 = arith.constant 0 : i32
    %117 = arith.cmpi eq, %arg1, %c0_i32_46 : i32
    %118 = arith.extui %117 : i1 to i32
    %c0_i32_47 = arith.constant 0 : i32
    %119 = arith.cmpi ne, %118, %c0_i32_47 : i32
    scf.if %119 {
      %c0_48 = arith.constant 0 : index
      %c0_49 = arith.constant 0 : index
      %c0_50 = arith.constant 0 : index
      %120 = vector.load %arg7[%c0_48, %c0_49, %c0_50] : memref<1x128x32xf32, #tpu.memory_space<vmem>>, vector<1x128x32xf32>
      %121 = vector.shape_cast %120 : vector<1x128x32xf32> to vector<128x32xf32>
      %c0_51 = arith.constant 0 : index
      %c0_52 = arith.constant 0 : index
      %122 = vector.load %arg6[%c0_51, %c0_52] : memref<1x32xf32, #tpu.memory_space<vmem>>, vector<1x32xf32>
      %123 = vector.broadcast %122 : vector<1x32xf32> to vector<128x32xf32>
      %124 = arith.addf %121, %123 : vector<128x32xf32>
      %c0_53 = arith.constant 0 : index
      %c0_54 = arith.constant 0 : index
      %c0_55 = arith.constant 0 : index
      %125 = vector.load %arg7[%c0_53, %c0_54, %c0_55] : memref<1x128x32xf32, #tpu.memory_space<vmem>>, vector<1x128x32xf32>
      %126 = vector.shape_cast %125 : vector<1x128x32xf32> to vector<128x32xf32>
      %127 = vector.shape_cast %124 : vector<128x32xf32> to vector<1x128x32xf32>
      tpu.vector_store %arg7[%c0_53, %c0_54, %c0_55], %127 {strides = array<i32>} : memref<1x128x32xf32, #tpu.memory_space<vmem>>, vector<1x128x32xf32>,
    } else {
    }
    return
  }
  func.func @transform_0(%arg0: i32, %arg1: i32) -> (i32, i32, i32) {
    %c0_i32 = arith.constant 0 : i32
    %c0_i32_0 = arith.constant 0 : i32
    %c0_i32_1 = arith.constant 0 : i32
    return %arg0, %c0_i32, %c0_i32_0 : i32, i32, i32
  }
  func.func @transform_1(%arg0: i32, %arg1: i32) -> (i32, i32) {
    %c0_i32 = arith.constant 0 : i32
    %c0_i32_0 = arith.constant 0 : i32
    %c0_i32_1 = arith.constant 0 : i32
    return %c0_i32, %c0_i32_0 : i32, i32
  }
  func.func @transform_2(%arg0: i32, %arg1: i32) -> (i32, i32) {
    %c0_i32 = arith.constant 0 : i32
    %c0_i32_0 = arith.constant 0 : i32
    %c0_i32_1 = arith.constant 0 : i32
    return %c0_i32, %c0_i32_0 : i32, i32
  }
  func.func @transform_3(%arg0: i32, %arg1: i32) -> (i32, i32, i32) {
    %c0_i32 = arith.constant 0 : i32
    %c0_i32_0 = arith.constant 0 : i32
    %c0_i32_1 = arith.constant 0 : i32
    return %arg1, %c0_i32, %c0_i32_0 : i32, i32, i32
  }
  func.func @transform_4(%arg0: i32, %arg1: i32) -> (i32, i32) {
    %c0_i32 = arith.constant 0 : i32
    %c0_i32_0 = arith.constant 0 : i32
    %c0_i32_1 = arith.constant 0 : i32
    return %c0_i32, %c0_i32_0 : i32, i32
  }
  func.func @transform_5(%arg0: i32, %arg1: i32) -> (i32, i32, i32) {
    %c0_i32 = arith.constant 0 : i32
    %c0_i32_0 = arith.constant 0 : i32
    %c0_i32_1 = arith.constant 0 : i32
    return %arg0, %c0_i32, %c0_i32_0 : i32, i32, i32
  }
  func.func @transform_6(%arg0: i32, %arg1: i32) -> (i32, i32, i32, i32) {
    %c0_i32 = arith.constant 0 : i32
    %c0_i32_0 = arith.constant 0 : i32
    %c0_i32_1 = arith.constant 0 : i32
    return %arg0, %arg1, %c0_i32, %c0_i32_0 : i32, i32, i32, i32
  }
}

</mosaic_0001>

<llo_original>
// kernel: tpu_custom_call.1
$region0: #{tpu_custom_call.1}
  #allocation0 [shape = 'u32[]', space=smem, size = 0x4, offset = 0x4, fixed_abs, tag = 'smem constant byte address 0x4 - core index']
  #allocation1 [shape = 'u32[72,128]{1,0:T(1,128)}', space=vmem, size = 0x9000, scoped, tag = 'internal scratch']
  #allocation2 [shape = 'bf16[1,128,32]{2,1,0:T(8,128)(2,1)}', space=vmem, size = 0x8000, scoped, tag = 'scratch operand']
  #allocation3 [shape = 'bf16[1,128,32]{2,1,0:T(8,128)(2,1)}', space=vmem, size = 0x8000, scoped, tag = 'scratch operand']
  #allocation4 [shape = 'bf16[1,128,32]{2,1,0:T(8,128)(2,1)}', space=vmem, size = 0x8000, scoped, tag = 'scratch operand']
  %s0 = inlined_call_operand.vmem [shape: bf16[2,128,32], index: 0, kind: input, shape index: {}]
  %s1 = inlined_call_operand.vmem [shape: bf16[32,96], index: 1, kind: input, shape index: {}]
  %s2 = inlined_call_operand.vmem [shape: f32[1,96], index: 2, kind: input, shape index: {}]
  %s3 = inlined_call_operand.vmem [shape: bf16[1,32,32], index: 3, kind: input, shape index: {}]
  %s4 = inlined_call_operand.vmem [shape: f32[1,32], index: 4, kind: input, shape index: {}]
  %s5 = inlined_call_operand.vmem [shape: f32[2,128,32], index: 5, kind: output, shape index: {0}]
  %s6 = inlined_call_operand.hbm [shape: bf16[2,4,128,128], index: 6, kind: output, shape index: {1}]
  %7 = xla_tuple %s5, %s6
  %s8 = sld [smem:[#allocation0]]
  $region69: #{tpu_custom_call.1} parent=0
    _
  %s10 = ssub.s32 1, %s8
  %s11 = scalar_select 0, %s10, %s8
  $region1: #{tpu_custom_call.1} parent=0
    #allocation5 [shape = 'u8[262144]{0}', space=vmem, size = 0x40000, scoped, tag = 'output window, operand 1']
    #allocation6 [shape = 's32[2]{0}', space=sflag, size = 0x8, scoped, tag = 'scoped memory for tpu_custom_call.1']
    %12 = vsyncpa [#allocation6], 0
    %s13 = scalar_lea.sflag [#allocation6], 1
    %14 = vsyncpa %s13, 0
    loop: start=0, step=1, limit=4
    $region2: #{tpu_custom_call.1} parent=1 // loop_pre_header
      _
    $region3: #{tpu_custom_call.1} parent=1 // loop_header
      %s16 = sphi 0, %s20
      %p17 = scmp.ge.s32.totalorder %s16, 4
      %s23 = sphi 0, %s35
      %s24 = sphi 0, %s31
      %s25 = sphi 0, %s23
      %s26 = sphi 0, %s24
      %s27 = sphi 0, %s25
      %s28 = sphi 0, %s26
      %s38 = sphi 0, %s40
      %s41 = sphi 0, %s38
      %s42 = sphi 0, %s41
      %s58 = sphi 0, %s42
      %s62 = sphi 0, %s62
      %s64 = sphi 0, %s62
      %s65 = sphi 0, %s64
      %s79 = sphi 0, %s65
      %s83 = sphi 0, %s83
      %s85 = sphi 0, %s83
      %s86 = sphi 0, %s85
      %s100 = sphi 0, %s86
      %s106 = sphi 0, %s108
      %s109 = sphi 0, %s106
      %s110 = sphi 0, %s109
      %s126 = sphi 0, %s110
      %s130 = sphi 0, %s130
      %s132 = sphi 0, %s130
      %s133 = sphi 0, %s132
      %s147 = sphi 0, %s133
      %s153 = sphi 0, %s155
      %s156 = sphi 0, %s153
      %s157 = sphi 0, %s156
      %s173 = sphi 0, %s157
      %s181 = sphi 0, %s183
      %s184 = sphi 0, %s181
      %s185 = sphi 0, %s184
      %s201 = sphi 0, %s185
    $region4: #{tpu_custom_call.1} parent=1 // loop_header_branch
      %19 = sbr.rel (%p17) target = $region8
    $region5: #{tpu_custom_call.1} parent=1 // loop_body
      %s21 = ssub.s32 %s16, 1
      %s22 = ssub.s32 %s16, 2
      %s29 = sadd.s32 1, %s24
      %p30 = scmp.ge.s32.totalorder %s29, 1
      %s31 = scalar_select %p30, 0, %s29
      %s32 = sadd.s32 1, %s23
      %s33 = scalar_select %p30, %s32, %s23
      %p34 = scmp.ge.s32.totalorder %s33, 2
      %s35 = scalar_select %p34, 0, %s33
      %s36 = ssub.s32 %s23, %s35
      %p37 = scmp.eq.s32.totalorder %s36, 0
      %s39 = sadd.s32 %s38, 1
      %s40 = scalar_select %p37, %s38, %s39
      %p43 = pneg %p37
      %p44 = scmp.eq.s32.totalorder %s16, 1
      %p45 = por %p43, %p44
      %p46 = scmp.ne.s32.totalorder %s38, %s41
      %p47 = scmp.eq.s32.totalorder %s16, 0
      %p48 = por %p46, %p47
      %p49 = scmp.ne.s32.totalorder %s38, %s41
      %p50 = scmp.eq.s32.totalorder %s21, 1
      %p51 = por %p49, %p50
      %p52 = scmp.ne.s32.totalorder %s41, %s42
      %p53 = scmp.eq.s32.totalorder %s21, 0
      %p54 = por %p52, %p53
      %p55 = scmp.ne.s32.totalorder %s41, %s42
      %p56 = scmp.eq.s32.totalorder %s22, 1
      %p57 = por %p55, %p56
      %p59 = scmp.ne.s32.totalorder %s42, %s58
      %p60 = scmp.eq.s32.totalorder %s22, 0
      %p61 = por %p59, %p60
      %s63 = sadd.s32 %s62, 1
      %p66 = scmp.eq.s32.totalorder %s16, 1
      %p67 = scmp.ne.s32.totalorder %s62, %s64
      %p68 = scmp.eq.s32.totalorder %s16, 0
      %p69 = por %p67, %p68
      %p70 = scmp.ne.s32.totalorder %s62, %s64
      %p71 = scmp.eq.s32.totalorder %s21, 1
      %p72 = por %p70, %p71
      %p73 = scmp.ne.s32.totalorder %s64, %s65
      %p74 = scmp.eq.s32.totalorder %s21, 0
      %p75 = por %p73, %p74
      %p76 = scmp.ne.s32.totalorder %s64, %s65
      %p77 = scmp.eq.s32.totalorder %s22, 1
      %p78 = por %p76, %p77
      %p80 = scmp.ne.s32.totalorder %s65, %s79
      %p81 = scmp.eq.s32.totalorder %s22, 0
      %p82 = por %p80, %p81
      %s84 = sadd.s32 %s83, 1
      %p87 = scmp.eq.s32.totalorder %s16, 1
      %p88 = scmp.ne.s32.totalorder %s83, %s85
      %p89 = scmp.eq.s32.totalorder %s16, 0
      %p90 = por %p88, %p89
      %p91 = scmp.ne.s32.totalorder %s83, %s85
      %p92 = scmp.eq.s32.totalorder %s21, 1
      %p93 = por %p91, %p92
      %p94 = scmp.ne.s32.totalorder %s85, %s86
      %p95 = scmp.eq.s32.totalorder %s21, 0
      %p96 = por %p94, %p95
      %p97 = scmp.ne.s32.totalorder %s85, %s86
      %p98 = scmp.eq.s32.totalorder %s22, 1
      %p99 = por %p97, %p98
      %p101 = scmp.ne.s32.totalorder %s86, %s100
      %p102 = scmp.eq.s32.totalorder %s22, 0
      %p103 = por %p101, %p102
      %s104 = ssub.s32 %s24, %s31
      %p105 = scmp.eq.s32.totalorder %s104, 0
      %s107 = sadd.s32 %s106, 1
      %s108 = scalar_select %p105, %s106, %s107
      %p111 = pneg %p105
      %p112 = scmp.eq.s32.totalorder %s16, 1
      %p113 = por %p111, %p112
      %p114 = scmp.ne.s32.totalorder %s106, %s109
      %p115 = scmp.eq.s32.totalorder %s16, 0
      %p116 = por %p114, %p115
      %p117 = scmp.ne.s32.totalorder %s106, %s109
      %p118 = scmp.eq.s32.totalorder %s21, 1
      %p119 = por %p117, %p118
      %p120 = scmp.ne.s32.totalorder %s109, %s110
      %p121 = scmp.eq.s32.totalorder %s21, 0
      %p122 = por %p120, %p121
      %p123 = scmp.ne.s32.totalorder %s109, %s110
      %p124 = scmp.eq.s32.totalorder %s22, 1
      %p125 = por %p123, %p124
      %p127 = scmp.ne.s32.totalorder %s110, %s126
      %p128 = scmp.eq.s32.totalorder %s22, 0
      %p129 = por %p127, %p128
      %s131 = sadd.s32 %s130, 1
      %p134 = scmp.eq.s32.totalorder %s16, 1
      %p135 = scmp.ne.s32.totalorder %s130, %s132
      %p136 = scmp.eq.s32.totalorder %s16, 0
      %p137 = por %p135, %p136
      %p138 = scmp.ne.s32.totalorder %s130, %s132
      %p139 = scmp.eq.s32.totalorder %s21, 1
      %p140 = por %p138, %p139
      %p141 = scmp.ne.s32.totalorder %s132, %s133
      %p142 = scmp.eq.s32.totalorder %s21, 0
      %p143 = por %p141, %p142
      %p144 = scmp.ne.s32.totalorder %s132, %s133
      %p145 = scmp.eq.s32.totalorder %s22, 1
      %p146 = por %p144, %p145
      %p148 = scmp.ne.s32.totalorder %s133, %s147
      %p149 = scmp.eq.s32.totalorder %s22, 0
      %p150 = por %p148, %p149
      %s151 = ssub.s32 %s23, %s35
      %p152 = scmp.eq.s32.totalorder %s151, 0
      %s154 = sadd.s32 %s153, 1
      %s155 = scalar_select %p152, %s153, %s154
      %p158 = pneg %p152
      %p159 = scmp.eq.s32.totalorder %s16, 1
      %p160 = por %p158, %p159
      %p161 = scmp.ne.s32.totalorder %s153, %s156
      %p162 = scmp.eq.s32.totalorder %s16, 0
      %p163 = por %p161, %p162
      %p164 = scmp.ne.s32.totalorder %s153, %s156
      %p165 = scmp.eq.s32.totalorder %s21, 1
      %p166 = por %p164, %p165
      %p167 = scmp.ne.s32.totalorder %s156, %s157
      %p168 = scmp.eq.s32.totalorder %s21, 0
      %p169 = por %p167, %p168
      %p170 = scmp.ne.s32.totalorder %s156, %s157
      %p171 = scmp.eq.s32.totalorder %s22, 1
      %p172 = por %p170, %p171
      %p174 = scmp.ne.s32.totalorder %s157, %s173
      %p175 = scmp.eq.s32.totalorder %s22, 0
      %p176 = por %p174, %p175
      %s177 = ssub.s32 %s23, %s35
      %s178 = ssub.s32 %s24, %s31
      %s179 = sor.u32 %s177, %s178
      %p180 = scmp.eq.s32.totalorder %s179, 0
      %s182 = sadd.s32 %s181, 1
      %s183 = scalar_select %p180, %s181, %s182
      %p186 = pneg %p180
      %p187 = scmp.eq.s32.totalorder %s16, 1
      %p188 = por %p186, %p187
      %p189 = scmp.ne.s32.totalorder %s181, %s184
      %p190 = scmp.eq.s32.totalorder %s16, 0
      %p191 = por %p189, %p190
      %p192 = scmp.ne.s32.totalorder %s181, %s184
      %p193 = scmp.eq.s32.totalorder %s21, 1
      %p194 = por %p192, %p193
      %p195 = scmp.ne.s32.totalorder %s184, %s185
      %p196 = scmp.eq.s32.totalorder %s21, 0
      %p197 = por %p195, %p196
      %p198 = scmp.ne.s32.totalorder %s184, %s185
      %p199 = scmp.eq.s32.totalorder %s22, 1
      %p200 = por %p198, %p199
      %p202 = scmp.ne.s32.totalorder %s185, %s201
      %p203 = scmp.eq.s32.totalorder %s22, 0
      %p204 = por %p202, %p203
      %p205 = scmp.le.s32.totalorder 1, %s16
      %p206 = scmp.lt.s32.totalorder %s16, 3
      %p207 = pnand %p205, %p206
      %p208 = pneg %p207
      // Predicated region
      $region9: #{tpu_custom_call.1} parent=5 // pred_check
        _
      $region10: #{tpu_custom_call.1} parent=5 // pred_check_branch
        %210 = sbr.rel (%p207) target = $region12
      $region11: #{tpu_custom_call.1} parent=5 // pred_region
        %s211 = ssub.s32 %s16, 1
        // Predicated region
        $region13: #{tpu_custom_call.1} parent=11 // pred_check
          %p212 = pneg %p75
        $region14: #{tpu_custom_call.1} parent=11 // pred_check_branch
          %214 = sbr.rel (%p212) target = $region16
        $region15: #{tpu_custom_call.1} parent=11 // pred_region
          _
        $region16: #{tpu_custom_call.1} parent=11 // pred_fallthru
          _
        // Predicated region
        $region17: #{tpu_custom_call.1} parent=11 // pred_check
          %p215 = pneg %p96
        $region18: #{tpu_custom_call.1} parent=11 // pred_check_branch
          %217 = sbr.rel (%p215) target = $region20
        $region19: #{tpu_custom_call.1} parent=11 // pred_region
          _
        $region20: #{tpu_custom_call.1} parent=11 // pred_fallthru
          _
        // Predicated region
        $region21: #{tpu_custom_call.1} parent=11 // pred_check
          %p218 = pneg %p122
        $region22: #{tpu_custom_call.1} parent=11 // pred_check_branch
          %220 = sbr.rel (%p218) target = $region24
        $region23: #{tpu_custom_call.1} parent=11 // pred_region
          %p221 = scmp.lt.s32.totalorder %s26, 0
          %s222 = scalar_select %p221, %s26, 0
          %s223 = smul.addr %s222, 4
          %s224 = smul.addr %s223, 4
          %s225 = scalar_lea.vmem %s3, %s224
        $region24: #{tpu_custom_call.1} parent=11 // pred_fallthru
          _
        // Predicated region
        $region25: #{tpu_custom_call.1} parent=11 // pred_check
          %p226 = pneg %p143
        $region26: #{tpu_custom_call.1} parent=11 // pred_check_branch
          %228 = sbr.rel (%p226) target = $region28
        $region27: #{tpu_custom_call.1} parent=11 // pred_region
          _
        $region28: #{tpu_custom_call.1} parent=11 // pred_fallthru
          _
      $region12: #{tpu_custom_call.1} parent=5 // pred_fallthru
        _
      %p229 = scmp.lt.s32.totalorder %s16, 2
      // Predicated region
      $region29: #{tpu_custom_call.1} parent=5 // pred_check
        %p230 = pneg %p229
      $region30: #{tpu_custom_call.1} parent=5 // pred_check_branch
        %232 = sbr.rel (%p230) target = $region32
      $region31: #{tpu_custom_call.1} parent=5 // pred_region
        // Predicated region
        $region33: #{tpu_custom_call.1} parent=31 // pred_check
          %p233 = pneg %p48
        $region34: #{tpu_custom_call.1} parent=31 // pred_check_branch
          %235 = sbr.rel (%p233) target = $region36
        $region35: #{tpu_custom_call.1} parent=31 // pred_region
          %p236 = scmp.lt.s32.totalorder %s23, 1
          %s237 = scalar_select %p236, %s23, 1
          %s238 = smul.addr %s237, 16
          %s239 = smul.addr %s238, 4
          %s240 = scalar_lea.vmem %s0, %s239
        $region36: #{tpu_custom_call.1} parent=31 // pred_fallthru
          _
      $region32: #{tpu_custom_call.1} parent=5 // pred_fallthru
        _
      %p241 = scmp.le.s32.totalorder 1, %s16
      %p242 = scmp.lt.s32.totalorder %s16, 3
      %p243 = pnand %p241, %p242
      %p244 = pneg %p243
      // Predicated region
      $region37: #{tpu_custom_call.1} parent=5 // pred_check
        _
      $region38: #{tpu_custom_call.1} parent=5 // pred_check_branch
        %246 = sbr.rel (%p243) target = $region40
      $region39: #{tpu_custom_call.1} parent=5 // pred_region
        %s247 = ssub.s32 %s16, 1
        %p248 = scmp.lt.s32.totalorder %s25, 1
        %s249 = scalar_select %p248, %s25, 1
        %s250 = smul.addr %s249, 16
        %s251 = smul.addr %s250, 4
        %s252 = scalar_lea.vmem %s0, %s251
        %p253 = pneg %p54
        %p254 = pneg %p51
        %p255 = pneg %p75
        %p256 = pneg %p72
        %p257 = pneg %p96
        %p258 = pneg %p93
        %p259 = scmp.lt.s32.totalorder %s26, 0
        %s260 = scalar_select %p259, %s26, 0
        %s261 = smul.addr %s260, 4
        %s262 = smul.addr %s261, 4
        %s263 = scalar_lea.vmem %s3, %s262
        %p264 = pneg %p122
        %p265 = pneg %p119
        %p266 = pneg %p143
        %p267 = pneg %p140
        %p268 = pneg %p169
        %p269 = pneg %p166
        %p270 = scmp.lt.s32.totalorder %s25, 1
        %s271 = scalar_select %p270, %s25, 1
        %s272 = smul.addr %s271, 16
        %s273 = smul.addr %s272, 8
        %s274 = scalar_lea.vmem %s5, %s273
        %p275 = pneg %p197
        %p276 = pneg %p194
        %s277 = sand.u32 %s184, 1
        %s278 = scalar_lea.sflag [#allocation6], %s277
        %s279 = sand.u32 %s184, 1
        %s280 = smul.addr %s279, 256
        %s281 = scalar_lea.vmem [#allocation5], %s280
        %p282 = scmp.lt.s32.totalorder %s25, 1
        %s283 = scalar_select %p282, %s25, 1
        %s284 = smul.addr %s283, 16
        %s285 = smul.addr %s284, 4
        %s286 = scalar_lea.vmem %s0, %s285
        %p287 = scmp.lt.s32.totalorder %s26, 0
        %s288 = scalar_select %p287, %s26, 0
        %s289 = smul.addr %s288, 4
        %s290 = smul.addr %s289, 4
        %s291 = scalar_lea.vmem %s3, %s290
        %p292 = scmp.lt.s32.totalorder %s25, 1
        %s293 = scalar_select %p292, %s25, 1
        %s294 = smul.addr %s293, 16
        %s295 = smul.addr %s294, 8
        %s296 = scalar_lea.vmem %s5, %s295
        %s297 = smul.u32 4, %s26
        %p299 = scmp.eq.s32.totalorder %s26, 0
        // Predicated region
        $region41: #{tpu_custom_call.1} parent=39 // pred_check
          %p300 = pneg %p299
        $region42: #{tpu_custom_call.1} parent=39 // pred_check_branch
          %302 = sbr.rel (%p300) target = $region44
        $region43: #{tpu_custom_call.1} parent=39 // pred_region
          %v303 = vld [vmem:[%s286] sm:$0xf]
          %v304 = vld [vmem:[%s286 + $0x4] sm:$0xf]
          %v305 = vld [vmem:[%s286 + $0x8] sm:$0xf]
          %v306 = vld [vmem:[%s286 + $0xc] sm:$0xf]
          %v307 = vld [vmem:[%s286 + $0x10] sm:$0xf]
          %v308 = vld [vmem:[%s286 + $0x14] sm:$0xf]
          %v309 = vld [vmem:[%s286 + $0x18] sm:$0xf]
          %v310 = vld [vmem:[%s286 + $0x1c] sm:$0xf]
          %v311 = vld [vmem:[%s286 + $0x20] sm:$0xf]
          %v312 = vld [vmem:[%s286 + $0x24] sm:$0xf]
          %v313 = vld [vmem:[%s286 + $0x28] sm:$0xf]
          %v314 = vld [vmem:[%s286 + $0x2c] sm:$0xf]
          %v315 = vld [vmem:[%s286 + $0x30] sm:$0xf]
          %v316 = vld [vmem:[%s286 + $0x34] sm:$0xf]
          %v317 = vld [vmem:[%s286 + $0x38] sm:$0xf]
          %v318 = vld [vmem:[%s286 + $0x3c] sm:$0xf]
          %v319 = vld [vmem:[%s1] sm:$0xf]
          %v320 = vld [vmem:[%s1 + $0x4] sm:$0xf]
          %v321 = vld [vmem:[%s1 + $0x8] sm:$0xf]
          %v322 = vld [vmem:[%s1 + $0xc] sm:$0xf]
          %v323 = vld [vmem:[%s2] sm:$0x1]
          %v325 = vperm.slane %v323, 0
          %v343 = vunpack.c.l.b16 %v303
          %v344 = vunpack.c.l.b16 %v304
          %v345 = vunpack.c.l.b16 %v305
          %v346 = vunpack.c.l.b16 %v306
          %v347 = vunpack.c.l.b16 %v307
          %v348 = vunpack.c.l.b16 %v308
          %v349 = vunpack.c.l.b16 %v309
          %v350 = vunpack.c.l.b16 %v310
          %v351 = vunpack.c.l.b16 %v311
          %v352 = vunpack.c.l.b16 %v312
          %v353 = vunpack.c.l.b16 %v313
          %v354 = vunpack.c.l.b16 %v314
          %v355 = vunpack.c.l.b16 %v315
          %v356 = vunpack.c.l.b16 %v316
          %v357 = vunpack.c.l.b16 %v317
          %v358 = vunpack.c.l.b16 %v318
          %v359 = vpack.c.b16 %v344, %v343
          %v360 = vpack.c.b16 %v346, %v345
          %v361 = vpack.c.b16 %v348, %v347
          %v362 = vpack.c.b16 %v350, %v349
          %v363 = vpack.c.b16 %v352, %v351
          %v364 = vpack.c.b16 %v354, %v353
          %v365 = vpack.c.b16 %v356, %v355
          %v366 = vpack.c.b16 %v358, %v357
          %v371 = vunpack.c.l.b16 %v319
          %v372 = vunpack.c.l.b16 %v320
          %v373 = vunpack.c.l.b16 %v321
          %v374 = vunpack.c.l.b16 %v322
          %v375 = vpack.c.b16 %v372, %v371
          %v376 = vpack.c.b16 %v374, %v373
          %vm379 = vcmask 261120
          %v381 = vsel %vm379, %v359, 0
          %v384 = vsel %vm379, %v360, 0
          %v387 = vsel %vm379, %v361, 0
          %v390 = vsel %vm379, %v362, 0
          %v393 = vsel %vm379, %v363, 0
          %v396 = vsel %vm379, %v364, 0
          %v399 = vsel %vm379, %v365, 0
          %v402 = vsel %vm379, %v366, 0
          %404 = vmatpush.bf16.msra.mxu0 0
          %405 = vmatpush.bf16.msra.mxu0 0
          %406 = vmatpush.bf16.msra.mxu0 0
          %407 = vmatpush.bf16.msra.mxu0 0
          %408 = vmatpush.bf16.msra.mxu0 0
          %409 = vmatpush.bf16.msra.mxu0 0
          %410 = vmatpush.bf16.msra.mxu0 %v376
          %411 = vmatpush.bf16.msra.mxu0 %v375
          %412 = vmatmul.bf16.gmra.mxu0 %v381
          %v413 = vpop.f32.mrf.mxu0
          %v414 = vadd.f32 %v325, %v413
          %v415 = vpop.f32.mrf.mxu0
          %v416 = vadd.f32 %v325, %v415
          %417 = vmatmul.bf16.gmra.mxu0 %v384
          %v418 = vpop.f32.mrf.mxu0
          %v419 = vadd.f32 %v325, %v418
          %v420 = vpop.f32.mrf.mxu0
          %v421 = vadd.f32 %v325, %v420
          %422 = vmatmul.bf16.gmra.mxu0 %v387
          %v423 = vpop.f32.mrf.mxu0
          %v424 = vadd.f32 %v325, %v423
          %v425 = vpop.f32.mrf.mxu0
          %v426 = vadd.f32 %v325, %v425
          %427 = vmatmul.bf16.gmra.mxu0 %v390
          %v428 = vpop.f32.mrf.mxu0
          %v429 = vadd.f32 %v325, %v428
          %v430 = vpop.f32.mrf.mxu0
          %v431 = vadd.f32 %v325, %v430
          %432 = vmatmul.bf16.gmra.mxu0 %v393
          %v433 = vpop.f32.mrf.mxu0
          %v434 = vadd.f32 %v325, %v433
          %v435 = vpop.f32.mrf.mxu0
          %v436 = vadd.f32 %v325, %v435
          %437 = vmatmul.bf16.gmra.mxu0 %v396
          %v438 = vpop.f32.mrf.mxu0
          %v439 = vadd.f32 %v325, %v438
          %v440 = vpop.f32.mrf.mxu0
          %v441 = vadd.f32 %v325, %v440
          %442 = vmatmul.bf16.gmra.mxu0 %v399
          %v443 = vpop.f32.mrf.mxu0
          %v444 = vadd.f32 %v325, %v443
          %v445 = vpop.f32.mrf.mxu0
          %v446 = vadd.f32 %v325, %v445
          %447 = vmatmul.bf16.gmra.mxu0 %v402
          %v448 = vpop.f32.mrf.mxu0
          %v449 = vadd.f32 %v325, %v448
          %v450 = vpop.f32.mrf.mxu0
          %v451 = vadd.f32 %v325, %v450
          %452 = vdwg.mxu0
          %v453 = vmul.f32 %v414, 0.35355338
          %v454 = vmul.f32 %v416, 0.35355338
          %v455 = vmul.f32 %v419, 0.35355338
          %v456 = vmul.f32 %v421, 0.35355338
          %v457 = vmul.f32 %v424, 0.35355338
          %v458 = vmul.f32 %v426, 0.35355338
          %v459 = vmul.f32 %v429, 0.35355338
          %v460 = vmul.f32 %v431, 0.35355338
          %v461 = vmul.f32 %v434, 0.35355338
          %v462 = vmul.f32 %v436, 0.35355338
          %v463 = vmul.f32 %v439, 0.35355338
          %v464 = vmul.f32 %v441, 0.35355338
          %v465 = vmul.f32 %v444, 0.35355338
          %v466 = vmul.f32 %v446, 0.35355338
          %v467 = vmul.f32 %v449, 0.35355338
          %v468 = vmul.f32 %v451, 0.35355338
          %v469 = vpack.c.bf16 %v453, %v453
          %v470 = vpack.c.bf16 %v454, %v454
          %v471 = vpack.c.bf16 %v455, %v455
          %v472 = vpack.c.bf16 %v456, %v456
          %v473 = vpack.c.bf16 %v457, %v457
          %v474 = vpack.c.bf16 %v458, %v458
          %v475 = vpack.c.bf16 %v459, %v459
          %v476 = vpack.c.bf16 %v460, %v460
          %v477 = vpack.c.bf16 %v461, %v461
          %v478 = vpack.c.bf16 %v462, %v462
          %v479 = vpack.c.bf16 %v463, %v463
          %v480 = vpack.c.bf16 %v464, %v464
          %v481 = vpack.c.bf16 %v465, %v465
          %v482 = vpack.c.bf16 %v466, %v466
          %v483 = vpack.c.bf16 %v467, %v467
          %v484 = vpack.c.bf16 %v468, %v468
          %vm485 = vcmask 257024
          %486 = vst.msk [vmem:[#allocation2] sm:$0xf] %vm485, %v469
          %487 = vst.msk [vmem:[#allocation2 + $0x4] sm:$0xf] %vm485, %v470
          %488 = vst.msk [vmem:[#allocation2 + $0x8] sm:$0xf] %vm485, %v471
          %489 = vst.msk [vmem:[#allocation2 + $0xc] sm:$0xf] %vm485, %v472
          %490 = vst.msk [vmem:[#allocation2 + $0x10] sm:$0xf] %vm485, %v473
          %491 = vst.msk [vmem:[#allocation2 + $0x14] sm:$0xf] %vm485, %v474
          %492 = vst.msk [vmem:[#allocation2 + $0x18] sm:$0xf] %vm485, %v475
          %493 = vst.msk [vmem:[#allocation2 + $0x1c] sm:$0xf] %vm485, %v476
          %494 = vst.msk [vmem:[#allocation2 + $0x20] sm:$0xf] %vm485, %v477
          %495 = vst.msk [vmem:[#allocation2 + $0x24] sm:$0xf] %vm485, %v478
          %496 = vst.msk [vmem:[#allocation2 + $0x28] sm:$0xf] %vm485, %v479
          %497 = vst.msk [vmem:[#allocation2 + $0x2c] sm:$0xf] %vm485, %v480
          %498 = vst.msk [vmem:[#allocation2 + $0x30] sm:$0xf] %vm485, %v481
          %499 = vst.msk [vmem:[#allocation2 + $0x34] sm:$0xf] %vm485, %v482
          %500 = vst.msk [vmem:[#allocation2 + $0x38] sm:$0xf] %vm485, %v483
          %501 = vst.msk [vmem:[#allocation2 + $0x3c] sm:$0xf] %vm485, %v484
          %v502 = vpack.c.bf16 %v414, %v414
          %v503 = vpack.c.bf16 %v416, %v416
          %v504 = vpack.c.bf16 %v419, %v419
          %v505 = vpack.c.bf16 %v421, %v421
          %v506 = vpack.c.bf16 %v424, %v424
          %v507 = vpack.c.bf16 %v426, %v426
          %v508 = vpack.c.bf16 %v429, %v429
          %v509 = vpack.c.bf16 %v431, %v431
          %v510 = vpack.c.bf16 %v434, %v434
          %v511 = vpack.c.bf16 %v436, %v436
          %v512 = vpack.c.bf16 %v439, %v439
          %v513 = vpack.c.bf16 %v441, %v441
          %v514 = vpack.c.bf16 %v444, %v444
          %v515 = vpack.c.bf16 %v446, %v446
          %v516 = vpack.c.bf16 %v449, %v449
          %v517 = vpack.c.bf16 %v451, %v451
          %534 = vrot.lane.b32.xlu0 %v502, 96
          %v535 = vpop.permute.xlu0 %534
          %536 = vrot.lane.b32.xlu0 %v503, 96
          %v537 = vpop.permute.xlu0 %536
          %538 = vrot.lane.b32.xlu0 %v504, 96
          %v539 = vpop.permute.xlu0 %538
          %540 = vrot.lane.b32.xlu0 %v505, 96
          %v541 = vpop.permute.xlu0 %540
          %542 = vrot.lane.b32.xlu0 %v506, 96
          %v543 = vpop.permute.xlu0 %542
          %544 = vrot.lane.b32.xlu0 %v507, 96
          %v545 = vpop.permute.xlu0 %544
          %546 = vrot.lane.b32.xlu0 %v508, 96
          %v547 = vpop.permute.xlu0 %546
          %548 = vrot.lane.b32.xlu0 %v509, 96
          %v549 = vpop.permute.xlu0 %548
          %550 = vrot.lane.b32.xlu0 %v510, 96
          %v551 = vpop.permute.xlu0 %550
          %552 = vrot.lane.b32.xlu0 %v511, 96
          %v553 = vpop.permute.xlu0 %552
          %554 = vrot.lane.b32.xlu0 %v512, 96
          %v555 = vpop.permute.xlu0 %554
          %556 = vrot.lane.b32.xlu0 %v513, 96
          %v557 = vpop.permute.xlu0 %556
          %558 = vrot.lane.b32.xlu0 %v514, 96
          %v559 = vpop.permute.xlu0 %558
          %560 = vrot.lane.b32.xlu0 %v515, 96
          %v561 = vpop.permute.xlu0 %560
          %562 = vrot.lane.b32.xlu0 %v516, 96
          %v563 = vpop.permute.xlu0 %562
          %564 = vrot.lane.b32.xlu0 %v517, 96
          %v565 = vpop.permute.xlu0 %564
          %582 = vst.msk [vmem:[#allocation3] sm:$0xf] %vm485, %v535
          %583 = vst.msk [vmem:[#allocation3 + $0x4] sm:$0xf] %vm485, %v537
          %584 = vst.msk [vmem:[#allocation3 + $0x8] sm:$0xf] %vm485, %v539
          %585 = vst.msk [vmem:[#allocation3 + $0xc] sm:$0xf] %vm485, %v541
          %586 = vst.msk [vmem:[#allocation3 + $0x10] sm:$0xf] %vm485, %v543
          %587 = vst.msk [vmem:[#allocation3 + $0x14] sm:$0xf] %vm485, %v545
          %588 = vst.msk [vmem:[#allocation3 + $0x18] sm:$0xf] %vm485, %v547
          %589 = vst.msk [vmem:[#allocation3 + $0x1c] sm:$0xf] %vm485, %v549
          %590 = vst.msk [vmem:[#allocation3 + $0x20] sm:$0xf] %vm485, %v551
          %591 = vst.msk [vmem:[#allocation3 + $0x24] sm:$0xf] %vm485, %v553
          %592 = vst.msk [vmem:[#allocation3 + $0x28] sm:$0xf] %vm485, %v555
          %593 = vst.msk [vmem:[#allocation3 + $0x2c] sm:$0xf] %vm485, %v557
          %594 = vst.msk [vmem:[#allocation3 + $0x30] sm:$0xf] %vm485, %v559
          %595 = vst.msk [vmem:[#allocation3 + $0x34] sm:$0xf] %vm485, %v561
          %596 = vst.msk [vmem:[#allocation3 + $0x38] sm:$0xf] %vm485, %v563
          %597 = vst.msk [vmem:[#allocation3 + $0x3c] sm:$0xf] %vm485, %v565
          %598 = vrot.lane.b32.xlu0 %v502, 64
          %v599 = vpop.permute.xlu0 %598
          %600 = vrot.lane.b32.xlu0 %v503, 64
          %v601 = vpop.permute.xlu0 %600
          %602 = vrot.lane.b32.xlu0 %v504, 64
          %v603 = vpop.permute.xlu0 %602
          %604 = vrot.lane.b32.xlu0 %v505, 64
          %v605 = vpop.permute.xlu0 %604
          %606 = vrot.lane.b32.xlu0 %v506, 64
          %v607 = vpop.permute.xlu0 %606
          %608 = vrot.lane.b32.xlu0 %v507, 64
          %v609 = vpop.permute.xlu0 %608
          %610 = vrot.lane.b32.xlu0 %v508, 64
          %v611 = vpop.permute.xlu0 %610
          %612 = vrot.lane.b32.xlu0 %v509, 64
          %v613 = vpop.permute.xlu0 %612
          %614 = vrot.lane.b32.xlu0 %v510, 64
          %v615 = vpop.permute.xlu0 %614
          %616 = vrot.lane.b32.xlu0 %v511, 64
          %v617 = vpop.permute.xlu0 %616
          %618 = vrot.lane.b32.xlu0 %v512, 64
          %v619 = vpop.permute.xlu0 %618
          %620 = vrot.lane.b32.xlu0 %v513, 64
          %v621 = vpop.permute.xlu0 %620
          %622 = vrot.lane.b32.xlu0 %v514, 64
          %v623 = vpop.permute.xlu0 %622
          %624 = vrot.lane.b32.xlu0 %v515, 64
          %v625 = vpop.permute.xlu0 %624
          %626 = vrot.lane.b32.xlu0 %v516, 64
          %v627 = vpop.permute.xlu0 %626
          %628 = vrot.lane.b32.xlu0 %v517, 64
          %v629 = vpop.permute.xlu0 %628
          %646 = vst.msk [vmem:[#allocation4] sm:$0xf] %vm485, %v599
          %647 = vst.msk [vmem:[#allocation4 + $0x4] sm:$0xf] %vm485, %v601
          %648 = vst.msk [vmem:[#allocation4 + $0x8] sm:$0xf] %vm485, %v603
          %649 = vst.msk [vmem:[#allocation4 + $0xc] sm:$0xf] %vm485, %v605
          %650 = vst.msk [vmem:[#allocation4 + $0x10] sm:$0xf] %vm485, %v607
          %651 = vst.msk [vmem:[#allocation4 + $0x14] sm:$0xf] %vm485, %v609
          %652 = vst.msk [vmem:[#allocation4 + $0x18] sm:$0xf] %vm485, %v611
          %653 = vst.msk [vmem:[#allocation4 + $0x1c] sm:$0xf] %vm485, %v613
          %654 = vst.msk [vmem:[#allocation4 + $0x20] sm:$0xf] %vm485, %v615
          %655 = vst.msk [vmem:[#allocation4 + $0x24] sm:$0xf] %vm485, %v617
          %656 = vst.msk [vmem:[#allocation4 + $0x28] sm:$0xf] %vm485, %v619
          %657 = vst.msk [vmem:[#allocation4 + $0x2c] sm:$0xf] %vm485, %v621
          %658 = vst.msk [vmem:[#allocation4 + $0x30] sm:$0xf] %vm485, %v623
          %659 = vst.msk [vmem:[#allocation4 + $0x34] sm:$0xf] %vm485, %v625
          %660 = vst.msk [vmem:[#allocation4 + $0x38] sm:$0xf] %vm485, %v627
          %661 = vst.msk [vmem:[#allocation4 + $0x3c] sm:$0xf] %vm485, %v629
          %662 = vst.msk [vmem:[%s296] sm:$0xff] %vm379, 0.0
          %663 = vst.msk [vmem:[%s296 + $0x8] sm:$0xff] %vm379, 0.0
          %664 = vst.msk [vmem:[%s296 + $0x10] sm:$0xff] %vm379, 0.0
          %665 = vst.msk [vmem:[%s296 + $0x18] sm:$0xff] %vm379, 0.0
          %666 = vst.msk [vmem:[%s296 + $0x20] sm:$0xff] %vm379, 0.0
          %667 = vst.msk [vmem:[%s296 + $0x28] sm:$0xff] %vm379, 0.0
          %668 = vst.msk [vmem:[%s296 + $0x30] sm:$0xff] %vm379, 0.0
          %669 = vst.msk [vmem:[%s296 + $0x38] sm:$0xff] %vm379, 0.0
          %670 = vst.msk [vmem:[%s296 + $0x40] sm:$0xff] %vm379, 0.0
          %671 = vst.msk [vmem:[%s296 + $0x48] sm:$0xff] %vm379, 0.0
          %672 = vst.msk [vmem:[%s296 + $0x50] sm:$0xff] %vm379, 0.0
          %673 = vst.msk [vmem:[%s296 + $0x58] sm:$0xff] %vm379, 0.0
          %674 = vst.msk [vmem:[%s296 + $0x60] sm:$0xff] %vm379, 0.0
          %675 = vst.msk [vmem:[%s296 + $0x68] sm:$0xff] %vm379, 0.0
          %676 = vst.msk [vmem:[%s296 + $0x70] sm:$0xff] %vm379, 0.0
          %677 = vst.msk [vmem:[%s296 + $0x78] sm:$0xff] %vm379, 0.0
        $region44: #{tpu_custom_call.1} parent=39 // pred_fallthru
          _
        %s678 = smul.u32 %s26, 16
        %s679 = smul.addr %s678, 4
        %s680 = scalar_lea.vmem [#allocation2], %s679
        %v681 = vld [vmem:[%s680] sm:$0xf]
        %v682 = vld [vmem:[%s680 + $0x4] sm:$0xf]
        %v683 = vld [vmem:[%s680 + $0x8] sm:$0xf]
        %v684 = vld [vmem:[%s680 + $0xc] sm:$0xf]
        %v685 = vld [vmem:[%s680 + $0x10] sm:$0xf]
        %v686 = vld [vmem:[%s680 + $0x14] sm:$0xf]
        %v687 = vld [vmem:[%s680 + $0x18] sm:$0xf]
        %v688 = vld [vmem:[%s680 + $0x1c] sm:$0xf]
        %v689 = vld [vmem:[%s680 + $0x20] sm:$0xf]
        %v690 = vld [vmem:[%s680 + $0x24] sm:$0xf]
        %v691 = vld [vmem:[%s680 + $0x28] sm:$0xf]
        %v692 = vld [vmem:[%s680 + $0x2c] sm:$0xf]
        %v693 = vld [vmem:[%s680 + $0x30] sm:$0xf]
        %v694 = vld [vmem:[%s680 + $0x34] sm:$0xf]
        %v695 = vld [vmem:[%s680 + $0x38] sm:$0xf]
        %v696 = vld [vmem:[%s680 + $0x3c] sm:$0xf]
        %s697 = smul.addr %s678, 4
        %s698 = scalar_lea.vmem [#allocation3], %s697
        %v699 = vld [vmem:[%s698] sm:$0xf]
        %v700 = vld [vmem:[%s698 + $0x4] sm:$0xf]
        %v701 = vld [vmem:[%s698 + $0x8] sm:$0xf]
        %v702 = vld [vmem:[%s698 + $0xc] sm:$0xf]
        %v703 = vld [vmem:[%s698 + $0x10] sm:$0xf]
        %v704 = vld [vmem:[%s698 + $0x14] sm:$0xf]
        %v705 = vld [vmem:[%s698 + $0x18] sm:$0xf]
        %v706 = vld [vmem:[%s698 + $0x1c] sm:$0xf]
        %v707 = vld [vmem:[%s698 + $0x20] sm:$0xf]
        %v708 = vld [vmem:[%s698 + $0x24] sm:$0xf]
        %v709 = vld [vmem:[%s698 + $0x28] sm:$0xf]
        %v710 = vld [vmem:[%s698 + $0x2c] sm:$0xf]
        %v711 = vld [vmem:[%s698 + $0x30] sm:$0xf]
        %v712 = vld [vmem:[%s698 + $0x34] sm:$0xf]
        %v713 = vld [vmem:[%s698 + $0x38] sm:$0xf]
        %v714 = vld [vmem:[%s698 + $0x3c] sm:$0xf]
        %s715 = smul.addr %s678, 4
        %s716 = scalar_lea.vmem [#allocation4], %s715
        %v717 = vld [vmem:[%s716] sm:$0xf]
        %v718 = vld [vmem:[%s716 + $0x4] sm:$0xf]
        %v719 = vld [vmem:[%s716 + $0x8] sm:$0xf]
        %v720 = vld [vmem:[%s716 + $0xc] sm:$0xf]
        %v721 = vld [vmem:[%s716 + $0x10] sm:$0xf]
        %v722 = vld [vmem:[%s716 + $0x14] sm:$0xf]
        %v723 = vld [vmem:[%s716 + $0x18] sm:$0xf]
        %v724 = vld [vmem:[%s716 + $0x1c] sm:$0xf]
        %v725 = vld [vmem:[%s716 + $0x20] sm:$0xf]
        %v726 = vld [vmem:[%s716 + $0x24] sm:$0xf]
        %v727 = vld [vmem:[%s716 + $0x28] sm:$0xf]
        %v728 = vld [vmem:[%s716 + $0x2c] sm:$0xf]
        %v729 = vld [vmem:[%s716 + $0x30] sm:$0xf]
        %v730 = vld [vmem:[%s716 + $0x34] sm:$0xf]
        %v731 = vld [vmem:[%s716 + $0x38] sm:$0xf]
        %v732 = vld [vmem:[%s716 + $0x3c] sm:$0xf]
        %v733 = vlaneseq
        %v734 = vand.u32 %v733, 127
        %vm735 = vcmp.lt.s32.totalorder %v734, 8
        %v736 = vsel %vm735, 0.0, -1e+30
        %v753 = vunpack.c.l.b16 %v681
        %v754 = vunpack.c.l.b16 %v682
        %v755 = vunpack.c.l.b16 %v683
        %v756 = vunpack.c.l.b16 %v684
        %v757 = vunpack.c.l.b16 %v685
        %v758 = vunpack.c.l.b16 %v686
        %v759 = vunpack.c.l.b16 %v687
        %v760 = vunpack.c.l.b16 %v688
        %v761 = vunpack.c.l.b16 %v689
        %v762 = vunpack.c.l.b16 %v690
        %v763 = vunpack.c.l.b16 %v691
        %v764 = vunpack.c.l.b16 %v692
        %v765 = vunpack.c.l.b16 %v693
        %v766 = vunpack.c.l.b16 %v694
        %v767 = vunpack.c.l.b16 %v695
        %v768 = vunpack.c.l.b16 %v696
        %v769 = vpack.c.b16 %v754, %v753
        %v770 = vpack.c.b16 %v756, %v755
        %v771 = vpack.c.b16 %v758, %v757
        %v772 = vpack.c.b16 %v760, %v759
        %v773 = vpack.c.b16 %v762, %v761
        %v774 = vpack.c.b16 %v764, %v763
        %v775 = vpack.c.b16 %v766, %v765
        %v776 = vpack.c.b16 %v768, %v767
        %v793 = vunpack.c.l.b16 %v699
        %v794 = vunpack.c.l.b16 %v700
        %v795 = vunpack.c.l.b16 %v701
        %v796 = vunpack.c.l.b16 %v702
        %v797 = vunpack.c.l.b16 %v703
        %v798 = vunpack.c.l.b16 %v704
        %v799 = vunpack.c.l.b16 %v705
        %v800 = vunpack.c.l.b16 %v706
        %v801 = vunpack.c.l.b16 %v707
        %v802 = vunpack.c.l.b16 %v708
        %v803 = vunpack.c.l.b16 %v709
        %v804 = vunpack.c.l.b16 %v710
        %v805 = vunpack.c.l.b16 %v711
        %v806 = vunpack.c.l.b16 %v712
        %v807 = vunpack.c.l.b16 %v713
        %v808 = vunpack.c.l.b16 %v714
        %v809 = vpack.c.b16 %v794, %v793
        %v810 = vpack.c.b16 %v796, %v795
        %v811 = vpack.c.b16 %v798, %v797
        %v812 = vpack.c.b16 %v800, %v799
        %v813 = vpack.c.b16 %v802, %v801
        %v814 = vpack.c.b16 %v804, %v803
        %v815 = vpack.c.b16 %v806, %v805
        %v816 = vpack.c.b16 %v808, %v807
        %vm817 = vcmask 64512
        %v819 = vsel %vm817, %v769, 0
        %v822 = vsel %vm817, %v770, 0
        %v825 = vsel %vm817, %v771, 0
        %v828 = vsel %vm817, %v772, 0
        %v831 = vsel %vm817, %v773, 0
        %v834 = vsel %vm817, %v774, 0
        %v837 = vsel %vm817, %v775, 0
        %v840 = vsel %vm817, %v776, 0
        %v843 = vsel %vm817, %v809, 0
        %v846 = vsel %vm817, %v810, 0
        %v849 = vsel %vm817, %v811, 0
        %v852 = vsel %vm817, %v812, 0
        %v855 = vsel %vm817, %v813, 0
        %v858 = vsel %vm817, %v814, 0
        %v861 = vsel %vm817, %v815, 0
        %v864 = vsel %vm817, %v816, 0
        %866 = vmatpush.bf16.xpose.msra.mxu0 %v864
        %867 = vmatpush.bf16.xpose.msra.mxu0 %v861
        %868 = vmatpush.bf16.xpose.msra.mxu0 %v858
        %869 = vmatpush.bf16.xpose.msra.mxu0 %v855
        %870 = vmatpush.bf16.xpose.msra.mxu0 %v852
        %871 = vmatpush.bf16.xpose.msra.mxu0 %v849
        %872 = vmatpush.bf16.xpose.msra.mxu0 %v846
        %873 = vmatpush.bf16.xpose.msra.mxu0 %v843
        %874 = vmatmul.bf16.gmra.mxu0 %v819
        %v875 = vpop.f32.mrf.mxu0
        %v876 = vadd.f32 %v736, %v875
        %v877 = vpop.f32.mrf.mxu0
        %v878 = vadd.f32 %v736, %v877
        %879 = vmatmul.bf16.gmra.mxu0 %v822
        %v880 = vpop.f32.mrf.mxu0
        %v881 = vadd.f32 %v736, %v880
        %v882 = vpop.f32.mrf.mxu0
        %v883 = vadd.f32 %v736, %v882
        %884 = vmatmul.bf16.gmra.mxu0 %v825
        %v885 = vpop.f32.mrf.mxu0
        %v886 = vadd.f32 %v736, %v885
        %v887 = vpop.f32.mrf.mxu0
        %v888 = vadd.f32 %v736, %v887
        %889 = vmatmul.bf16.gmra.mxu0 %v828
        %v890 = vpop.f32.mrf.mxu0
        %v891 = vadd.f32 %v736, %v890
        %v892 = vpop.f32.mrf.mxu0
        %v893 = vadd.f32 %v736, %v892
        %894 = vmatmul.bf16.gmra.mxu0 %v831
        %v895 = vpop.f32.mrf.mxu0
        %v896 = vadd.f32 %v736, %v895
        %v897 = vpop.f32.mrf.mxu0
        %v898 = vadd.f32 %v736, %v897
        %899 = vmatmul.bf16.gmra.mxu0 %v834
        %v900 = vpop.f32.mrf.mxu0
        %v901 = vadd.f32 %v736, %v900
        %v902 = vpop.f32.mrf.mxu0
        %v903 = vadd.f32 %v736, %v902
        %904 = vmatmul.bf16.gmra.mxu0 %v837
        %v905 = vpop.f32.mrf.mxu0
        %v906 = vadd.f32 %v736, %v905
        %v907 = vpop.f32.mrf.mxu0
        %v908 = vadd.f32 %v736, %v907
        %909 = vmatmul.bf16.gmra.mxu0 %v840
        %v910 = vpop.f32.mrf.mxu0
        %v911 = vadd.f32 %v736, %v910
        %v912 = vpop.f32.mrf.mxu0
        %v913 = vadd.f32 %v736, %v912
        %914 = vdwg.mxu0
        %915 = vmax.xlane.f32.xlu0 %v876
        %v916 = vpop.xlane.xlu0 %915
        %917 = vmax.xlane.f32.xlu0 %v878
        %v918 = vpop.xlane.xlu0 %917
        %919 = vmax.xlane.f32.xlu0 %v881
        %v920 = vpop.xlane.xlu0 %919
        %921 = vmax.xlane.f32.xlu0 %v883
        %v922 = vpop.xlane.xlu0 %921
        %923 = vmax.xlane.f32.xlu0 %v886
        %v924 = vpop.xlane.xlu0 %923
        %925 = vmax.xlane.f32.xlu0 %v888
        %v926 = vpop.xlane.xlu0 %925
        %927 = vmax.xlane.f32.xlu0 %v891
        %v928 = vpop.xlane.xlu0 %927
        %929 = vmax.xlane.f32.xlu0 %v893
        %v930 = vpop.xlane.xlu0 %929
        %931 = vmax.xlane.f32.xlu0 %v896
        %v932 = vpop.xlane.xlu0 %931
        %933 = vmax.xlane.f32.xlu0 %v898
        %v934 = vpop.xlane.xlu0 %933
        %935 = vmax.xlane.f32.xlu0 %v901
        %v936 = vpop.xlane.xlu0 %935
        %937 = vmax.xlane.f32.xlu0 %v903
        %v938 = vpop.xlane.xlu0 %937
        %939 = vmax.xlane.f32.xlu0 %v906
        %v940 = vpop.xlane.xlu0 %939
        %941 = vmax.xlane.f32.xlu0 %v908
        %v942 = vpop.xlane.xlu0 %941
        %943 = vmax.xlane.f32.xlu0 %v911
        %v944 = vpop.xlane.xlu0 %943
        %945 = vmax.xlane.f32.xlu0 %v913
        %v946 = vpop.xlane.xlu0 %945
        %v947 = vsub.f32 %v876, %v916
        %v948 = vsub.f32 %v878, %v918
        %v949 = vsub.f32 %v881, %v920
        %v950 = vsub.f32 %v883, %v922
        %v951 = vsub.f32 %v886, %v924
        %v952 = vsub.f32 %v888, %v926
        %v953 = vsub.f32 %v891, %v928
        %v954 = vsub.f32 %v893, %v930
        %v955 = vsub.f32 %v896, %v932
        %v956 = vsub.f32 %v898, %v934
        %v957 = vsub.f32 %v901, %v936
        %v958 = vsub.f32 %v903, %v938
        %v959 = vsub.f32 %v906, %v940
        %v960 = vsub.f32 %v908, %v942
        %v961 = vsub.f32 %v911, %v944
        %v962 = vsub.f32 %v913, %v946
        %v963 = vmul.f32 %v947, 1.442695
        %v964 = vpow.pop %v963
        %v965 = vmul.f32 %v948, 1.442695
        %v966 = vpow.pop %v965
        %v967 = vmul.f32 %v949, 1.442695
        %v968 = vpow.pop %v967
        %v969 = vmul.f32 %v950, 1.442695
        %v970 = vpow.pop %v969
        %v971 = vmul.f32 %v951, 1.442695
        %v972 = vpow.pop %v971
        %v973 = vmul.f32 %v952, 1.442695
        %v974 = vpow.pop %v973
        %v975 = vmul.f32 %v953, 1.442695
        %v976 = vpow.pop %v975
        %v977 = vmul.f32 %v954, 1.442695
        %v978 = vpow.pop %v977
        %v979 = vmul.f32 %v955, 1.442695
        %v980 = vpow.pop %v979
        %v981 = vmul.f32 %v956, 1.442695
        %v982 = vpow.pop %v981
        %v983 = vmul.f32 %v957, 1.442695
        %v984 = vpow.pop %v983
        %v985 = vmul.f32 %v958, 1.442695
        %v986 = vpow.pop %v985
        %v987 = vmul.f32 %v959, 1.442695
        %v988 = vpow.pop %v987
        %v989 = vmul.f32 %v960, 1.442695
        %v990 = vpow.pop %v989
        %v991 = vmul.f32 %v961, 1.442695
        %v992 = vpow.pop %v991
        %v993 = vmul.f32 %v962, 1.442695
        %v994 = vpow.pop %v993
        %995 = vadd.xlane.f32.xlu0 %v964
        %v996 = vpop.xlane.xlu0 %995
        %997 = vadd.xlane.f32.xlu0 %v966
        %v998 = vpop.xlane.xlu0 %997
        %999 = vadd.xlane.f32.xlu0 %v968
        %v1000 = vpop.xlane.xlu0 %999
        %1001 = vadd.xlane.f32.xlu0 %v970
        %v1002 = vpop.xlane.xlu0 %1001
        %1003 = vadd.xlane.f32.xlu0 %v972
        %v1004 = vpop.xlane.xlu0 %1003
        %1005 = vadd.xlane.f32.xlu0 %v974
        %v1006 = vpop.xlane.xlu0 %1005
        %1007 = vadd.xlane.f32.xlu0 %v976
        %v1008 = vpop.xlane.xlu0 %1007
        %1009 = vadd.xlane.f32.xlu0 %v978
        %v1010 = vpop.xlane.xlu0 %1009
        %1011 = vadd.xlane.f32.xlu0 %v980
        %v1012 = vpop.xlane.xlu0 %1011
        %1013 = vadd.xlane.f32.xlu0 %v982
        %v1014 = vpop.xlane.xlu0 %1013
        %1015 = vadd.xlane.f32.xlu0 %v984
        %v1016 = vpop.xlane.xlu0 %1015
        %1017 = vadd.xlane.f32.xlu0 %v986
        %v1018 = vpop.xlane.xlu0 %1017
        %1019 = vadd.xlane.f32.xlu0 %v988
        %v1020 = vpop.xlane.xlu0 %1019
        %1021 = vadd.xlane.f32.xlu0 %v990
        %v1022 = vpop.xlane.xlu0 %1021
        %1023 = vadd.xlane.f32.xlu0 %v992
        %v1024 = vpop.xlane.xlu0 %1023
        %1025 = vadd.xlane.f32.xlu0 %v994
        %v1026 = vpop.xlane.xlu0 %1025
        %v1027 = vrcp.pop %v996
        %v1028 = vmul.f32 %v996, %v1027
        %v1029 = vsub.f32 1.0, %v1028
        %v1030 = vmul.f32 %v1027, %v1029
        %v1031 = vadd.f32 %v1027, %v1030
        %vm1032 = vweird.f32 %v996
        %vm1033 = vweird.f32 %v1027
        %vm1034 = vmor %vm1032, %vm1033
        %v1035 = vsel %vm1034, %v1027, %v1031
        %v1036 = vand.u32 2147483647, %v996
        %vm1037 = vcmp.eq.f32.partialorder %v1036, 8.507059e+37
        %v1038 = vand.u32 %v996, 2147483648
        %v1039 = vor.u32 1.1754944e-38, %v1038
        %v1040 = vsel %vm1037, %v1039, %v1035
        %v1041 = vrcp.pop %v998
        %v1042 = vmul.f32 %v998, %v1041
        %v1043 = vsub.f32 1.0, %v1042
        %v1044 = vmul.f32 %v1041, %v1043
        %v1045 = vadd.f32 %v1041, %v1044
        %vm1046 = vweird.f32 %v998
        %vm1047 = vweird.f32 %v1041
        %vm1048 = vmor %vm1046, %vm1047
        %v1049 = vsel %vm1048, %v1041, %v1045
        %v1050 = vand.u32 2147483647, %v998
        %vm1051 = vcmp.eq.f32.partialorder %v1050, 8.507059e+37
        %v1052 = vand.u32 %v998, 2147483648
        %v1053 = vor.u32 1.1754944e-38, %v1052
        %v1054 = vsel %vm1051, %v1053, %v1049
        %v1055 = vrcp.pop %v1000
        %v1056 = vmul.f32 %v1000, %v1055
        %v1057 = vsub.f32 1.0, %v1056
        %v1058 = vmul.f32 %v1055, %v1057
        %v1059 = vadd.f32 %v1055, %v1058
        %vm1060 = vweird.f32 %v1000
        %vm1061 = vweird.f32 %v1055
        %vm1062 = vmor %vm1060, %vm1061
        %v1063 = vsel %vm1062, %v1055, %v1059
        %v1064 = vand.u32 2147483647, %v1000
        %vm1065 = vcmp.eq.f32.partialorder %v1064, 8.507059e+37
        %v1066 = vand.u32 %v1000, 2147483648
        %v1067 = vor.u32 1.1754944e-38, %v1066
        %v1068 = vsel %vm1065, %v1067, %v1063
        %v1069 = vrcp.pop %v1002
        %v1070 = vmul.f32 %v1002, %v1069
        %v1071 = vsub.f32 1.0, %v1070
        %v1072 = vmul.f32 %v1069, %v1071
        %v1073 = vadd.f32 %v1069, %v1072
        %vm1074 = vweird.f32 %v1002
        %vm1075 = vweird.f32 %v1069
        %vm1076 = vmor %vm1074, %vm1075
        %v1077 = vsel %vm1076, %v1069, %v1073
        %v1078 = vand.u32 2147483647, %v1002
        %vm1079 = vcmp.eq.f32.partialorder %v1078, 8.507059e+37
        %v1080 = vand.u32 %v1002, 2147483648
        %v1081 = vor.u32 1.1754944e-38, %v1080
        %v1082 = vsel %vm1079, %v1081, %v1077
        %v1083 = vrcp.pop %v1004
        %v1084 = vmul.f32 %v1004, %v1083
        %v1085 = vsub.f32 1.0, %v1084
        %v1086 = vmul.f32 %v1083, %v1085
        %v1087 = vadd.f32 %v1083, %v1086
        %vm1088 = vweird.f32 %v1004
        %vm1089 = vweird.f32 %v1083
        %vm1090 = vmor %vm1088, %vm1089
        %v1091 = vsel %vm1090, %v1083, %v1087
        %v1092 = vand.u32 2147483647, %v1004
        %vm1093 = vcmp.eq.f32.partialorder %v1092, 8.507059e+37
        %v1094 = vand.u32 %v1004, 2147483648
        %v1095 = vor.u32 1.1754944e-38, %v1094
        %v1096 = vsel %vm1093, %v1095, %v1091
        %v1097 = vrcp.pop %v1006
        %v1098 = vmul.f32 %v1006, %v1097
        %v1099 = vsub.f32 1.0, %v1098
        %v1100 = vmul.f32 %v1097, %v1099
        %v1101 = vadd.f32 %v1097, %v1100
        %vm1102 = vweird.f32 %v1006
        %vm1103 = vweird.f32 %v1097
        %vm1104 = vmor %vm1102, %vm1103
        %v1105 = vsel %vm1104, %v1097, %v1101
        %v1106 = vand.u32 2147483647, %v1006
        %vm1107 = vcmp.eq.f32.partialorder %v1106, 8.507059e+37
        %v1108 = vand.u32 %v1006, 2147483648
        %v1109 = vor.u32 1.1754944e-38, %v1108
        %v1110 = vsel %vm1107, %v1109, %v1105
        %v1111 = vrcp.pop %v1008
        %v1112 = vmul.f32 %v1008, %v1111
        %v1113 = vsub.f32 1.0, %v1112
        %v1114 = vmul.f32 %v1111, %v1113
        %v1115 = vadd.f32 %v1111, %v1114
        %vm1116 = vweird.f32 %v1008
        %vm1117 = vweird.f32 %v1111
        %vm1118 = vmor %vm1116, %vm1117
        %v1119 = vsel %vm1118, %v1111, %v1115
        %v1120 = vand.u32 2147483647, %v1008
        %vm1121 = vcmp.eq.f32.partialorder %v1120, 8.507059e+37
        %v1122 = vand.u32 %v1008, 2147483648
        %v1123 = vor.u32 1.1754944e-38, %v1122
        %v1124 = vsel %vm1121, %v1123, %v1119
        %v1125 = vrcp.pop %v1010
        %v1126 = vmul.f32 %v1010, %v1125
        %v1127 = vsub.f32 1.0, %v1126
        %v1128 = vmul.f32 %v1125, %v1127
        %v1129 = vadd.f32 %v1125, %v1128
        %vm1130 = vweird.f32 %v1010
        %vm1131 = vweird.f32 %v1125
        %vm1132 = vmor %vm1130, %vm1131
        %v1133 = vsel %vm1132, %v1125, %v1129
        %v1134 = vand.u32 2147483647, %v1010
        %vm1135 = vcmp.eq.f32.partialorder %v1134, 8.507059e+37
        %v1136 = vand.u32 %v1010, 2147483648
        %v1137 = vor.u32 1.1754944e-38, %v1136
        %v1138 = vsel %vm1135, %v1137, %v1133
        %v1139 = vrcp.pop %v1012
        %v1140 = vmul.f32 %v1012, %v1139
        %v1141 = vsub.f32 1.0, %v1140
        %v1142 = vmul.f32 %v1139, %v1141
        %v1143 = vadd.f32 %v1139, %v1142
        %vm1144 = vweird.f32 %v1012
        %vm1145 = vweird.f32 %v1139
        %vm1146 = vmor %vm1144, %vm1145
        %v1147 = vsel %vm1146, %v1139, %v1143
        %v1148 = vand.u32 2147483647, %v1012
        %vm1149 = vcmp.eq.f32.partialorder %v1148, 8.507059e+37
        %v1150 = vand.u32 %v1012, 2147483648
        %v1151 = vor.u32 1.1754944e-38, %v1150
        %v1152 = vsel %vm1149, %v1151, %v1147
        %v1153 = vrcp.pop %v1014
        %v1154 = vmul.f32 %v1014, %v1153
        %v1155 = vsub.f32 1.0, %v1154
        %v1156 = vmul.f32 %v1153, %v1155
        %v1157 = vadd.f32 %v1153, %v1156
        %vm1158 = vweird.f32 %v1014
        %vm1159 = vweird.f32 %v1153
        %vm1160 = vmor %vm1158, %vm1159
        %v1161 = vsel %vm1160, %v1153, %v1157
        %v1162 = vand.u32 2147483647, %v1014
        %vm1163 = vcmp.eq.f32.partialorder %v1162, 8.507059e+37
        %v1164 = vand.u32 %v1014, 2147483648
        %v1165 = vor.u32 1.1754944e-38, %v1164
        %v1166 = vsel %vm1163, %v1165, %v1161
        %v1167 = vrcp.pop %v1016
        %v1168 = vmul.f32 %v1016, %v1167
        %v1169 = vsub.f32 1.0, %v1168
        %v1170 = vmul.f32 %v1167, %v1169
        %v1171 = vadd.f32 %v1167, %v1170
        %vm1172 = vweird.f32 %v1016
        %vm1173 = vweird.f32 %v1167
        %vm1174 = vmor %vm1172, %vm1173
        %v1175 = vsel %vm1174, %v1167, %v1171
        %v1176 = vand.u32 2147483647, %v1016
        %vm1177 = vcmp.eq.f32.partialorder %v1176, 8.507059e+37
        %v1178 = vand.u32 %v1016, 2147483648
        %v1179 = vor.u32 1.1754944e-38, %v1178
        %v1180 = vsel %vm1177, %v1179, %v1175
        %v1181 = vrcp.pop %v1018
        %v1182 = vmul.f32 %v1018, %v1181
        %v1183 = vsub.f32 1.0, %v1182
        %v1184 = vmul.f32 %v1181, %v1183
        %v1185 = vadd.f32 %v1181, %v1184
        %vm1186 = vweird.f32 %v1018
        %vm1187 = vweird.f32 %v1181
        %vm1188 = vmor %vm1186, %vm1187
        %v1189 = vsel %vm1188, %v1181, %v1185
        %v1190 = vand.u32 2147483647, %v1018
        %vm1191 = vcmp.eq.f32.partialorder %v1190, 8.507059e+37
        %v1192 = vand.u32 %v1018, 2147483648
        %v1193 = vor.u32 1.1754944e-38, %v1192
        %v1194 = vsel %vm1191, %v1193, %v1189
        %v1195 = vrcp.pop %v1020
        %v1196 = vmul.f32 %v1020, %v1195
        %v1197 = vsub.f32 1.0, %v1196
        %v1198 = vmul.f32 %v1195, %v1197
        %v1199 = vadd.f32 %v1195, %v1198
        %vm1200 = vweird.f32 %v1020
        %vm1201 = vweird.f32 %v1195
        %vm1202 = vmor %vm1200, %vm1201
        %v1203 = vsel %vm1202, %v1195, %v1199
        %v1204 = vand.u32 2147483647, %v1020
        %vm1205 = vcmp.eq.f32.partialorder %v1204, 8.507059e+37
        %v1206 = vand.u32 %v1020, 2147483648
        %v1207 = vor.u32 1.1754944e-38, %v1206
        %v1208 = vsel %vm1205, %v1207, %v1203
        %v1209 = vrcp.pop %v1022
        %v1210 = vmul.f32 %v1022, %v1209
        %v1211 = vsub.f32 1.0, %v1210
        %v1212 = vmul.f32 %v1209, %v1211
        %v1213 = vadd.f32 %v1209, %v1212
        %vm1214 = vweird.f32 %v1022
        %vm1215 = vweird.f32 %v1209
        %vm1216 = vmor %vm1214, %vm1215
        %v1217 = vsel %vm1216, %v1209, %v1213
        %v1218 = vand.u32 2147483647, %v1022
        %vm1219 = vcmp.eq.f32.partialorder %v1218, 8.507059e+37
        %v1220 = vand.u32 %v1022, 2147483648
        %v1221 = vor.u32 1.1754944e-38, %v1220
        %v1222 = vsel %vm1219, %v1221, %v1217
        %v1223 = vrcp.pop %v1024
        %v1224 = vmul.f32 %v1024, %v1223
        %v1225 = vsub.f32 1.0, %v1224
        %v1226 = vmul.f32 %v1223, %v1225
        %v1227 = vadd.f32 %v1223, %v1226
        %vm1228 = vweird.f32 %v1024
        %vm1229 = vweird.f32 %v1223
        %vm1230 = vmor %vm1228, %vm1229
        %v1231 = vsel %vm1230, %v1223, %v1227
        %v1232 = vand.u32 2147483647, %v1024
        %vm1233 = vcmp.eq.f32.partialorder %v1232, 8.507059e+37
        %v1234 = vand.u32 %v1024, 2147483648
        %v1235 = vor.u32 1.1754944e-38, %v1234
        %v1236 = vsel %vm1233, %v1235, %v1231
        %v1237 = vrcp.pop %v1026
        %v1238 = vmul.f32 %v1026, %v1237
        %v1239 = vsub.f32 1.0, %v1238
        %v1240 = vmul.f32 %v1237, %v1239
        %v1241 = vadd.f32 %v1237, %v1240
        %vm1242 = vweird.f32 %v1026
        %vm1243 = vweird.f32 %v1237
        %vm1244 = vmor %vm1242, %vm1243
        %v1245 = vsel %vm1244, %v1237, %v1241
        %v1246 = vand.u32 2147483647, %v1026
        %vm1247 = vcmp.eq.f32.partialorder %v1246, 8.507059e+37
        %v1248 = vand.u32 %v1026, 2147483648
        %v1249 = vor.u32 1.1754944e-38, %v1248
        %v1250 = vsel %vm1247, %v1249, %v1245
        %v1251 = vmul.f32 %v964, %v1040
        %v1252 = vmul.f32 %v966, %v1054
        %v1253 = vmul.f32 %v968, %v1068
        %v1254 = vmul.f32 %v970, %v1082
        %v1255 = vmul.f32 %v972, %v1096
        %v1256 = vmul.f32 %v974, %v1110
        %v1257 = vmul.f32 %v976, %v1124
        %v1258 = vmul.f32 %v978, %v1138
        %v1259 = vmul.f32 %v980, %v1152
        %v1260 = vmul.f32 %v982, %v1166
        %v1261 = vmul.f32 %v984, %v1180
        %v1262 = vmul.f32 %v986, %v1194
        %v1263 = vmul.f32 %v988, %v1208
        %v1264 = vmul.f32 %v990, %v1222
        %v1265 = vmul.f32 %v992, %v1236
        %v1266 = vmul.f32 %v994, %v1250
        %v1267 = vpack.c.bf16 %v1251, %v1251
        %v1268 = vpack.c.bf16 %v1252, %v1252
        %v1269 = vpack.c.bf16 %v1253, %v1253
        %v1270 = vpack.c.bf16 %v1254, %v1254
        %v1271 = vpack.c.bf16 %v1255, %v1255
        %v1272 = vpack.c.bf16 %v1256, %v1256
        %v1273 = vpack.c.bf16 %v1257, %v1257
        %v1274 = vpack.c.bf16 %v1258, %v1258
        %v1275 = vpack.c.bf16 %v1259, %v1259
        %v1276 = vpack.c.bf16 %v1260, %v1260
        %v1277 = vpack.c.bf16 %v1261, %v1261
        %v1278 = vpack.c.bf16 %v1262, %v1262
        %v1279 = vpack.c.bf16 %v1263, %v1263
        %v1280 = vpack.c.bf16 %v1264, %v1264
        %v1281 = vpack.c.bf16 %v1265, %v1265
        %v1282 = vpack.c.bf16 %v1266, %v1266
        %1283 = vst [vmem:[%s281] sm:$0xf] %v1267
        %1284 = vst [vmem:[%s281 + $0x4] sm:$0xf] %v1268
        %1285 = vst [vmem:[%s281 + $0x8] sm:$0xf] %v1269
        %1286 = vst [vmem:[%s281 + $0xc] sm:$0xf] %v1270
        %1287 = vst [vmem:[%s281 + $0x10] sm:$0xf] %v1271
        %1288 = vst [vmem:[%s281 + $0x14] sm:$0xf] %v1272
        %1289 = vst [vmem:[%s281 + $0x18] sm:$0xf] %v1273
        %1290 = vst [vmem:[%s281 + $0x1c] sm:$0xf] %v1274
        %1291 = vst [vmem:[%s281 + $0x20] sm:$0xf] %v1275
        %1292 = vst [vmem:[%s281 + $0x24] sm:$0xf] %v1276
        %1293 = vst [vmem:[%s281 + $0x28] sm:$0xf] %v1277
        %1294 = vst [vmem:[%s281 + $0x2c] sm:$0xf] %v1278
        %1295 = vst [vmem:[%s281 + $0x30] sm:$0xf] %v1279
        %1296 = vst [vmem:[%s281 + $0x34] sm:$0xf] %v1280
        %1297 = vst [vmem:[%s281 + $0x38] sm:$0xf] %v1281
        %1298 = vst [vmem:[%s281 + $0x3c] sm:$0xf] %v1282
        %v1315 = vunpack.c.l.b16 %v1267
        %v1316 = vunpack.c.l.b16 %v1268
        %v1317 = vunpack.c.l.b16 %v1269
        %v1318 = vunpack.c.l.b16 %v1270
        %v1319 = vunpack.c.l.b16 %v1271
        %v1320 = vunpack.c.l.b16 %v1272
        %v1321 = vunpack.c.l.b16 %v1273
        %v1322 = vunpack.c.l.b16 %v1274
        %v1323 = vunpack.c.l.b16 %v1275
        %v1324 = vunpack.c.l.b16 %v1276
        %v1325 = vunpack.c.l.b16 %v1277
        %v1326 = vunpack.c.l.b16 %v1278
        %v1327 = vunpack.c.l.b16 %v1279
        %v1328 = vunpack.c.l.b16 %v1280
        %v1329 = vunpack.c.l.b16 %v1281
        %v1330 = vunpack.c.l.b16 %v1282
        %v1331 = vpack.c.b16 %v1316, %v1315
        %v1332 = vpack.c.b16 %v1318, %v1317
        %v1333 = vpack.c.b16 %v1320, %v1319
        %v1334 = vpack.c.b16 %v1322, %v1321
        %v1335 = vpack.c.b16 %v1324, %v1323
        %v1336 = vpack.c.b16 %v1326, %v1325
        %v1337 = vpack.c.b16 %v1328, %v1327
        %v1338 = vpack.c.b16 %v1330, %v1329
        %v1363 = vunpack.c.l.b16 %v717
        %v1364 = vunpack.c.l.b16 %v718
        %v1365 = vunpack.c.l.b16 %v719
        %v1366 = vunpack.c.l.b16 %v720
        %v1367 = vunpack.c.l.b16 %v721
        %v1368 = vunpack.c.l.b16 %v722
        %v1369 = vunpack.c.l.b16 %v723
        %v1370 = vunpack.c.l.b16 %v724
        %v1371 = vunpack.c.l.b16 %v725
        %v1372 = vunpack.c.l.b16 %v726
        %v1373 = vunpack.c.l.b16 %v727
        %v1374 = vunpack.c.l.b16 %v728
        %v1375 = vunpack.c.l.b16 %v729
        %v1376 = vunpack.c.l.b16 %v730
        %v1377 = vunpack.c.l.b16 %v731
        %v1378 = vunpack.c.l.b16 %v732
        %v1379 = vpack.c.b16 %v1364, %v1363
        %v1380 = vpack.c.b16 %v1366, %v1365
        %v1381 = vpack.c.b16 %v1368, %v1367
        %v1382 = vpack.c.b16 %v1370, %v1369
        %v1383 = vpack.c.b16 %v1372, %v1371
        %v1384 = vpack.c.b16 %v1374, %v1373
        %v1385 = vpack.c.b16 %v1376, %v1375
        %v1386 = vpack.c.b16 %v1378, %v1377
        %1395 = vmatpush.bf16.msra.mxu0 %v1386
        %1396 = vmatpush.bf16.msra.mxu0 %v1385
        %1397 = vmatpush.bf16.msra.mxu0 %v1384
        %1398 = vmatpush.bf16.msra.mxu0 %v1383
        %1399 = vmatpush.bf16.msra.mxu0 %v1382
        %1400 = vmatpush.bf16.msra.mxu0 %v1381
        %1401 = vmatpush.bf16.msra.mxu0 %v1380
        %1402 = vmatpush.bf16.msra.mxu0 %v1379
        %1403 = vmatmul.bf16.gmra.mxu0 %v1331
        %v1404 = vpop.f32.mrf.mxu0
        %v1405 = vadd.f32 0.0, %v1404
        %v1406 = vpop.f32.mrf.mxu0
        %v1407 = vadd.f32 0.0, %v1406
        %1408 = vmatmul.bf16.gmra.mxu0 %v1332
        %v1409 = vpop.f32.mrf.mxu0
        %v1410 = vadd.f32 0.0, %v1409
        %v1411 = vpop.f32.mrf.mxu0
        %v1412 = vadd.f32 0.0, %v1411
        %1413 = vmatmul.bf16.gmra.mxu0 %v1333
        %v1414 = vpop.f32.mrf.mxu0
        %v1415 = vadd.f32 0.0, %v1414
        %v1416 = vpop.f32.mrf.mxu0
        %v1417 = vadd.f32 0.0, %v1416
        %1418 = vmatmul.bf16.gmra.mxu0 %v1334
        %v1419 = vpop.f32.mrf.mxu0
        %v1420 = vadd.f32 0.0, %v1419
        %v1421 = vpop.f32.mrf.mxu0
        %v1422 = vadd.f32 0.0, %v1421
        %1423 = vmatmul.bf16.gmra.mxu0 %v1335
        %v1424 = vpop.f32.mrf.mxu0
        %v1425 = vadd.f32 0.0, %v1424
        %v1426 = vpop.f32.mrf.mxu0
        %v1427 = vadd.f32 0.0, %v1426
        %1428 = vmatmul.bf16.gmra.mxu0 %v1336
        %v1429 = vpop.f32.mrf.mxu0
        %v1430 = vadd.f32 0.0, %v1429
        %v1431 = vpop.f32.mrf.mxu0
        %v1432 = vadd.f32 0.0, %v1431
        %1433 = vmatmul.bf16.gmra.mxu0 %v1337
        %v1434 = vpop.f32.mrf.mxu0
        %v1435 = vadd.f32 0.0, %v1434
        %v1436 = vpop.f32.mrf.mxu0
        %v1437 = vadd.f32 0.0, %v1436
        %1438 = vmatmul.bf16.gmra.mxu0 %v1338
        %v1439 = vpop.f32.mrf.mxu0
        %v1440 = vadd.f32 0.0, %v1439
        %v1441 = vpop.f32.mrf.mxu0
        %v1442 = vadd.f32 0.0, %v1441
        %1443 = vdwg.mxu0
        %1444 = vrot.lane.b32.xlu0 %v769, 120
        %v1445 = vpop.permute.xlu0 %1444
        %1446 = vrot.lane.b32.xlu0 %v770, 120
        %v1447 = vpop.permute.xlu0 %1446
        %1448 = vrot.lane.b32.xlu0 %v771, 120
        %v1449 = vpop.permute.xlu0 %1448
        %1450 = vrot.lane.b32.xlu0 %v772, 120
        %v1451 = vpop.permute.xlu0 %1450
        %1452 = vrot.lane.b32.xlu0 %v773, 120
        %v1453 = vpop.permute.xlu0 %1452
        %1454 = vrot.lane.b32.xlu0 %v774, 120
        %v1455 = vpop.permute.xlu0 %1454
        %1456 = vrot.lane.b32.xlu0 %v775, 120
        %v1457 = vpop.permute.xlu0 %1456
        %1458 = vrot.lane.b32.xlu0 %v776, 120
        %v1459 = vpop.permute.xlu0 %1458
        %1460 = vrot.lane.b32.xlu0 %v809, 120
        %v1461 = vpop.permute.xlu0 %1460
        %1462 = vrot.lane.b32.xlu0 %v810, 120
        %v1463 = vpop.permute.xlu0 %1462
        %1464 = vrot.lane.b32.xlu0 %v811, 120
        %v1465 = vpop.permute.xlu0 %1464
        %1466 = vrot.lane.b32.xlu0 %v812, 120
        %v1467 = vpop.permute.xlu0 %1466
        %1468 = vrot.lane.b32.xlu0 %v813, 120
        %v1469 = vpop.permute.xlu0 %1468
        %1470 = vrot.lane.b32.xlu0 %v814, 120
        %v1471 = vpop.permute.xlu0 %1470
        %1472 = vrot.lane.b32.xlu0 %v815, 120
        %v1473 = vpop.permute.xlu0 %1472
        %1474 = vrot.lane.b32.xlu0 %v816, 120
        %v1475 = vpop.permute.xlu0 %1474
        %v1477 = vsel %vm817, %v1445, 0
        %v1480 = vsel %vm817, %v1447, 0
        %v1483 = vsel %vm817, %v1449, 0
        %v1486 = vsel %vm817, %v1451, 0
        %v1489 = vsel %vm817, %v1453, 0
        %v1492 = vsel %vm817, %v1455, 0
        %v1495 = vsel %vm817, %v1457, 0
        %v1498 = vsel %vm817, %v1459, 0
        %v1501 = vsel %vm817, %v1461, 0
        %v1504 = vsel %vm817, %v1463, 0
        %v1507 = vsel %vm817, %v1465, 0
        %v1510 = vsel %vm817, %v1467, 0
        %v1513 = vsel %vm817, %v1469, 0
        %v1516 = vsel %vm817, %v1471, 0
        %v1519 = vsel %vm817, %v1473, 0
        %v1522 = vsel %vm817, %v1475, 0
        %1524 = vmatpush.bf16.xpose.msra.mxu0 %v1522
        %1525 = vmatpush.bf16.xpose.msra.mxu0 %v1519
        %1526 = vmatpush.bf16.xpose.msra.mxu0 %v1516
        %1527 = vmatpush.bf16.xpose.msra.mxu0 %v1513
        %1528 = vmatpush.bf16.xpose.msra.mxu0 %v1510
        %1529 = vmatpush.bf16.xpose.msra.mxu0 %v1507
        %1530 = vmatpush.bf16.xpose.msra.mxu0 %v1504
        %1531 = vmatpush.bf16.xpose.msra.mxu0 %v1501
        %1532 = vmatmul.bf16.gmra.mxu0 %v1477
        %v1533 = vpop.f32.mrf.mxu0
        %v1534 = vadd.f32 %v736, %v1533
        %v1535 = vpop.f32.mrf.mxu0
        %v1536 = vadd.f32 %v736, %v1535
        %1537 = vmatmul.bf16.gmra.mxu0 %v1480
        %v1538 = vpop.f32.mrf.mxu0
        %v1539 = vadd.f32 %v736, %v1538
        %v1540 = vpop.f32.mrf.mxu0
        %v1541 = vadd.f32 %v736, %v1540
        %1542 = vmatmul.bf16.gmra.mxu0 %v1483
        %v1543 = vpop.f32.mrf.mxu0
        %v1544 = vadd.f32 %v736, %v1543
        %v1545 = vpop.f32.mrf.mxu0
        %v1546 = vadd.f32 %v736, %v1545
        %1547 = vmatmul.bf16.gmra.mxu0 %v1486
        %v1548 = vpop.f32.mrf.mxu0
        %v1549 = vadd.f32 %v736, %v1548
        %v1550 = vpop.f32.mrf.mxu0
        %v1551 = vadd.f32 %v736, %v1550
        %1552 = vmatmul.bf16.gmra.mxu0 %v1489
        %v1553 = vpop.f32.mrf.mxu0
        %v1554 = vadd.f32 %v736, %v1553
        %v1555 = vpop.f32.mrf.mxu0
        %v1556 = vadd.f32 %v736, %v1555
        %1557 = vmatmul.bf16.gmra.mxu0 %v1492
        %v1558 = vpop.f32.mrf.mxu0
        %v1559 = vadd.f32 %v736, %v1558
        %v1560 = vpop.f32.mrf.mxu0
        %v1561 = vadd.f32 %v736, %v1560
        %1562 = vmatmul.bf16.gmra.mxu0 %v1495
        %v1563 = vpop.f32.mrf.mxu0
        %v1564 = vadd.f32 %v736, %v1563
        %v1565 = vpop.f32.mrf.mxu0
        %v1566 = vadd.f32 %v736, %v1565
        %1567 = vmatmul.bf16.gmra.mxu0 %v1498
        %v1568 = vpop.f32.mrf.mxu0
        %v1569 = vadd.f32 %v736, %v1568
        %v1570 = vpop.f32.mrf.mxu0
        %v1571 = vadd.f32 %v736, %v1570
        %1572 = vdwg.mxu0
        %1573 = vmax.xlane.f32.xlu0 %v1534
        %v1574 = vpop.xlane.xlu0 %1573
        %1575 = vmax.xlane.f32.xlu0 %v1536
        %v1576 = vpop.xlane.xlu0 %1575
        %1577 = vmax.xlane.f32.xlu0 %v1539
        %v1578 = vpop.xlane.xlu0 %1577
        %1579 = vmax.xlane.f32.xlu0 %v1541
        %v1580 = vpop.xlane.xlu0 %1579
        %1581 = vmax.xlane.f32.xlu0 %v1544
        %v1582 = vpop.xlane.xlu0 %1581
        %1583 = vmax.xlane.f32.xlu0 %v1546
        %v1584 = vpop.xlane.xlu0 %1583
        %1585 = vmax.xlane.f32.xlu0 %v1549
        %v1586 = vpop.xlane.xlu0 %1585
        %1587 = vmax.xlane.f32.xlu0 %v1551
        %v1588 = vpop.xlane.xlu0 %1587
        %1589 = vmax.xlane.f32.xlu0 %v1554
        %v1590 = vpop.xlane.xlu0 %1589
        %1591 = vmax.xlane.f32.xlu0 %v1556
        %v1592 = vpop.xlane.xlu0 %1591
        %1593 = vmax.xlane.f32.xlu0 %v1559
        %v1594 = vpop.xlane.xlu0 %1593
        %1595 = vmax.xlane.f32.xlu0 %v1561
        %v1596 = vpop.xlane.xlu0 %1595
        %1597 = vmax.xlane.f32.xlu0 %v1564
        %v1598 = vpop.xlane.xlu0 %1597
        %1599 = vmax.xlane.f32.xlu0 %v1566
        %v1600 = vpop.xlane.xlu0 %1599
        %1601 = vmax.xlane.f32.xlu0 %v1569
        %v1602 = vpop.xlane.xlu0 %1601
        %1603 = vmax.xlane.f32.xlu0 %v1571
        %v1604 = vpop.xlane.xlu0 %1603
        %v1605 = vsub.f32 %v1534, %v1574
        %v1606 = vsub.f32 %v1536, %v1576
        %v1607 = vsub.f32 %v1539, %v1578
        %v1608 = vsub.f32 %v1541, %v1580
        %v1609 = vsub.f32 %v1544, %v1582
        %v1610 = vsub.f32 %v1546, %v1584
        %v1611 = vsub.f32 %v1549, %v1586
        %v1612 = vsub.f32 %v1551, %v1588
        %v1613 = vsub.f32 %v1554, %v1590
        %v1614 = vsub.f32 %v1556, %v1592
        %v1615 = vsub.f32 %v1559, %v1594
        %v1616 = vsub.f32 %v1561, %v1596
        %v1617 = vsub.f32 %v1564, %v1598
        %v1618 = vsub.f32 %v1566, %v1600
        %v1619 = vsub.f32 %v1569, %v1602
        %v1620 = vsub.f32 %v1571, %v1604
        %v1621 = vmul.f32 %v1605, 1.442695
        %v1622 = vpow.pop %v1621
        %v1623 = vmul.f32 %v1606, 1.442695
        %v1624 = vpow.pop %v1623
        %v1625 = vmul.f32 %v1607, 1.442695
        %v1626 = vpow.pop %v1625
        %v1627 = vmul.f32 %v1608, 1.442695
        %v1628 = vpow.pop %v1627
        %v1629 = vmul.f32 %v1609, 1.442695
        %v1630 = vpow.pop %v1629
        %v1631 = vmul.f32 %v1610, 1.442695
        %v1632 = vpow.pop %v1631
        %v1633 = vmul.f32 %v1611, 1.442695
        %v1634 = vpow.pop %v1633
        %v1635 = vmul.f32 %v1612, 1.442695
        %v1636 = vpow.pop %v1635
        %v1637 = vmul.f32 %v1613, 1.442695
        %v1638 = vpow.pop %v1637
        %v1639 = vmul.f32 %v1614, 1.442695
        %v1640 = vpow.pop %v1639
        %v1641 = vmul.f32 %v1615, 1.442695
        %v1642 = vpow.pop %v1641
        %v1643 = vmul.f32 %v1616, 1.442695
        %v1644 = vpow.pop %v1643
        %v1645 = vmul.f32 %v1617, 1.442695
        %v1646 = vpow.pop %v1645
        %v1647 = vmul.f32 %v1618, 1.442695
        %v1648 = vpow.pop %v1647
        %v1649 = vmul.f32 %v1619, 1.442695
        %v1650 = vpow.pop %v1649
        %v1651 = vmul.f32 %v1620, 1.442695
        %v1652 = vpow.pop %v1651
        %1653 = vadd.xlane.f32.xlu0 %v1622
        %v1654 = vpop.xlane.xlu0 %1653
        %1655 = vadd.xlane.f32.xlu0 %v1624
        %v1656 = vpop.xlane.xlu0 %1655
        %1657 = vadd.xlane.f32.xlu0 %v1626
        %v1658 = vpop.xlane.xlu0 %1657
        %1659 = vadd.xlane.f32.xlu0 %v1628
        %v1660 = vpop.xlane.xlu0 %1659
        %1661 = vadd.xlane.f32.xlu0 %v1630
        %v1662 = vpop.xlane.xlu0 %1661
        %1663 = vadd.xlane.f32.xlu0 %v1632
        %v1664 = vpop.xlane.xlu0 %1663
        %1665 = vadd.xlane.f32.xlu0 %v1634
        %v1666 = vpop.xlane.xlu0 %1665
        %1667 = vadd.xlane.f32.xlu0 %v1636
        %v1668 = vpop.xlane.xlu0 %1667
        %1669 = vadd.xlane.f32.xlu0 %v1638
        %v1670 = vpop.xlane.xlu0 %1669
        %1671 = vadd.xlane.f32.xlu0 %v1640
        %v1672 = vpop.xlane.xlu0 %1671
        %1673 = vadd.xlane.f32.xlu0 %v1642
        %v1674 = vpop.xlane.xlu0 %1673
        %1675 = vadd.xlane.f32.xlu0 %v1644
        %v1676 = vpop.xlane.xlu0 %1675
        %1677 = vadd.xlane.f32.xlu0 %v1646
        %v1678 = vpop.xlane.xlu0 %1677
        %1679 = vadd.xlane.f32.xlu0 %v1648
        %v1680 = vpop.xlane.xlu0 %1679
        %1681 = vadd.xlane.f32.xlu0 %v1650
        %v1682 = vpop.xlane.xlu0 %1681
        %1683 = vadd.xlane.f32.xlu0 %v1652
        %v1684 = vpop.xlane.xlu0 %1683
        %v1685 = vrcp.pop %v1654
        %v1686 = vmul.f32 %v1654, %v1685
        %v1687 = vsub.f32 1.0, %v1686
        %v1688 = vmul.f32 %v1685, %v1687
        %v1689 = vadd.f32 %v1685, %v1688
        %vm1690 = vweird.f32 %v1654
        %vm1691 = vweird.f32 %v1685
        %vm1692 = vmor %vm1690, %vm1691
        %v1693 = vsel %vm1692, %v1685, %v1689
        %v1694 = vand.u32 2147483647, %v1654
        %vm1695 = vcmp.eq.f32.partialorder %v1694, 8.507059e+37
        %v1696 = vand.u32 %v1654, 2147483648
        %v1697 = vor.u32 1.1754944e-38, %v1696
        %v1698 = vsel %vm1695, %v1697, %v1693
        %v1699 = vrcp.pop %v1656
        %v1700 = vmul.f32 %v1656, %v1699
        %v1701 = vsub.f32 1.0, %v1700
        %v1702 = vmul.f32 %v1699, %v1701
        %v1703 = vadd.f32 %v1699, %v1702
        %vm1704 = vweird.f32 %v1656
        %vm1705 = vweird.f32 %v1699
        %vm1706 = vmor %vm1704, %vm1705
        %v1707 = vsel %vm1706, %v1699, %v1703
        %v1708 = vand.u32 2147483647, %v1656
        %vm1709 = vcmp.eq.f32.partialorder %v1708, 8.507059e+37
        %v1710 = vand.u32 %v1656, 2147483648
        %v1711 = vor.u32 1.1754944e-38, %v1710
        %v1712 = vsel %vm1709, %v1711, %v1707
        %v1713 = vrcp.pop %v1658
        %v1714 = vmul.f32 %v1658, %v1713
        %v1715 = vsub.f32 1.0, %v1714
        %v1716 = vmul.f32 %v1713, %v1715
        %v1717 = vadd.f32 %v1713, %v1716
        %vm1718 = vweird.f32 %v1658
        %vm1719 = vweird.f32 %v1713
        %vm1720 = vmor %vm1718, %vm1719
        %v1721 = vsel %vm1720, %v1713, %v1717
        %v1722 = vand.u32 2147483647, %v1658
        %vm1723 = vcmp.eq.f32.partialorder %v1722, 8.507059e+37
        %v1724 = vand.u32 %v1658, 2147483648
        %v1725 = vor.u32 1.1754944e-38, %v1724
        %v1726 = vsel %vm1723, %v1725, %v1721
        %v1727 = vrcp.pop %v1660
        %v1728 = vmul.f32 %v1660, %v1727
        %v1729 = vsub.f32 1.0, %v1728
        %v1730 = vmul.f32 %v1727, %v1729
        %v1731 = vadd.f32 %v1727, %v1730
        %vm1732 = vweird.f32 %v1660
        %vm1733 = vweird.f32 %v1727
        %vm1734 = vmor %vm1732, %vm1733
        %v1735 = vsel %vm1734, %v1727, %v1731
        %v1736 = vand.u32 2147483647, %v1660
        %vm1737 = vcmp.eq.f32.partialorder %v1736, 8.507059e+37
        %v1738 = vand.u32 %v1660, 2147483648
        %v1739 = vor.u32 1.1754944e-38, %v1738
        %v1740 = vsel %vm1737, %v1739, %v1735
        %v1741 = vrcp.pop %v1662
        %v1742 = vmul.f32 %v1662, %v1741
        %v1743 = vsub.f32 1.0, %v1742
        %v1744 = vmul.f32 %v1741, %v1743
        %v1745 = vadd.f32 %v1741, %v1744
        %vm1746 = vweird.f32 %v1662
        %vm1747 = vweird.f32 %v1741
        %vm1748 = vmor %vm1746, %vm1747
        %v1749 = vsel %vm1748, %v1741, %v1745
        %v1750 = vand.u32 2147483647, %v1662
        %vm1751 = vcmp.eq.f32.partialorder %v1750, 8.507059e+37
        %v1752 = vand.u32 %v1662, 2147483648
        %v1753 = vor.u32 1.1754944e-38, %v1752
        %v1754 = vsel %vm1751, %v1753, %v1749
        %v1755 = vrcp.pop %v1664
        %v1756 = vmul.f32 %v1664, %v1755
        %v1757 = vsub.f32 1.0, %v1756
        %v1758 = vmul.f32 %v1755, %v1757
        %v1759 = vadd.f32 %v1755, %v1758
        %vm1760 = vweird.f32 %v1664
        %vm1761 = vweird.f32 %v1755
        %vm1762 = vmor %vm1760, %vm1761
        %v1763 = vsel %vm1762, %v1755, %v1759
        %v1764 = vand.u32 2147483647, %v1664
        %vm1765 = vcmp.eq.f32.partialorder %v1764, 8.507059e+37
        %v1766 = vand.u32 %v1664, 2147483648
        %v1767 = vor.u32 1.1754944e-38, %v1766
        %v1768 = vsel %vm1765, %v1767, %v1763
        %v1769 = vrcp.pop %v1666
        %v1770 = vmul.f32 %v1666, %v1769
        %v1771 = vsub.f32 1.0, %v1770
        %v1772 = vmul.f32 %v1769, %v1771
        %v1773 = vadd.f32 %v1769, %v1772
        %vm1774 = vweird.f32 %v1666
        %vm1775 = vweird.f32 %v1769
        %vm1776 = vmor %vm1774, %vm1775
        %v1777 = vsel %vm1776, %v1769, %v1773
        %v1778 = vand.u32 2147483647, %v1666
        %vm1779 = vcmp.eq.f32.partialorder %v1778, 8.507059e+37
        %v1780 = vand.u32 %v1666, 2147483648
        %v1781 = vor.u32 1.1754944e-38, %v1780
        %v1782 = vsel %vm1779, %v1781, %v1777
        %v1783 = vrcp.pop %v1668
        %v1784 = vmul.f32 %v1668, %v1783
        %v1785 = vsub.f32 1.0, %v1784
        %v1786 = vmul.f32 %v1783, %v1785
        %v1787 = vadd.f32 %v1783, %v1786
        %vm1788 = vweird.f32 %v1668
        %vm1789 = vweird.f32 %v1783
        %vm1790 = vmor %vm1788, %vm1789
        %v1791 = vsel %vm1790, %v1783, %v1787
        %v1792 = vand.u32 2147483647, %v1668
        %vm1793 = vcmp.eq.f32.partialorder %v1792, 8.507059e+37
        %v1794 = vand.u32 %v1668, 2147483648
        %v1795 = vor.u32 1.1754944e-38, %v1794
        %v1796 = vsel %vm1793, %v1795, %v1791
        %v1797 = vrcp.pop %v1670
        %v1798 = vmul.f32 %v1670, %v1797
        %v1799 = vsub.f32 1.0, %v1798
        %v1800 = vmul.f32 %v1797, %v1799
        %v1801 = vadd.f32 %v1797, %v1800
        %vm1802 = vweird.f32 %v1670
        %vm1803 = vweird.f32 %v1797
        %vm1804 = vmor %vm1802, %vm1803
        %v1805 = vsel %vm1804, %v1797, %v1801
        %v1806 = vand.u32 2147483647, %v1670
        %vm1807 = vcmp.eq.f32.partialorder %v1806, 8.507059e+37
        %v1808 = vand.u32 %v1670, 2147483648
        %v1809 = vor.u32 1.1754944e-38, %v1808
        %v1810 = vsel %vm1807, %v1809, %v1805
        %v1811 = vrcp.pop %v1672
        %v1812 = vmul.f32 %v1672, %v1811
        %v1813 = vsub.f32 1.0, %v1812
        %v1814 = vmul.f32 %v1811, %v1813
        %v1815 = vadd.f32 %v1811, %v1814
        %vm1816 = vweird.f32 %v1672
        %vm1817 = vweird.f32 %v1811
        %vm1818 = vmor %vm1816, %vm1817
        %v1819 = vsel %vm1818, %v1811, %v1815
        %v1820 = vand.u32 2147483647, %v1672
        %vm1821 = vcmp.eq.f32.partialorder %v1820, 8.507059e+37
        %v1822 = vand.u32 %v1672, 2147483648
        %v1823 = vor.u32 1.1754944e-38, %v1822
        %v1824 = vsel %vm1821, %v1823, %v1819
        %v1825 = vrcp.pop %v1674
        %v1826 = vmul.f32 %v1674, %v1825
        %v1827 = vsub.f32 1.0, %v1826
        %v1828 = vmul.f32 %v1825, %v1827
        %v1829 = vadd.f32 %v1825, %v1828
        %vm1830 = vweird.f32 %v1674
        %vm1831 = vweird.f32 %v1825
        %vm1832 = vmor %vm1830, %vm1831
        %v1833 = vsel %vm1832, %v1825, %v1829
        %v1834 = vand.u32 2147483647, %v1674
        %vm1835 = vcmp.eq.f32.partialorder %v1834, 8.507059e+37
        %v1836 = vand.u32 %v1674, 2147483648
        %v1837 = vor.u32 1.1754944e-38, %v1836
        %v1838 = vsel %vm1835, %v1837, %v1833
        %v1839 = vrcp.pop %v1676
        %v1840 = vmul.f32 %v1676, %v1839
        %v1841 = vsub.f32 1.0, %v1840
        %v1842 = vmul.f32 %v1839, %v1841
        %v1843 = vadd.f32 %v1839, %v1842
        %vm1844 = vweird.f32 %v1676
        %vm1845 = vweird.f32 %v1839
        %vm1846 = vmor %vm1844, %vm1845
        %v1847 = vsel %vm1846, %v1839, %v1843
        %v1848 = vand.u32 2147483647, %v1676
        %vm1849 = vcmp.eq.f32.partialorder %v1848, 8.507059e+37
        %v1850 = vand.u32 %v1676, 2147483648
        %v1851 = vor.u32 1.1754944e-38, %v1850
        %v1852 = vsel %vm1849, %v1851, %v1847
        %v1853 = vrcp.pop %v1678
        %v1854 = vmul.f32 %v1678, %v1853
        %v1855 = vsub.f32 1.0, %v1854
        %v1856 = vmul.f32 %v1853, %v1855
        %v1857 = vadd.f32 %v1853, %v1856
        %vm1858 = vweird.f32 %v1678
        %vm1859 = vweird.f32 %v1853
        %vm1860 = vmor %vm1858, %vm1859
        %v1861 = vsel %vm1860, %v1853, %v1857
        %v1862 = vand.u32 2147483647, %v1678
        %vm1863 = vcmp.eq.f32.partialorder %v1862, 8.507059e+37
        %v1864 = vand.u32 %v1678, 2147483648
        %v1865 = vor.u32 1.1754944e-38, %v1864
        %v1866 = vsel %vm1863, %v1865, %v1861
        %v1867 = vrcp.pop %v1680
        %v1868 = vmul.f32 %v1680, %v1867
        %v1869 = vsub.f32 1.0, %v1868
        %v1870 = vmul.f32 %v1867, %v1869
        %v1871 = vadd.f32 %v1867, %v1870
        %vm1872 = vweird.f32 %v1680
        %vm1873 = vweird.f32 %v1867
        %vm1874 = vmor %vm1872, %vm1873
        %v1875 = vsel %vm1874, %v1867, %v1871
        %v1876 = vand.u32 2147483647, %v1680
        %vm1877 = vcmp.eq.f32.partialorder %v1876, 8.507059e+37
        %v1878 = vand.u32 %v1680, 2147483648
        %v1879 = vor.u32 1.1754944e-38, %v1878
        %v1880 = vsel %vm1877, %v1879, %v1875
        %v1881 = vrcp.pop %v1682
        %v1882 = vmul.f32 %v1682, %v1881
        %v1883 = vsub.f32 1.0, %v1882
        %v1884 = vmul.f32 %v1881, %v1883
        %v1885 = vadd.f32 %v1881, %v1884
        %vm1886 = vweird.f32 %v1682
        %vm1887 = vweird.f32 %v1881
        %vm1888 = vmor %vm1886, %vm1887
        %v1889 = vsel %vm1888, %v1881, %v1885
        %v1890 = vand.u32 2147483647, %v1682
        %vm1891 = vcmp.eq.f32.partialorder %v1890, 8.507059e+37
        %v1892 = vand.u32 %v1682, 2147483648
        %v1893 = vor.u32 1.1754944e-38, %v1892
        %v1894 = vsel %vm1891, %v1893, %v1889
        %v1895 = vrcp.pop %v1684
        %v1896 = vmul.f32 %v1684, %v1895
        %v1897 = vsub.f32 1.0, %v1896
        %v1898 = vmul.f32 %v1895, %v1897
        %v1899 = vadd.f32 %v1895, %v1898
        %vm1900 = vweird.f32 %v1684
        %vm1901 = vweird.f32 %v1895
        %vm1902 = vmor %vm1900, %vm1901
        %v1903 = vsel %vm1902, %v1895, %v1899
        %v1904 = vand.u32 2147483647, %v1684
        %vm1905 = vcmp.eq.f32.partialorder %v1904, 8.507059e+37
        %v1906 = vand.u32 %v1684, 2147483648
        %v1907 = vor.u32 1.1754944e-38, %v1906
        %v1908 = vsel %vm1905, %v1907, %v1903
        %v1909 = vmul.f32 %v1622, %v1698
        %v1910 = vmul.f32 %v1624, %v1712
        %v1911 = vmul.f32 %v1626, %v1726
        %v1912 = vmul.f32 %v1628, %v1740
        %v1913 = vmul.f32 %v1630, %v1754
        %v1914 = vmul.f32 %v1632, %v1768
        %v1915 = vmul.f32 %v1634, %v1782
        %v1916 = vmul.f32 %v1636, %v1796
        %v1917 = vmul.f32 %v1638, %v1810
        %v1918 = vmul.f32 %v1640, %v1824
        %v1919 = vmul.f32 %v1642, %v1838
        %v1920 = vmul.f32 %v1644, %v1852
        %v1921 = vmul.f32 %v1646, %v1866
        %v1922 = vmul.f32 %v1648, %v1880
        %v1923 = vmul.f32 %v1650, %v1894
        %v1924 = vmul.f32 %v1652, %v1908
        %v1925 = vpack.c.bf16 %v1909, %v1909
        %v1926 = vpack.c.bf16 %v1910, %v1910
        %v1927 = vpack.c.bf16 %v1911, %v1911
        %v1928 = vpack.c.bf16 %v1912, %v1912
        %v1929 = vpack.c.bf16 %v1913, %v1913
        %v1930 = vpack.c.bf16 %v1914, %v1914
        %v1931 = vpack.c.bf16 %v1915, %v1915
        %v1932 = vpack.c.bf16 %v1916, %v1916
        %v1933 = vpack.c.bf16 %v1917, %v1917
        %v1934 = vpack.c.bf16 %v1918, %v1918
        %v1935 = vpack.c.bf16 %v1919, %v1919
        %v1936 = vpack.c.bf16 %v1920, %v1920
        %v1937 = vpack.c.bf16 %v1921, %v1921
        %v1938 = vpack.c.bf16 %v1922, %v1922
        %v1939 = vpack.c.bf16 %v1923, %v1923
        %v1940 = vpack.c.bf16 %v1924, %v1924
        %s1941 = scalar_lea.vmem %s281, 64 [#allocation5]
        %1942 = vst [vmem:[%s1941] sm:$0xf] %v1925
        %1943 = vst [vmem:[%s1941 + $0x4] sm:$0xf] %v1926
        %1944 = vst [vmem:[%s1941 + $0x8] sm:$0xf] %v1927
        %1945 = vst [vmem:[%s1941 + $0xc] sm:$0xf] %v1928
        %1946 = vst [vmem:[%s1941 + $0x10] sm:$0xf] %v1929
        %1947 = vst [vmem:[%s1941 + $0x14] sm:$0xf] %v1930
        %1948 = vst [vmem:[%s1941 + $0x18] sm:$0xf] %v1931
        %1949 = vst [vmem:[%s1941 + $0x1c] sm:$0xf] %v1932
        %1950 = vst [vmem:[%s1941 + $0x20] sm:$0xf] %v1933
        %1951 = vst [vmem:[%s1941 + $0x24] sm:$0xf] %v1934
        %1952 = vst [vmem:[%s1941 + $0x28] sm:$0xf] %v1935
        %1953 = vst [vmem:[%s1941 + $0x2c] sm:$0xf] %v1936
        %1954 = vst [vmem:[%s1941 + $0x30] sm:$0xf] %v1937
        %1955 = vst [vmem:[%s1941 + $0x34] sm:$0xf] %v1938
        %1956 = vst [vmem:[%s1941 + $0x38] sm:$0xf] %v1939
        %1957 = vst [vmem:[%s1941 + $0x3c] sm:$0xf] %v1940
        %v1974 = vunpack.c.l.b16 %v1925
        %v1975 = vunpack.c.l.b16 %v1926
        %v1976 = vunpack.c.l.b16 %v1927
        %v1977 = vunpack.c.l.b16 %v1928
        %v1978 = vunpack.c.l.b16 %v1929
        %v1979 = vunpack.c.l.b16 %v1930
        %v1980 = vunpack.c.l.b16 %v1931
        %v1981 = vunpack.c.l.b16 %v1932
        %v1982 = vunpack.c.l.b16 %v1933
        %v1983 = vunpack.c.l.b16 %v1934
        %v1984 = vunpack.c.l.b16 %v1935
        %v1985 = vunpack.c.l.b16 %v1936
        %v1986 = vunpack.c.l.b16 %v1937
        %v1987 = vunpack.c.l.b16 %v1938
        %v1988 = vunpack.c.l.b16 %v1939
        %v1989 = vunpack.c.l.b16 %v1940
        %v1990 = vpack.c.b16 %v1975, %v1974
        %v1991 = vpack.c.b16 %v1977, %v1976
        %v1992 = vpack.c.b16 %v1979, %v1978
        %v1993 = vpack.c.b16 %v1981, %v1980
        %v1994 = vpack.c.b16 %v1983, %v1982
        %v1995 = vpack.c.b16 %v1985, %v1984
        %v1996 = vpack.c.b16 %v1987, %v1986
        %v1997 = vpack.c.b16 %v1989, %v1988
        %2006 = vrot.lane.b32.xlu0 %v1379, 120
        %v2007 = vpop.permute.xlu0 %2006
        %2008 = vrot.lane.b32.xlu0 %v1380, 120
        %v2009 = vpop.permute.xlu0 %2008
        %2010 = vrot.lane.b32.xlu0 %v1381, 120
        %v2011 = vpop.permute.xlu0 %2010
        %2012 = vrot.lane.b32.xlu0 %v1382, 120
        %v2013 = vpop.permute.xlu0 %2012
        %2014 = vrot.lane.b32.xlu0 %v1383, 120
        %v2015 = vpop.permute.xlu0 %2014
        %2016 = vrot.lane.b32.xlu0 %v1384, 120
        %v2017 = vpop.permute.xlu0 %2016
        %2018 = vrot.lane.b32.xlu0 %v1385, 120
        %v2019 = vpop.permute.xlu0 %2018
        %2020 = vrot.lane.b32.xlu0 %v1386, 120
        %v2021 = vpop.permute.xlu0 %2020
        %2030 = vmatpush.bf16.msra.mxu0 %v2021
        %2031 = vmatpush.bf16.msra.mxu0 %v2019
        %2032 = vmatpush.bf16.msra.mxu0 %v2017
        %2033 = vmatpush.bf16.msra.mxu0 %v2015
        %2034 = vmatpush.bf16.msra.mxu0 %v2013
        %2035 = vmatpush.bf16.msra.mxu0 %v2011
        %2036 = vmatpush.bf16.msra.mxu0 %v2009
        %2037 = vmatpush.bf16.msra.mxu0 %v2007
        %2038 = vmatmul.bf16.gmra.mxu0 %v1990
        %v2039 = vpop.f32.mrf.mxu0
        %v2040 = vadd.f32 0.0, %v2039
        %v2041 = vpop.f32.mrf.mxu0
        %v2042 = vadd.f32 0.0, %v2041
        %2043 = vmatmul.bf16.gmra.mxu0 %v1991
        %v2044 = vpop.f32.mrf.mxu0
        %v2045 = vadd.f32 0.0, %v2044
        %v2046 = vpop.f32.mrf.mxu0
        %v2047 = vadd.f32 0.0, %v2046
        %2048 = vmatmul.bf16.gmra.mxu0 %v1992
        %v2049 = vpop.f32.mrf.mxu0
        %v2050 = vadd.f32 0.0, %v2049
        %v2051 = vpop.f32.mrf.mxu0
        %v2052 = vadd.f32 0.0, %v2051
        %2053 = vmatmul.bf16.gmra.mxu0 %v1993
        %v2054 = vpop.f32.mrf.mxu0
        %v2055 = vadd.f32 0.0, %v2054
        %v2056 = vpop.f32.mrf.mxu0
        %v2057 = vadd.f32 0.0, %v2056
        %2058 = vmatmul.bf16.gmra.mxu0 %v1994
        %v2059 = vpop.f32.mrf.mxu0
        %v2060 = vadd.f32 0.0, %v2059
        %v2061 = vpop.f32.mrf.mxu0
        %v2062 = vadd.f32 0.0, %v2061
        %2063 = vmatmul.bf16.gmra.mxu0 %v1995
        %v2064 = vpop.f32.mrf.mxu0
        %v2065 = vadd.f32 0.0, %v2064
        %v2066 = vpop.f32.mrf.mxu0
        %v2067 = vadd.f32 0.0, %v2066
        %2068 = vmatmul.bf16.gmra.mxu0 %v1996
        %v2069 = vpop.f32.mrf.mxu0
        %v2070 = vadd.f32 0.0, %v2069
        %v2071 = vpop.f32.mrf.mxu0
        %v2072 = vadd.f32 0.0, %v2071
        %2073 = vmatmul.bf16.gmra.mxu0 %v1997
        %v2074 = vpop.f32.mrf.mxu0
        %v2075 = vadd.f32 0.0, %v2074
        %v2076 = vpop.f32.mrf.mxu0
        %v2077 = vadd.f32 0.0, %v2076
        %2078 = vdwg.mxu0
        %2079 = vrot.lane.b32.xlu0 %v769, 112
        %v2080 = vpop.permute.xlu0 %2079
        %2081 = vrot.lane.b32.xlu0 %v770, 112
        %v2082 = vpop.permute.xlu0 %2081
        %2083 = vrot.lane.b32.xlu0 %v771, 112
        %v2084 = vpop.permute.xlu0 %2083
        %2085 = vrot.lane.b32.xlu0 %v772, 112
        %v2086 = vpop.permute.xlu0 %2085
        %2087 = vrot.lane.b32.xlu0 %v773, 112
        %v2088 = vpop.permute.xlu0 %2087
        %2089 = vrot.lane.b32.xlu0 %v774, 112
        %v2090 = vpop.permute.xlu0 %2089
        %2091 = vrot.lane.b32.xlu0 %v775, 112
        %v2092 = vpop.permute.xlu0 %2091
        %2093 = vrot.lane.b32.xlu0 %v776, 112
        %v2094 = vpop.permute.xlu0 %2093
        %2095 = vrot.lane.b32.xlu0 %v809, 112
        %v2096 = vpop.permute.xlu0 %2095
        %2097 = vrot.lane.b32.xlu0 %v810, 112
        %v2098 = vpop.permute.xlu0 %2097
        %2099 = vrot.lane.b32.xlu0 %v811, 112
        %v2100 = vpop.permute.xlu0 %2099
        %2101 = vrot.lane.b32.xlu0 %v812, 112
        %v2102 = vpop.permute.xlu0 %2101
        %2103 = vrot.lane.b32.xlu0 %v813, 112
        %v2104 = vpop.permute.xlu0 %2103
        %2105 = vrot.lane.b32.xlu0 %v814, 112
        %v2106 = vpop.permute.xlu0 %2105
        %2107 = vrot.lane.b32.xlu0 %v815, 112
        %v2108 = vpop.permute.xlu0 %2107
        %2109 = vrot.lane.b32.xlu0 %v816, 112
        %v2110 = vpop.permute.xlu0 %2109
        %v2112 = vsel %vm817, %v2080, 0
        %v2115 = vsel %vm817, %v2082, 0
        %v2118 = vsel %vm817, %v2084, 0
        %v2121 = vsel %vm817, %v2086, 0
        %v2124 = vsel %vm817, %v2088, 0
        %v2127 = vsel %vm817, %v2090, 0
        %v2130 = vsel %vm817, %v2092, 0
        %v2133 = vsel %vm817, %v2094, 0
        %v2136 = vsel %vm817, %v2096, 0
        %v2139 = vsel %vm817, %v2098, 0
        %v2142 = vsel %vm817, %v2100, 0
        %v2145 = vsel %vm817, %v2102, 0
        %v2148 = vsel %vm817, %v2104, 0
        %v2151 = vsel %vm817, %v2106, 0
        %v2154 = vsel %vm817, %v2108, 0
        %v2157 = vsel %vm817, %v2110, 0
        %2159 = vmatpush.bf16.xpose.msra.mxu0 %v2157
        %2160 = vmatpush.bf16.xpose.msra.mxu0 %v2154
        %2161 = vmatpush.bf16.xpose.msra.mxu0 %v2151
        %2162 = vmatpush.bf16.xpose.msra.mxu0 %v2148
        %2163 = vmatpush.bf16.xpose.msra.mxu0 %v2145
        %2164 = vmatpush.bf16.xpose.msra.mxu0 %v2142
        %2165 = vmatpush.bf16.xpose.msra.mxu0 %v2139
        %2166 = vmatpush.bf16.xpose.msra.mxu0 %v2136
        %2167 = vmatmul.bf16.gmra.mxu0 %v2112
        %v2168 = vpop.f32.mrf.mxu0
        %v2169 = vadd.f32 %v736, %v2168
        %v2170 = vpop.f32.mrf.mxu0
        %v2171 = vadd.f32 %v736, %v2170
        %2172 = vmatmul.bf16.gmra.mxu0 %v2115
        %v2173 = vpop.f32.mrf.mxu0
        %v2174 = vadd.f32 %v736, %v2173
        %v2175 = vpop.f32.mrf.mxu0
        %v2176 = vadd.f32 %v736, %v2175
        %2177 = vmatmul.bf16.gmra.mxu0 %v2118
        %v2178 = vpop.f32.mrf.mxu0
        %v2179 = vadd.f32 %v736, %v2178
        %v2180 = vpop.f32.mrf.mxu0
        %v2181 = vadd.f32 %v736, %v2180
        %2182 = vmatmul.bf16.gmra.mxu0 %v2121
        %v2183 = vpop.f32.mrf.mxu0
        %v2184 = vadd.f32 %v736, %v2183
        %v2185 = vpop.f32.mrf.mxu0
        %v2186 = vadd.f32 %v736, %v2185
        %2187 = vmatmul.bf16.gmra.mxu0 %v2124
        %v2188 = vpop.f32.mrf.mxu0
        %v2189 = vadd.f32 %v736, %v2188
        %v2190 = vpop.f32.mrf.mxu0
        %v2191 = vadd.f32 %v736, %v2190
        %2192 = vmatmul.bf16.gmra.mxu0 %v2127
        %v2193 = vpop.f32.mrf.mxu0
        %v2194 = vadd.f32 %v736, %v2193
        %v2195 = vpop.f32.mrf.mxu0
        %v2196 = vadd.f32 %v736, %v2195
        %2197 = vmatmul.bf16.gmra.mxu0 %v2130
        %v2198 = vpop.f32.mrf.mxu0
        %v2199 = vadd.f32 %v736, %v2198
        %v2200 = vpop.f32.mrf.mxu0
        %v2201 = vadd.f32 %v736, %v2200
        %2202 = vmatmul.bf16.gmra.mxu0 %v2133
        %v2203 = vpop.f32.mrf.mxu0
        %v2204 = vadd.f32 %v736, %v2203
        %v2205 = vpop.f32.mrf.mxu0
        %v2206 = vadd.f32 %v736, %v2205
        %2207 = vdwg.mxu0
        %2208 = vmax.xlane.f32.xlu0 %v2169
        %v2209 = vpop.xlane.xlu0 %2208
        %2210 = vmax.xlane.f32.xlu0 %v2171
        %v2211 = vpop.xlane.xlu0 %2210
        %2212 = vmax.xlane.f32.xlu0 %v2174
        %v2213 = vpop.xlane.xlu0 %2212
        %2214 = vmax.xlane.f32.xlu0 %v2176
        %v2215 = vpop.xlane.xlu0 %2214
        %2216 = vmax.xlane.f32.xlu0 %v2179
        %v2217 = vpop.xlane.xlu0 %2216
        %2218 = vmax.xlane.f32.xlu0 %v2181
        %v2219 = vpop.xlane.xlu0 %2218
        %2220 = vmax.xlane.f32.xlu0 %v2184
        %v2221 = vpop.xlane.xlu0 %2220
        %2222 = vmax.xlane.f32.xlu0 %v2186
        %v2223 = vpop.xlane.xlu0 %2222
        %2224 = vmax.xlane.f32.xlu0 %v2189
        %v2225 = vpop.xlane.xlu0 %2224
        %2226 = vmax.xlane.f32.xlu0 %v2191
        %v2227 = vpop.xlane.xlu0 %2226
        %2228 = vmax.xlane.f32.xlu0 %v2194
        %v2229 = vpop.xlane.xlu0 %2228
        %2230 = vmax.xlane.f32.xlu0 %v2196
        %v2231 = vpop.xlane.xlu0 %2230
        %2232 = vmax.xlane.f32.xlu0 %v2199
        %v2233 = vpop.xlane.xlu0 %2232
        %2234 = vmax.xlane.f32.xlu0 %v2201
        %v2235 = vpop.xlane.xlu0 %2234
        %2236 = vmax.xlane.f32.xlu0 %v2204
        %v2237 = vpop.xlane.xlu0 %2236
        %2238 = vmax.xlane.f32.xlu0 %v2206
        %v2239 = vpop.xlane.xlu0 %2238
        %v2240 = vsub.f32 %v2169, %v2209
        %v2241 = vsub.f32 %v2171, %v2211
        %v2242 = vsub.f32 %v2174, %v2213
        %v2243 = vsub.f32 %v2176, %v2215
        %v2244 = vsub.f32 %v2179, %v2217
        %v2245 = vsub.f32 %v2181, %v2219
        %v2246 = vsub.f32 %v2184, %v2221
        %v2247 = vsub.f32 %v2186, %v2223
        %v2248 = vsub.f32 %v2189, %v2225
        %v2249 = vsub.f32 %v2191, %v2227
        %v2250 = vsub.f32 %v2194, %v2229
        %v2251 = vsub.f32 %v2196, %v2231
        %v2252 = vsub.f32 %v2199, %v2233
        %v2253 = vsub.f32 %v2201, %v2235
        %v2254 = vsub.f32 %v2204, %v2237
        %v2255 = vsub.f32 %v2206, %v2239
        %v2256 = vmul.f32 %v2240, 1.442695
        %v2257 = vpow.pop %v2256
        %v2258 = vmul.f32 %v2241, 1.442695
        %v2259 = vpow.pop %v2258
        %v2260 = vmul.f32 %v2242, 1.442695
        %v2261 = vpow.pop %v2260
        %v2262 = vmul.f32 %v2243, 1.442695
        %v2263 = vpow.pop %v2262
        %v2264 = vmul.f32 %v2244, 1.442695
        %v2265 = vpow.pop %v2264
        %v2266 = vmul.f32 %v2245, 1.442695
        %v2267 = vpow.pop %v2266
        %v2268 = vmul.f32 %v2246, 1.442695
        %v2269 = vpow.pop %v2268
        %v2270 = vmul.f32 %v2247, 1.442695
        %v2271 = vpow.pop %v2270
        %v2272 = vmul.f32 %v2248, 1.442695
        %v2273 = vpow.pop %v2272
        %v2274 = vmul.f32 %v2249, 1.442695
        %v2275 = vpow.pop %v2274
        %v2276 = vmul.f32 %v2250, 1.442695
        %v2277 = vpow.pop %v2276
        %v2278 = vmul.f32 %v2251, 1.442695
        %v2279 = vpow.pop %v2278
        %v2280 = vmul.f32 %v2252, 1.442695
        %v2281 = vpow.pop %v2280
        %v2282 = vmul.f32 %v2253, 1.442695
        %v2283 = vpow.pop %v2282
        %v2284 = vmul.f32 %v2254, 1.442695
        %v2285 = vpow.pop %v2284
        %v2286 = vmul.f32 %v2255, 1.442695
        %v2287 = vpow.pop %v2286
        %2288 = vadd.xlane.f32.xlu0 %v2257
        %v2289 = vpop.xlane.xlu0 %2288
        %2290 = vadd.xlane.f32.xlu0 %v2259
        %v2291 = vpop.xlane.xlu0 %2290
        %2292 = vadd.xlane.f32.xlu0 %v2261
        %v2293 = vpop.xlane.xlu0 %2292
        %2294 = vadd.xlane.f32.xlu0 %v2263
        %v2295 = vpop.xlane.xlu0 %2294
        %2296 = vadd.xlane.f32.xlu0 %v2265
        %v2297 = vpop.xlane.xlu0 %2296
        %2298 = vadd.xlane.f32.xlu0 %v2267
        %v2299 = vpop.xlane.xlu0 %2298
        %2300 = vadd.xlane.f32.xlu0 %v2269
        %v2301 = vpop.xlane.xlu0 %2300
        %2302 = vadd.xlane.f32.xlu0 %v2271
        %v2303 = vpop.xlane.xlu0 %2302
        %2304 = vadd.xlane.f32.xlu0 %v2273
        %v2305 = vpop.xlane.xlu0 %2304
        %2306 = vadd.xlane.f32.xlu0 %v2275
        %v2307 = vpop.xlane.xlu0 %2306
        %2308 = vadd.xlane.f32.xlu0 %v2277
        %v2309 = vpop.xlane.xlu0 %2308
        %2310 = vadd.xlane.f32.xlu0 %v2279
        %v2311 = vpop.xlane.xlu0 %2310
        %2312 = vadd.xlane.f32.xlu0 %v2281
        %v2313 = vpop.xlane.xlu0 %2312
        %2314 = vadd.xlane.f32.xlu0 %v2283
        %v2315 = vpop.xlane.xlu0 %2314
        %2316 = vadd.xlane.f32.xlu0 %v2285
        %v2317 = vpop.xlane.xlu0 %2316
        %2318 = vadd.xlane.f32.xlu0 %v2287
        %v2319 = vpop.xlane.xlu0 %2318
        %v2320 = vrcp.pop %v2289
        %v2321 = vmul.f32 %v2289, %v2320
        %v2322 = vsub.f32 1.0, %v2321
        %v2323 = vmul.f32 %v2320, %v2322
        %v2324 = vadd.f32 %v2320, %v2323
        %vm2325 = vweird.f32 %v2289
        %vm2326 = vweird.f32 %v2320
        %vm2327 = vmor %vm2325, %vm2326
        %v2328 = vsel %vm2327, %v2320, %v2324
        %v2329 = vand.u32 2147483647, %v2289
        %vm2330 = vcmp.eq.f32.partialorder %v2329, 8.507059e+37
        %v2331 = vand.u32 %v2289, 2147483648
        %v2332 = vor.u32 1.1754944e-38, %v2331
        %v2333 = vsel %vm2330, %v2332, %v2328
        %v2334 = vrcp.pop %v2291
        %v2335 = vmul.f32 %v2291, %v2334
        %v2336 = vsub.f32 1.0, %v2335
        %v2337 = vmul.f32 %v2334, %v2336
        %v2338 = vadd.f32 %v2334, %v2337
        %vm2339 = vweird.f32 %v2291
        %vm2340 = vweird.f32 %v2334
        %vm2341 = vmor %vm2339, %vm2340
        %v2342 = vsel %vm2341, %v2334, %v2338
        %v2343 = vand.u32 2147483647, %v2291
        %vm2344 = vcmp.eq.f32.partialorder %v2343, 8.507059e+37
        %v2345 = vand.u32 %v2291, 2147483648
        %v2346 = vor.u32 1.1754944e-38, %v2345
        %v2347 = vsel %vm2344, %v2346, %v2342
        %v2348 = vrcp.pop %v2293
        %v2349 = vmul.f32 %v2293, %v2348
        %v2350 = vsub.f32 1.0, %v2349
        %v2351 = vmul.f32 %v2348, %v2350
        %v2352 = vadd.f32 %v2348, %v2351
        %vm2353 = vweird.f32 %v2293
        %vm2354 = vweird.f32 %v2348
        %vm2355 = vmor %vm2353, %vm2354
        %v2356 = vsel %vm2355, %v2348, %v2352
        %v2357 = vand.u32 2147483647, %v2293
        %vm2358 = vcmp.eq.f32.partialorder %v2357, 8.507059e+37
        %v2359 = vand.u32 %v2293, 2147483648
        %v2360 = vor.u32 1.1754944e-38, %v2359
        %v2361 = vsel %vm2358, %v2360, %v2356
        %v2362 = vrcp.pop %v2295
        %v2363 = vmul.f32 %v2295, %v2362
        %v2364 = vsub.f32 1.0, %v2363
        %v2365 = vmul.f32 %v2362, %v2364
        %v2366 = vadd.f32 %v2362, %v2365
        %vm2367 = vweird.f32 %v2295
        %vm2368 = vweird.f32 %v2362
        %vm2369 = vmor %vm2367, %vm2368
        %v2370 = vsel %vm2369, %v2362, %v2366
        %v2371 = vand.u32 2147483647, %v2295
        %vm2372 = vcmp.eq.f32.partialorder %v2371, 8.507059e+37
        %v2373 = vand.u32 %v2295, 2147483648
        %v2374 = vor.u32 1.1754944e-38, %v2373
        %v2375 = vsel %vm2372, %v2374, %v2370
        %v2376 = vrcp.pop %v2297
        %v2377 = vmul.f32 %v2297, %v2376
        %v2378 = vsub.f32 1.0, %v2377
        %v2379 = vmul.f32 %v2376, %v2378
        %v2380 = vadd.f32 %v2376, %v2379
        %vm2381 = vweird.f32 %v2297
        %vm2382 = vweird.f32 %v2376
        %vm2383 = vmor %vm2381, %vm2382
        %v2384 = vsel %vm2383, %v2376, %v2380
        %v2385 = vand.u32 2147483647, %v2297
        %vm2386 = vcmp.eq.f32.partialorder %v2385, 8.507059e+37
        %v2387 = vand.u32 %v2297, 2147483648
        %v2388 = vor.u32 1.1754944e-38, %v2387
        %v2389 = vsel %vm2386, %v2388, %v2384
        %v2390 = vrcp.pop %v2299
        %v2391 = vmul.f32 %v2299, %v2390
        %v2392 = vsub.f32 1.0, %v2391
        %v2393 = vmul.f32 %v2390, %v2392
        %v2394 = vadd.f32 %v2390, %v2393
        %vm2395 = vweird.f32 %v2299
        %vm2396 = vweird.f32 %v2390
        %vm2397 = vmor %vm2395, %vm2396
        %v2398 = vsel %vm2397, %v2390, %v2394
        %v2399 = vand.u32 2147483647, %v2299
        %vm2400 = vcmp.eq.f32.partialorder %v2399, 8.507059e+37
        %v2401 = vand.u32 %v2299, 2147483648
        %v2402 = vor.u32 1.1754944e-38, %v2401
        %v2403 = vsel %vm2400, %v2402, %v2398
        %v2404 = vrcp.pop %v2301
        %v2405 = vmul.f32 %v2301, %v2404
        %v2406 = vsub.f32 1.0, %v2405
        %v2407 = vmul.f32 %v2404, %v2406
        %v2408 = vadd.f32 %v2404, %v2407
        %vm2409 = vweird.f32 %v2301
        %vm2410 = vweird.f32 %v2404
        %vm2411 = vmor %vm2409, %vm2410
        %v2412 = vsel %vm2411, %v2404, %v2408
        %v2413 = vand.u32 2147483647, %v2301
        %vm2414 = vcmp.eq.f32.partialorder %v2413, 8.507059e+37
        %v2415 = vand.u32 %v2301, 2147483648
        %v2416 = vor.u32 1.1754944e-38, %v2415
        %v2417 = vsel %vm2414, %v2416, %v2412
        %v2418 = vrcp.pop %v2303
        %v2419 = vmul.f32 %v2303, %v2418
        %v2420 = vsub.f32 1.0, %v2419
        %v2421 = vmul.f32 %v2418, %v2420
        %v2422 = vadd.f32 %v2418, %v2421
        %vm2423 = vweird.f32 %v2303
        %vm2424 = vweird.f32 %v2418
        %vm2425 = vmor %vm2423, %vm2424
        %v2426 = vsel %vm2425, %v2418, %v2422
        %v2427 = vand.u32 2147483647, %v2303
        %vm2428 = vcmp.eq.f32.partialorder %v2427, 8.507059e+37
        %v2429 = vand.u32 %v2303, 2147483648
        %v2430 = vor.u32 1.1754944e-38, %v2429
        %v2431 = vsel %vm2428, %v2430, %v2426
        %v2432 = vrcp.pop %v2305
        %v2433 = vmul.f32 %v2305, %v2432
        %v2434 = vsub.f32 1.0, %v2433
        %v2435 = vmul.f32 %v2432, %v2434
        %v2436 = vadd.f32 %v2432, %v2435
        %vm2437 = vweird.f32 %v2305
        %vm2438 = vweird.f32 %v2432
        %vm2439 = vmor %vm2437, %vm2438
        %v2440 = vsel %vm2439, %v2432, %v2436
        %v2441 = vand.u32 2147483647, %v2305
        %vm2442 = vcmp.eq.f32.partialorder %v2441, 8.507059e+37
        %v2443 = vand.u32 %v2305, 2147483648
        %v2444 = vor.u32 1.1754944e-38, %v2443
        %v2445 = vsel %vm2442, %v2444, %v2440
        %v2446 = vrcp.pop %v2307
        %v2447 = vmul.f32 %v2307, %v2446
        %v2448 = vsub.f32 1.0, %v2447
        %v2449 = vmul.f32 %v2446, %v2448
        %v2450 = vadd.f32 %v2446, %v2449
        %vm2451 = vweird.f32 %v2307
        %vm2452 = vweird.f32 %v2446
        %vm2453 = vmor %vm2451, %vm2452
        %v2454 = vsel %vm2453, %v2446, %v2450
        %v2455 = vand.u32 2147483647, %v2307
        %vm2456 = vcmp.eq.f32.partialorder %v2455, 8.507059e+37
        %v2457 = vand.u32 %v2307, 2147483648
        %v2458 = vor.u32 1.1754944e-38, %v2457
        %v2459 = vsel %vm2456, %v2458, %v2454
        %v2460 = vrcp.pop %v2309
        %v2461 = vmul.f32 %v2309, %v2460
        %v2462 = vsub.f32 1.0, %v2461
        %v2463 = vmul.f32 %v2460, %v2462
        %v2464 = vadd.f32 %v2460, %v2463
        %vm2465 = vweird.f32 %v2309
        %vm2466 = vweird.f32 %v2460
        %vm2467 = vmor %vm2465, %vm2466
        %v2468 = vsel %vm2467, %v2460, %v2464
        %v2469 = vand.u32 2147483647, %v2309
        %vm2470 = vcmp.eq.f32.partialorder %v2469, 8.507059e+37
        %v2471 = vand.u32 %v2309, 2147483648
        %v2472 = vor.u32 1.1754944e-38, %v2471
        %v2473 = vsel %vm2470, %v2472, %v2468
        %v2474 = vrcp.pop %v2311
        %v2475 = vmul.f32 %v2311, %v2474
        %v2476 = vsub.f32 1.0, %v2475
        %v2477 = vmul.f32 %v2474, %v2476
        %v2478 = vadd.f32 %v2474, %v2477
        %vm2479 = vweird.f32 %v2311
        %vm2480 = vweird.f32 %v2474
        %vm2481 = vmor %vm2479, %vm2480
        %v2482 = vsel %vm2481, %v2474, %v2478
        %v2483 = vand.u32 2147483647, %v2311
        %vm2484 = vcmp.eq.f32.partialorder %v2483, 8.507059e+37
        %v2485 = vand.u32 %v2311, 2147483648
        %v2486 = vor.u32 1.1754944e-38, %v2485
        %v2487 = vsel %vm2484, %v2486, %v2482
        %v2488 = vrcp.pop %v2313
        %v2489 = vmul.f32 %v2313, %v2488
        %v2490 = vsub.f32 1.0, %v2489
        %v2491 = vmul.f32 %v2488, %v2490
        %v2492 = vadd.f32 %v2488, %v2491
        %vm2493 = vweird.f32 %v2313
        %vm2494 = vweird.f32 %v2488
        %vm2495 = vmor %vm2493, %vm2494
        %v2496 = vsel %vm2495, %v2488, %v2492
        %v2497 = vand.u32 2147483647, %v2313
        %vm2498 = vcmp.eq.f32.partialorder %v2497, 8.507059e+37
        %v2499 = vand.u32 %v2313, 2147483648
        %v2500 = vor.u32 1.1754944e-38, %v2499
        %v2501 = vsel %vm2498, %v2500, %v2496
        %v2502 = vrcp.pop %v2315
        %v2503 = vmul.f32 %v2315, %v2502
        %v2504 = vsub.f32 1.0, %v2503
        %v2505 = vmul.f32 %v2502, %v2504
        %v2506 = vadd.f32 %v2502, %v2505
        %vm2507 = vweird.f32 %v2315
        %vm2508 = vweird.f32 %v2502
        %vm2509 = vmor %vm2507, %vm2508
        %v2510 = vsel %vm2509, %v2502, %v2506
        %v2511 = vand.u32 2147483647, %v2315
        %vm2512 = vcmp.eq.f32.partialorder %v2511, 8.507059e+37
        %v2513 = vand.u32 %v2315, 2147483648
        %v2514 = vor.u32 1.1754944e-38, %v2513
        %v2515 = vsel %vm2512, %v2514, %v2510
        %v2516 = vrcp.pop %v2317
        %v2517 = vmul.f32 %v2317, %v2516
        %v2518 = vsub.f32 1.0, %v2517
        %v2519 = vmul.f32 %v2516, %v2518
        %v2520 = vadd.f32 %v2516, %v2519
        %vm2521 = vweird.f32 %v2317
        %vm2522 = vweird.f32 %v2516
        %vm2523 = vmor %vm2521, %vm2522
        %v2524 = vsel %vm2523, %v2516, %v2520
        %v2525 = vand.u32 2147483647, %v2317
        %vm2526 = vcmp.eq.f32.partialorder %v2525, 8.507059e+37
        %v2527 = vand.u32 %v2317, 2147483648
        %v2528 = vor.u32 1.1754944e-38, %v2527
        %v2529 = vsel %vm2526, %v2528, %v2524
        %v2530 = vrcp.pop %v2319
        %v2531 = vmul.f32 %v2319, %v2530
        %v2532 = vsub.f32 1.0, %v2531
        %v2533 = vmul.f32 %v2530, %v2532
        %v2534 = vadd.f32 %v2530, %v2533
        %vm2535 = vweird.f32 %v2319
        %vm2536 = vweird.f32 %v2530
        %vm2537 = vmor %vm2535, %vm2536
        %v2538 = vsel %vm2537, %v2530, %v2534
        %v2539 = vand.u32 2147483647, %v2319
        %vm2540 = vcmp.eq.f32.partialorder %v2539, 8.507059e+37
        %v2541 = vand.u32 %v2319, 2147483648
        %v2542 = vor.u32 1.1754944e-38, %v2541
        %v2543 = vsel %vm2540, %v2542, %v2538
        %v2544 = vmul.f32 %v2257, %v2333
        %v2545 = vmul.f32 %v2259, %v2347
        %v2546 = vmul.f32 %v2261, %v2361
        %v2547 = vmul.f32 %v2263, %v2375
        %v2548 = vmul.f32 %v2265, %v2389
        %v2549 = vmul.f32 %v2267, %v2403
        %v2550 = vmul.f32 %v2269, %v2417
        %v2551 = vmul.f32 %v2271, %v2431
        %v2552 = vmul.f32 %v2273, %v2445
        %v2553 = vmul.f32 %v2275, %v2459
        %v2554 = vmul.f32 %v2277, %v2473
        %v2555 = vmul.f32 %v2279, %v2487
        %v2556 = vmul.f32 %v2281, %v2501
        %v2557 = vmul.f32 %v2283, %v2515
        %v2558 = vmul.f32 %v2285, %v2529
        %v2559 = vmul.f32 %v2287, %v2543
        %v2560 = vpack.c.bf16 %v2544, %v2544
        %v2561 = vpack.c.bf16 %v2545, %v2545
        %v2562 = vpack.c.bf16 %v2546, %v2546
        %v2563 = vpack.c.bf16 %v2547, %v2547
        %v2564 = vpack.c.bf16 %v2548, %v2548
        %v2565 = vpack.c.bf16 %v2549, %v2549
        %v2566 = vpack.c.bf16 %v2550, %v2550
        %v2567 = vpack.c.bf16 %v2551, %v2551
        %v2568 = vpack.c.bf16 %v2552, %v2552
        %v2569 = vpack.c.bf16 %v2553, %v2553
        %v2570 = vpack.c.bf16 %v2554, %v2554
        %v2571 = vpack.c.bf16 %v2555, %v2555
        %v2572 = vpack.c.bf16 %v2556, %v2556
        %v2573 = vpack.c.bf16 %v2557, %v2557
        %v2574 = vpack.c.bf16 %v2558, %v2558
        %v2575 = vpack.c.bf16 %v2559, %v2559
        %s2576 = scalar_lea.vmem %s281, 128 [#allocation5]
        %2577 = vst [vmem:[%s2576] sm:$0xf] %v2560
        %2578 = vst [vmem:[%s2576 + $0x4] sm:$0xf] %v2561
        %2579 = vst [vmem:[%s2576 + $0x8] sm:$0xf] %v2562
        %2580 = vst [vmem:[%s2576 + $0xc] sm:$0xf] %v2563
        %2581 = vst [vmem:[%s2576 + $0x10] sm:$0xf] %v2564
        %2582 = vst [vmem:[%s2576 + $0x14] sm:$0xf] %v2565
        %2583 = vst [vmem:[%s2576 + $0x18] sm:$0xf] %v2566
        %2584 = vst [vmem:[%s2576 + $0x1c] sm:$0xf] %v2567
        %2585 = vst [vmem:[%s2576 + $0x20] sm:$0xf] %v2568
        %2586 = vst [vmem:[%s2576 + $0x24] sm:$0xf] %v2569
        %2587 = vst [vmem:[%s2576 + $0x28] sm:$0xf] %v2570
        %2588 = vst [vmem:[%s2576 + $0x2c] sm:$0xf] %v2571
        %2589 = vst [vmem:[%s2576 + $0x30] sm:$0xf] %v2572
        %2590 = vst [vmem:[%s2576 + $0x34] sm:$0xf] %v2573
        %2591 = vst [vmem:[%s2576 + $0x38] sm:$0xf] %v2574
        %2592 = vst [vmem:[%s2576 + $0x3c] sm:$0xf] %v2575
        %v2609 = vunpack.c.l.b16 %v2560
        %v2610 = vunpack.c.l.b16 %v2561
        %v2611 = vunpack.c.l.b16 %v2562
        %v2612 = vunpack.c.l.b16 %v2563
        %v2613 = vunpack.c.l.b16 %v2564
        %v2614 = vunpack.c.l.b16 %v2565
        %v2615 = vunpack.c.l.b16 %v2566
        %v2616 = vunpack.c.l.b16 %v2567
        %v2617 = vunpack.c.l.b16 %v2568
        %v2618 = vunpack.c.l.b16 %v2569
        %v2619 = vunpack.c.l.b16 %v2570
        %v2620 = vunpack.c.l.b16 %v2571
        %v2621 = vunpack.c.l.b16 %v2572
        %v2622 = vunpack.c.l.b16 %v2573
        %v2623 = vunpack.c.l.b16 %v2574
        %v2624 = vunpack.c.l.b16 %v2575
        %v2625 = vpack.c.b16 %v2610, %v2609
        %v2626 = vpack.c.b16 %v2612, %v2611
        %v2627 = vpack.c.b16 %v2614, %v2613
        %v2628 = vpack.c.b16 %v2616, %v2615
        %v2629 = vpack.c.b16 %v2618, %v2617
        %v2630 = vpack.c.b16 %v2620, %v2619
        %v2631 = vpack.c.b16 %v2622, %v2621
        %v2632 = vpack.c.b16 %v2624, %v2623
        %2641 = vrot.lane.b32.xlu0 %v1379, 112
        %v2642 = vpop.permute.xlu0 %2641
        %2643 = vrot.lane.b32.xlu0 %v1380, 112
        %v2644 = vpop.permute.xlu0 %2643
        %2645 = vrot.lane.b32.xlu0 %v1381, 112
        %v2646 = vpop.permute.xlu0 %2645
        %2647 = vrot.lane.b32.xlu0 %v1382, 112
        %v2648 = vpop.permute.xlu0 %2647
        %2649 = vrot.lane.b32.xlu0 %v1383, 112
        %v2650 = vpop.permute.xlu0 %2649
        %2651 = vrot.lane.b32.xlu0 %v1384, 112
        %v2652 = vpop.permute.xlu0 %2651
        %2653 = vrot.lane.b32.xlu0 %v1385, 112
        %v2654 = vpop.permute.xlu0 %2653
        %2655 = vrot.lane.b32.xlu0 %v1386, 112
        %v2656 = vpop.permute.xlu0 %2655
        %2665 = vmatpush.bf16.msra.mxu0 %v2656
        %2666 = vmatpush.bf16.msra.mxu0 %v2654
        %2667 = vmatpush.bf16.msra.mxu0 %v2652
        %2668 = vmatpush.bf16.msra.mxu0 %v2650
        %2669 = vmatpush.bf16.msra.mxu0 %v2648
        %2670 = vmatpush.bf16.msra.mxu0 %v2646
        %2671 = vmatpush.bf16.msra.mxu0 %v2644
        %2672 = vmatpush.bf16.msra.mxu0 %v2642
        %2673 = vmatmul.bf16.gmra.mxu0 %v2625
        %v2674 = vpop.f32.mrf.mxu0
        %v2675 = vadd.f32 0.0, %v2674
        %v2676 = vpop.f32.mrf.mxu0
        %v2677 = vadd.f32 0.0, %v2676
        %2678 = vmatmul.bf16.gmra.mxu0 %v2626
        %v2679 = vpop.f32.mrf.mxu0
        %v2680 = vadd.f32 0.0, %v2679
        %v2681 = vpop.f32.mrf.mxu0
        %v2682 = vadd.f32 0.0, %v2681
        %2683 = vmatmul.bf16.gmra.mxu0 %v2627
        %v2684 = vpop.f32.mrf.mxu0
        %v2685 = vadd.f32 0.0, %v2684
        %v2686 = vpop.f32.mrf.mxu0
        %v2687 = vadd.f32 0.0, %v2686
        %2688 = vmatmul.bf16.gmra.mxu0 %v2628
        %v2689 = vpop.f32.mrf.mxu0
        %v2690 = vadd.f32 0.0, %v2689
        %v2691 = vpop.f32.mrf.mxu0
        %v2692 = vadd.f32 0.0, %v2691
        %2693 = vmatmul.bf16.gmra.mxu0 %v2629
        %v2694 = vpop.f32.mrf.mxu0
        %v2695 = vadd.f32 0.0, %v2694
        %v2696 = vpop.f32.mrf.mxu0
        %v2697 = vadd.f32 0.0, %v2696
        %2698 = vmatmul.bf16.gmra.mxu0 %v2630
        %v2699 = vpop.f32.mrf.mxu0
        %v2700 = vadd.f32 0.0, %v2699
        %v2701 = vpop.f32.mrf.mxu0
        %v2702 = vadd.f32 0.0, %v2701
        %2703 = vmatmul.bf16.gmra.mxu0 %v2631
        %v2704 = vpop.f32.mrf.mxu0
        %v2705 = vadd.f32 0.0, %v2704
        %v2706 = vpop.f32.mrf.mxu0
        %v2707 = vadd.f32 0.0, %v2706
        %2708 = vmatmul.bf16.gmra.mxu0 %v2632
        %v2709 = vpop.f32.mrf.mxu0
        %v2710 = vadd.f32 0.0, %v2709
        %v2711 = vpop.f32.mrf.mxu0
        %v2712 = vadd.f32 0.0, %v2711
        %2713 = vdwg.mxu0
        %2714 = vrot.lane.b32.xlu0 %v769, 104
        %v2715 = vpop.permute.xlu0 %2714
        %2716 = vrot.lane.b32.xlu0 %v770, 104
        %v2717 = vpop.permute.xlu0 %2716
        %2718 = vrot.lane.b32.xlu0 %v771, 104
        %v2719 = vpop.permute.xlu0 %2718
        %2720 = vrot.lane.b32.xlu0 %v772, 104
        %v2721 = vpop.permute.xlu0 %2720
        %2722 = vrot.lane.b32.xlu0 %v773, 104
        %v2723 = vpop.permute.xlu0 %2722
        %2724 = vrot.lane.b32.xlu0 %v774, 104
        %v2725 = vpop.permute.xlu0 %2724
        %2726 = vrot.lane.b32.xlu0 %v775, 104
        %v2727 = vpop.permute.xlu0 %2726
        %2728 = vrot.lane.b32.xlu0 %v776, 104
        %v2729 = vpop.permute.xlu0 %2728
        %2730 = vrot.lane.b32.xlu0 %v809, 104
        %v2731 = vpop.permute.xlu0 %2730
        %2732 = vrot.lane.b32.xlu0 %v810, 104
        %v2733 = vpop.permute.xlu0 %2732
        %2734 = vrot.lane.b32.xlu0 %v811, 104
        %v2735 = vpop.permute.xlu0 %2734
        %2736 = vrot.lane.b32.xlu0 %v812, 104
        %v2737 = vpop.permute.xlu0 %2736
        %2738 = vrot.lane.b32.xlu0 %v813, 104
        %v2739 = vpop.permute.xlu0 %2738
        %2740 = vrot.lane.b32.xlu0 %v814, 104
        %v2741 = vpop.permute.xlu0 %2740
        %2742 = vrot.lane.b32.xlu0 %v815, 104
        %v2743 = vpop.permute.xlu0 %2742
        %2744 = vrot.lane.b32.xlu0 %v816, 104
        %v2745 = vpop.permute.xlu0 %2744
        %v2747 = vsel %vm817, %v2715, 0
        %v2750 = vsel %vm817, %v2717, 0
        %v2753 = vsel %vm817, %v2719, 0
        %v2756 = vsel %vm817, %v2721, 0
        %v2759 = vsel %vm817, %v2723, 0
        %v2762 = vsel %vm817, %v2725, 0
        %v2765 = vsel %vm817, %v2727, 0
        %v2768 = vsel %vm817, %v2729, 0
        %v2771 = vsel %vm817, %v2731, 0
        %v2774 = vsel %vm817, %v2733, 0
        %v2777 = vsel %vm817, %v2735, 0
        %v2780 = vsel %vm817, %v2737, 0
        %v2783 = vsel %vm817, %v2739, 0
        %v2786 = vsel %vm817, %v2741, 0
        %v2789 = vsel %vm817, %v2743, 0
        %v2792 = vsel %vm817, %v2745, 0
        %2794 = vmatpush.bf16.xpose.msra.mxu0 %v2792
        %2795 = vmatpush.bf16.xpose.msra.mxu0 %v2789
        %2796 = vmatpush.bf16.xpose.msra.mxu0 %v2786
        %2797 = vmatpush.bf16.xpose.msra.mxu0 %v2783
        %2798 = vmatpush.bf16.xpose.msra.mxu0 %v2780
        %2799 = vmatpush.bf16.xpose.msra.mxu0 %v2777
        %2800 = vmatpush.bf16.xpose.msra.mxu0 %v2774
        %2801 = vmatpush.bf16.xpose.msra.mxu0 %v2771
        %2802 = vmatmul.bf16.gmra.mxu0 %v2747
        %v2803 = vpop.f32.mrf.mxu0
        %v2804 = vadd.f32 %v736, %v2803
        %v2805 = vpop.f32.mrf.mxu0
        %v2806 = vadd.f32 %v736, %v2805
        %2807 = vmatmul.bf16.gmra.mxu0 %v2750
        %v2808 = vpop.f32.mrf.mxu0
        %v2809 = vadd.f32 %v736, %v2808
        %v2810 = vpop.f32.mrf.mxu0
        %v2811 = vadd.f32 %v736, %v2810
        %2812 = vmatmul.bf16.gmra.mxu0 %v2753
        %v2813 = vpop.f32.mrf.mxu0
        %v2814 = vadd.f32 %v736, %v2813
        %v2815 = vpop.f32.mrf.mxu0
        %v2816 = vadd.f32 %v736, %v2815
        %2817 = vmatmul.bf16.gmra.mxu0 %v2756
        %v2818 = vpop.f32.mrf.mxu0
        %v2819 = vadd.f32 %v736, %v2818
        %v2820 = vpop.f32.mrf.mxu0
        %v2821 = vadd.f32 %v736, %v2820
        %2822 = vmatmul.bf16.gmra.mxu0 %v2759
        %v2823 = vpop.f32.mrf.mxu0
        %v2824 = vadd.f32 %v736, %v2823
        %v2825 = vpop.f32.mrf.mxu0
        %v2826 = vadd.f32 %v736, %v2825
        %2827 = vmatmul.bf16.gmra.mxu0 %v2762
        %v2828 = vpop.f32.mrf.mxu0
        %v2829 = vadd.f32 %v736, %v2828
        %v2830 = vpop.f32.mrf.mxu0
        %v2831 = vadd.f32 %v736, %v2830
        %2832 = vmatmul.bf16.gmra.mxu0 %v2765
        %v2833 = vpop.f32.mrf.mxu0
        %v2834 = vadd.f32 %v736, %v2833
        %v2835 = vpop.f32.mrf.mxu0
        %v2836 = vadd.f32 %v736, %v2835
        %2837 = vmatmul.bf16.gmra.mxu0 %v2768
        %v2838 = vpop.f32.mrf.mxu0
        %v2839 = vadd.f32 %v736, %v2838
        %v2840 = vpop.f32.mrf.mxu0
        %v2841 = vadd.f32 %v736, %v2840
        %2842 = vdwg.mxu0
        %2843 = vmax.xlane.f32.xlu0 %v2804
        %v2844 = vpop.xlane.xlu0 %2843
        %2845 = vmax.xlane.f32.xlu0 %v2806
        %v2846 = vpop.xlane.xlu0 %2845
        %2847 = vmax.xlane.f32.xlu0 %v2809
        %v2848 = vpop.xlane.xlu0 %2847
        %2849 = vmax.xlane.f32.xlu0 %v2811
        %v2850 = vpop.xlane.xlu0 %2849
        %2851 = vmax.xlane.f32.xlu0 %v2814
        %v2852 = vpop.xlane.xlu0 %2851
        %2853 = vmax.xlane.f32.xlu0 %v2816
        %v2854 = vpop.xlane.xlu0 %2853
        %2855 = vmax.xlane.f32.xlu0 %v2819
        %v2856 = vpop.xlane.xlu0 %2855
        %2857 = vmax.xlane.f32.xlu0 %v2821
        %v2858 = vpop.xlane.xlu0 %2857
        %2859 = vmax.xlane.f32.xlu0 %v2824
        %v2860 = vpop.xlane.xlu0 %2859
        %2861 = vmax.xlane.f32.xlu0 %v2826
        %v2862 = vpop.xlane.xlu0 %2861
        %2863 = vmax.xlane.f32.xlu0 %v2829
        %v2864 = vpop.xlane.xlu0 %2863
        %2865 = vmax.xlane.f32.xlu0 %v2831
        %v2866 = vpop.xlane.xlu0 %2865
        %2867 = vmax.xlane.f32.xlu0 %v2834
        %v2868 = vpop.xlane.xlu0 %2867
        %2869 = vmax.xlane.f32.xlu0 %v2836
        %v2870 = vpop.xlane.xlu0 %2869
        %2871 = vmax.xlane.f32.xlu0 %v2839
        %v2872 = vpop.xlane.xlu0 %2871
        %2873 = vmax.xlane.f32.xlu0 %v2841
        %v2874 = vpop.xlane.xlu0 %2873
        %v2875 = vsub.f32 %v2804, %v2844
        %v2876 = vsub.f32 %v2806, %v2846
        %v2877 = vsub.f32 %v2809, %v2848
        %v2878 = vsub.f32 %v2811, %v2850
        %v2879 = vsub.f32 %v2814, %v2852
        %v2880 = vsub.f32 %v2816, %v2854
        %v2881 = vsub.f32 %v2819, %v2856
        %v2882 = vsub.f32 %v2821, %v2858
        %v2883 = vsub.f32 %v2824, %v2860
        %v2884 = vsub.f32 %v2826, %v2862
        %v2885 = vsub.f32 %v2829, %v2864
        %v2886 = vsub.f32 %v2831, %v2866
        %v2887 = vsub.f32 %v2834, %v2868
        %v2888 = vsub.f32 %v2836, %v2870
        %v2889 = vsub.f32 %v2839, %v2872
        %v2890 = vsub.f32 %v2841, %v2874
        %v2891 = vmul.f32 %v2875, 1.442695
        %v2892 = vpow.pop %v2891
        %v2893 = vmul.f32 %v2876, 1.442695
        %v2894 = vpow.pop %v2893
        %v2895 = vmul.f32 %v2877, 1.442695
        %v2896 = vpow.pop %v2895
        %v2897 = vmul.f32 %v2878, 1.442695
        %v2898 = vpow.pop %v2897
        %v2899 = vmul.f32 %v2879, 1.442695
        %v2900 = vpow.pop %v2899
        %v2901 = vmul.f32 %v2880, 1.442695
        %v2902 = vpow.pop %v2901
        %v2903 = vmul.f32 %v2881, 1.442695
        %v2904 = vpow.pop %v2903
        %v2905 = vmul.f32 %v2882, 1.442695
        %v2906 = vpow.pop %v2905
        %v2907 = vmul.f32 %v2883, 1.442695
        %v2908 = vpow.pop %v2907
        %v2909 = vmul.f32 %v2884, 1.442695
        %v2910 = vpow.pop %v2909
        %v2911 = vmul.f32 %v2885, 1.442695
        %v2912 = vpow.pop %v2911
        %v2913 = vmul.f32 %v2886, 1.442695
        %v2914 = vpow.pop %v2913
        %v2915 = vmul.f32 %v2887, 1.442695
        %v2916 = vpow.pop %v2915
        %v2917 = vmul.f32 %v2888, 1.442695
        %v2918 = vpow.pop %v2917
        %v2919 = vmul.f32 %v2889, 1.442695
        %v2920 = vpow.pop %v2919
        %v2921 = vmul.f32 %v2890, 1.442695
        %v2922 = vpow.pop %v2921
        %2923 = vadd.xlane.f32.xlu0 %v2892
        %v2924 = vpop.xlane.xlu0 %2923
        %2925 = vadd.xlane.f32.xlu0 %v2894
        %v2926 = vpop.xlane.xlu0 %2925
        %2927 = vadd.xlane.f32.xlu0 %v2896
        %v2928 = vpop.xlane.xlu0 %2927
        %2929 = vadd.xlane.f32.xlu0 %v2898
        %v2930 = vpop.xlane.xlu0 %2929
        %2931 = vadd.xlane.f32.xlu0 %v2900
        %v2932 = vpop.xlane.xlu0 %2931
        %2933 = vadd.xlane.f32.xlu0 %v2902
        %v2934 = vpop.xlane.xlu0 %2933
        %2935 = vadd.xlane.f32.xlu0 %v2904
        %v2936 = vpop.xlane.xlu0 %2935
        %2937 = vadd.xlane.f32.xlu0 %v2906
        %v2938 = vpop.xlane.xlu0 %2937
        %2939 = vadd.xlane.f32.xlu0 %v2908
        %v2940 = vpop.xlane.xlu0 %2939
        %2941 = vadd.xlane.f32.xlu0 %v2910
        %v2942 = vpop.xlane.xlu0 %2941
        %2943 = vadd.xlane.f32.xlu0 %v2912
        %v2944 = vpop.xlane.xlu0 %2943
        %2945 = vadd.xlane.f32.xlu0 %v2914
        %v2946 = vpop.xlane.xlu0 %2945
        %2947 = vadd.xlane.f32.xlu0 %v2916
        %v2948 = vpop.xlane.xlu0 %2947
        %2949 = vadd.xlane.f32.xlu0 %v2918
        %v2950 = vpop.xlane.xlu0 %2949
        %2951 = vadd.xlane.f32.xlu0 %v2920
        %v2952 = vpop.xlane.xlu0 %2951
        %2953 = vadd.xlane.f32.xlu0 %v2922
        %v2954 = vpop.xlane.xlu0 %2953
        %v2955 = vrcp.pop %v2924
        %v2956 = vmul.f32 %v2924, %v2955
        %v2957 = vsub.f32 1.0, %v2956
        %v2958 = vmul.f32 %v2955, %v2957
        %v2959 = vadd.f32 %v2955, %v2958
        %vm2960 = vweird.f32 %v2924
        %vm2961 = vweird.f32 %v2955
        %vm2962 = vmor %vm2960, %vm2961
        %v2963 = vsel %vm2962, %v2955, %v2959
        %v2964 = vand.u32 2147483647, %v2924
        %vm2965 = vcmp.eq.f32.partialorder %v2964, 8.507059e+37
        %v2966 = vand.u32 %v2924, 2147483648
        %v2967 = vor.u32 1.1754944e-38, %v2966
        %v2968 = vsel %vm2965, %v2967, %v2963
        %v2969 = vrcp.pop %v2926
        %v2970 = vmul.f32 %v2926, %v2969
        %v2971 = vsub.f32 1.0, %v2970
        %v2972 = vmul.f32 %v2969, %v2971
        %v2973 = vadd.f32 %v2969, %v2972
        %vm2974 = vweird.f32 %v2926
        %vm2975 = vweird.f32 %v2969
        %vm2976 = vmor %vm2974, %vm2975
        %v2977 = vsel %vm2976, %v2969, %v2973
        %v2978 = vand.u32 2147483647, %v2926
        %vm2979 = vcmp.eq.f32.partialorder %v2978, 8.507059e+37
        %v2980 = vand.u32 %v2926, 2147483648
        %v2981 = vor.u32 1.1754944e-38, %v2980
        %v2982 = vsel %vm2979, %v2981, %v2977
        %v2983 = vrcp.pop %v2928
        %v2984 = vmul.f32 %v2928, %v2983
        %v2985 = vsub.f32 1.0, %v2984
        %v2986 = vmul.f32 %v2983, %v2985
        %v2987 = vadd.f32 %v2983, %v2986
        %vm2988 = vweird.f32 %v2928
        %vm2989 = vweird.f32 %v2983
        %vm2990 = vmor %vm2988, %vm2989
        %v2991 = vsel %vm2990, %v2983, %v2987
        %v2992 = vand.u32 2147483647, %v2928
        %vm2993 = vcmp.eq.f32.partialorder %v2992, 8.507059e+37
        %v2994 = vand.u32 %v2928, 2147483648
        %v2995 = vor.u32 1.1754944e-38, %v2994
        %v2996 = vsel %vm2993, %v2995, %v2991
        %v2997 = vrcp.pop %v2930
        %v2998 = vmul.f32 %v2930, %v2997
        %v2999 = vsub.f32 1.0, %v2998
        %v3000 = vmul.f32 %v2997, %v2999
        %v3001 = vadd.f32 %v2997, %v3000
        %vm3002 = vweird.f32 %v2930
        %vm3003 = vweird.f32 %v2997
        %vm3004 = vmor %vm3002, %vm3003
        %v3005 = vsel %vm3004, %v2997, %v3001
        %v3006 = vand.u32 2147483647, %v2930
        %vm3007 = vcmp.eq.f32.partialorder %v3006, 8.507059e+37
        %v3008 = vand.u32 %v2930, 2147483648
        %v3009 = vor.u32 1.1754944e-38, %v3008
        %v3010 = vsel %vm3007, %v3009, %v3005
        %v3011 = vrcp.pop %v2932
        %v3012 = vmul.f32 %v2932, %v3011
        %v3013 = vsub.f32 1.0, %v3012
        %v3014 = vmul.f32 %v3011, %v3013
        %v3015 = vadd.f32 %v3011, %v3014
        %vm3016 = vweird.f32 %v2932
        %vm3017 = vweird.f32 %v3011
        %vm3018 = vmor %vm3016, %vm3017
        %v3019 = vsel %vm3018, %v3011, %v3015
        %v3020 = vand.u32 2147483647, %v2932
        %vm3021 = vcmp.eq.f32.partialorder %v3020, 8.507059e+37
        %v3022 = vand.u32 %v2932, 2147483648
        %v3023 = vor.u32 1.1754944e-38, %v3022
        %v3024 = vsel %vm3021, %v3023, %v3019
        %v3025 = vrcp.pop %v2934
        %v3026 = vmul.f32 %v2934, %v3025
        %v3027 = vsub.f32 1.0, %v3026
        %v3028 = vmul.f32 %v3025, %v3027
        %v3029 = vadd.f32 %v3025, %v3028
        %vm3030 = vweird.f32 %v2934
        %vm3031 = vweird.f32 %v3025
        %vm3032 = vmor %vm3030, %vm3031
        %v3033 = vsel %vm3032, %v3025, %v3029
        %v3034 = vand.u32 2147483647, %v2934
        %vm3035 = vcmp.eq.f32.partialorder %v3034, 8.507059e+37
        %v3036 = vand.u32 %v2934, 2147483648
        %v3037 = vor.u32 1.1754944e-38, %v3036
        %v3038 = vsel %vm3035, %v3037, %v3033
        %v3039 = vrcp.pop %v2936
        %v3040 = vmul.f32 %v2936, %v3039
        %v3041 = vsub.f32 1.0, %v3040
        %v3042 = vmul.f32 %v3039, %v3041
        %v3043 = vadd.f32 %v3039, %v3042
        %vm3044 = vweird.f32 %v2936
        %vm3045 = vweird.f32 %v3039
        %vm3046 = vmor %vm3044, %vm3045
        %v3047 = vsel %vm3046, %v3039, %v3043
        %v3048 = vand.u32 2147483647, %v2936
        %vm3049 = vcmp.eq.f32.partialorder %v3048, 8.507059e+37
        %v3050 = vand.u32 %v2936, 2147483648
        %v3051 = vor.u32 1.1754944e-38, %v3050
        %v3052 = vsel %vm3049, %v3051, %v3047
        %v3053 = vrcp.pop %v2938
        %v3054 = vmul.f32 %v2938, %v3053
        %v3055 = vsub.f32 1.0, %v3054
        %v3056 = vmul.f32 %v3053, %v3055
        %v3057 = vadd.f32 %v3053, %v3056
        %vm3058 = vweird.f32 %v2938
        %vm3059 = vweird.f32 %v3053
        %vm3060 = vmor %vm3058, %vm3059
        %v3061 = vsel %vm3060, %v3053, %v3057
        %v3062 = vand.u32 2147483647, %v2938
        %vm3063 = vcmp.eq.f32.partialorder %v3062, 8.507059e+37
        %v3064 = vand.u32 %v2938, 2147483648
        %v3065 = vor.u32 1.1754944e-38, %v3064
        %v3066 = vsel %vm3063, %v3065, %v3061
        %v3067 = vrcp.pop %v2940
        %v3068 = vmul.f32 %v2940, %v3067
        %v3069 = vsub.f32 1.0, %v3068
        %v3070 = vmul.f32 %v3067, %v3069
        %v3071 = vadd.f32 %v3067, %v3070
        %vm3072 = vweird.f32 %v2940
        %vm3073 = vweird.f32 %v3067
        %vm3074 = vmor %vm3072, %vm3073
        %v3075 = vsel %vm3074, %v3067, %v3071
        %v3076 = vand.u32 2147483647, %v2940
        %vm3077 = vcmp.eq.f32.partialorder %v3076, 8.507059e+37
        %v3078 = vand.u32 %v2940, 2147483648
        %v3079 = vor.u32 1.1754944e-38, %v3078
        %v3080 = vsel %vm3077, %v3079, %v3075
        %v3081 = vrcp.pop %v2942
        %v3082 = vmul.f32 %v2942, %v3081
        %v3083 = vsub.f32 1.0, %v3082
        %v3084 = vmul.f32 %v3081, %v3083
        %v3085 = vadd.f32 %v3081, %v3084
        %vm3086 = vweird.f32 %v2942
        %vm3087 = vweird.f32 %v3081
        %vm3088 = vmor %vm3086, %vm3087
        %v3089 = vsel %vm3088, %v3081, %v3085
        %v3090 = vand.u32 2147483647, %v2942
        %vm3091 = vcmp.eq.f32.partialorder %v3090, 8.507059e+37
        %v3092 = vand.u32 %v2942, 2147483648
        %v3093 = vor.u32 1.1754944e-38, %v3092
        %v3094 = vsel %vm3091, %v3093, %v3089
        %v3095 = vrcp.pop %v2944
        %v3096 = vmul.f32 %v2944, %v3095
        %v3097 = vsub.f32 1.0, %v3096
        %v3098 = vmul.f32 %v3095, %v3097
        %v3099 = vadd.f32 %v3095, %v3098
        %vm3100 = vweird.f32 %v2944
        %vm3101 = vweird.f32 %v3095
        %vm3102 = vmor %vm3100, %vm3101
        %v3103 = vsel %vm3102, %v3095, %v3099
        %v3104 = vand.u32 2147483647, %v2944
        %vm3105 = vcmp.eq.f32.partialorder %v3104, 8.507059e+37
        %v3106 = vand.u32 %v2944, 2147483648
        %v3107 = vor.u32 1.1754944e-38, %v3106
        %v3108 = vsel %vm3105, %v3107, %v3103
        %v3109 = vrcp.pop %v2946
        %v3110 = vmul.f32 %v2946, %v3109
        %v3111 = vsub.f32 1.0, %v3110
        %v3112 = vmul.f32 %v3109, %v3111
        %v3113 = vadd.f32 %v3109, %v3112
        %vm3114 = vweird.f32 %v2946
        %vm3115 = vweird.f32 %v3109
        %vm3116 = vmor %vm3114, %vm3115
        %v3117 = vsel %vm3116, %v3109, %v3113
        %v3118 = vand.u32 2147483647, %v2946
        %vm3119 = vcmp.eq.f32.partialorder %v3118, 8.507059e+37
        %v3120 = vand.u32 %v2946, 2147483648
        %v3121 = vor.u32 1.1754944e-38, %v3120
        %v3122 = vsel %vm3119, %v3121, %v3117
        %v3123 = vrcp.pop %v2948
        %v3124 = vmul.f32 %v2948, %v3123
        %v3125 = vsub.f32 1.0, %v3124
        %v3126 = vmul.f32 %v3123, %v3125
        %v3127 = vadd.f32 %v3123, %v3126
        %vm3128 = vweird.f32 %v2948
        %vm3129 = vweird.f32 %v3123
        %vm3130 = vmor %vm3128, %vm3129
        %v3131 = vsel %vm3130, %v3123, %v3127
        %v3132 = vand.u32 2147483647, %v2948
        %vm3133 = vcmp.eq.f32.partialorder %v3132, 8.507059e+37
        %v3134 = vand.u32 %v2948, 2147483648
        %v3135 = vor.u32 1.1754944e-38, %v3134
        %v3136 = vsel %vm3133, %v3135, %v3131
        %v3137 = vrcp.pop %v2950
        %v3138 = vmul.f32 %v2950, %v3137
        %v3139 = vsub.f32 1.0, %v3138
        %v3140 = vmul.f32 %v3137, %v3139
        %v3141 = vadd.f32 %v3137, %v3140
        %vm3142 = vweird.f32 %v2950
        %vm3143 = vweird.f32 %v3137
        %vm3144 = vmor %vm3142, %vm3143
        %v3145 = vsel %vm3144, %v3137, %v3141
        %v3146 = vand.u32 2147483647, %v2950
        %vm3147 = vcmp.eq.f32.partialorder %v3146, 8.507059e+37
        %v3148 = vand.u32 %v2950, 2147483648
        %v3149 = vor.u32 1.1754944e-38, %v3148
        %v3150 = vsel %vm3147, %v3149, %v3145
        %v3151 = vrcp.pop %v2952
        %v3152 = vmul.f32 %v2952, %v3151
        %v3153 = vsub.f32 1.0, %v3152
        %v3154 = vmul.f32 %v3151, %v3153
        %v3155 = vadd.f32 %v3151, %v3154
        %vm3156 = vweird.f32 %v2952
        %vm3157 = vweird.f32 %v3151
        %vm3158 = vmor %vm3156, %vm3157
        %v3159 = vsel %vm3158, %v3151, %v3155
        %v3160 = vand.u32 2147483647, %v2952
        %vm3161 = vcmp.eq.f32.partialorder %v3160, 8.507059e+37
        %v3162 = vand.u32 %v2952, 2147483648
        %v3163 = vor.u32 1.1754944e-38, %v3162
        %v3164 = vsel %vm3161, %v3163, %v3159
        %v3165 = vrcp.pop %v2954
        %v3166 = vmul.f32 %v2954, %v3165
        %v3167 = vsub.f32 1.0, %v3166
        %v3168 = vmul.f32 %v3165, %v3167
        %v3169 = vadd.f32 %v3165, %v3168
        %vm3170 = vweird.f32 %v2954
        %vm3171 = vweird.f32 %v3165
        %vm3172 = vmor %vm3170, %vm3171
        %v3173 = vsel %vm3172, %v3165, %v3169
        %v3174 = vand.u32 2147483647, %v2954
        %vm3175 = vcmp.eq.f32.partialorder %v3174, 8.507059e+37
        %v3176 = vand.u32 %v2954, 2147483648
        %v3177 = vor.u32 1.1754944e-38, %v3176
        %v3178 = vsel %vm3175, %v3177, %v3173
        %v3179 = vmul.f32 %v2892, %v2968
        %v3180 = vmul.f32 %v2894, %v2982
        %v3181 = vmul.f32 %v2896, %v2996
        %v3182 = vmul.f32 %v2898, %v3010
        %v3183 = vmul.f32 %v2900, %v3024
        %v3184 = vmul.f32 %v2902, %v3038
        %v3185 = vmul.f32 %v2904, %v3052
        %v3186 = vmul.f32 %v2906, %v3066
        %v3187 = vmul.f32 %v2908, %v3080
        %v3188 = vmul.f32 %v2910, %v3094
        %v3189 = vmul.f32 %v2912, %v3108
        %v3190 = vmul.f32 %v2914, %v3122
        %v3191 = vmul.f32 %v2916, %v3136
        %v3192 = vmul.f32 %v2918, %v3150
        %v3193 = vmul.f32 %v2920, %v3164
        %v3194 = vmul.f32 %v2922, %v3178
        %v3195 = vpack.c.bf16 %v3179, %v3179
        %v3196 = vpack.c.bf16 %v3180, %v3180
        %v3197 = vpack.c.bf16 %v3181, %v3181
        %v3198 = vpack.c.bf16 %v3182, %v3182
        %v3199 = vpack.c.bf16 %v3183, %v3183
        %v3200 = vpack.c.bf16 %v3184, %v3184
        %v3201 = vpack.c.bf16 %v3185, %v3185
        %v3202 = vpack.c.bf16 %v3186, %v3186
        %v3203 = vpack.c.bf16 %v3187, %v3187
        %v3204 = vpack.c.bf16 %v3188, %v3188
        %v3205 = vpack.c.bf16 %v3189, %v3189
        %v3206 = vpack.c.bf16 %v3190, %v3190
        %v3207 = vpack.c.bf16 %v3191, %v3191
        %v3208 = vpack.c.bf16 %v3192, %v3192
        %v3209 = vpack.c.bf16 %v3193, %v3193
        %v3210 = vpack.c.bf16 %v3194, %v3194
        %s3211 = scalar_lea.vmem %s281, 192 [#allocation5]
        %3212 = vst [vmem:[%s3211] sm:$0xf] %v3195
        %3213 = vst [vmem:[%s3211 + $0x4] sm:$0xf] %v3196
        %3214 = vst [vmem:[%s3211 + $0x8] sm:$0xf] %v3197
        %3215 = vst [vmem:[%s3211 + $0xc] sm:$0xf] %v3198
        %3216 = vst [vmem:[%s3211 + $0x10] sm:$0xf] %v3199
        %3217 = vst [vmem:[%s3211 + $0x14] sm:$0xf] %v3200
        %3218 = vst [vmem:[%s3211 + $0x18] sm:$0xf] %v3201
        %3219 = vst [vmem:[%s3211 + $0x1c] sm:$0xf] %v3202
        %3220 = vst [vmem:[%s3211 + $0x20] sm:$0xf] %v3203
        %3221 = vst [vmem:[%s3211 + $0x24] sm:$0xf] %v3204
        %3222 = vst [vmem:[%s3211 + $0x28] sm:$0xf] %v3205
        %3223 = vst [vmem:[%s3211 + $0x2c] sm:$0xf] %v3206
        %3224 = vst [vmem:[%s3211 + $0x30] sm:$0xf] %v3207
        %3225 = vst [vmem:[%s3211 + $0x34] sm:$0xf] %v3208
        %3226 = vst [vmem:[%s3211 + $0x38] sm:$0xf] %v3209
        %3227 = vst [vmem:[%s3211 + $0x3c] sm:$0xf] %v3210
        %v3244 = vunpack.c.l.b16 %v3195
        %v3245 = vunpack.c.l.b16 %v3196
        %v3246 = vunpack.c.l.b16 %v3197
        %v3247 = vunpack.c.l.b16 %v3198
        %v3248 = vunpack.c.l.b16 %v3199
        %v3249 = vunpack.c.l.b16 %v3200
        %v3250 = vunpack.c.l.b16 %v3201
        %v3251 = vunpack.c.l.b16 %v3202
        %v3252 = vunpack.c.l.b16 %v3203
        %v3253 = vunpack.c.l.b16 %v3204
        %v3254 = vunpack.c.l.b16 %v3205
        %v3255 = vunpack.c.l.b16 %v3206
        %v3256 = vunpack.c.l.b16 %v3207
        %v3257 = vunpack.c.l.b16 %v3208
        %v3258 = vunpack.c.l.b16 %v3209
        %v3259 = vunpack.c.l.b16 %v3210
        %v3260 = vpack.c.b16 %v3245, %v3244
        %v3261 = vpack.c.b16 %v3247, %v3246
        %v3262 = vpack.c.b16 %v3249, %v3248
        %v3263 = vpack.c.b16 %v3251, %v3250
        %v3264 = vpack.c.b16 %v3253, %v3252
        %v3265 = vpack.c.b16 %v3255, %v3254
        %v3266 = vpack.c.b16 %v3257, %v3256
        %v3267 = vpack.c.b16 %v3259, %v3258
        %3276 = vrot.lane.b32.xlu0 %v1379, 104
        %v3277 = vpop.permute.xlu0 %3276
        %3278 = vrot.lane.b32.xlu0 %v1380, 104
        %v3279 = vpop.permute.xlu0 %3278
        %3280 = vrot.lane.b32.xlu0 %v1381, 104
        %v3281 = vpop.permute.xlu0 %3280
        %3282 = vrot.lane.b32.xlu0 %v1382, 104
        %v3283 = vpop.permute.xlu0 %3282
        %3284 = vrot.lane.b32.xlu0 %v1383, 104
        %v3285 = vpop.permute.xlu0 %3284
        %3286 = vrot.lane.b32.xlu0 %v1384, 104
        %v3287 = vpop.permute.xlu0 %3286
        %3288 = vrot.lane.b32.xlu0 %v1385, 104
        %v3289 = vpop.permute.xlu0 %3288
        %3290 = vrot.lane.b32.xlu0 %v1386, 104
        %v3291 = vpop.permute.xlu0 %3290
        %3300 = vmatpush.bf16.msra.mxu0 %v3291
        %3301 = vmatpush.bf16.msra.mxu0 %v3289
        %3302 = vmatpush.bf16.msra.mxu0 %v3287
        %3303 = vmatpush.bf16.msra.mxu0 %v3285
        %3304 = vmatpush.bf16.msra.mxu0 %v3283
        %3305 = vmatpush.bf16.msra.mxu0 %v3281
        %3306 = vmatpush.bf16.msra.mxu0 %v3279
        %3307 = vmatpush.bf16.msra.mxu0 %v3277
        %3308 = vmatmul.bf16.gmra.mxu0 %v3260
        %v3309 = vpop.f32.mrf.mxu0
        %v3310 = vadd.f32 0.0, %v3309
        %v3311 = vpop.f32.mrf.mxu0
        %v3312 = vadd.f32 0.0, %v3311
        %3313 = vmatmul.bf16.gmra.mxu0 %v3261
        %v3314 = vpop.f32.mrf.mxu0
        %v3315 = vadd.f32 0.0, %v3314
        %v3316 = vpop.f32.mrf.mxu0
        %v3317 = vadd.f32 0.0, %v3316
        %3318 = vmatmul.bf16.gmra.mxu0 %v3262
        %v3319 = vpop.f32.mrf.mxu0
        %v3320 = vadd.f32 0.0, %v3319
        %v3321 = vpop.f32.mrf.mxu0
        %v3322 = vadd.f32 0.0, %v3321
        %3323 = vmatmul.bf16.gmra.mxu0 %v3263
        %v3324 = vpop.f32.mrf.mxu0
        %v3325 = vadd.f32 0.0, %v3324
        %v3326 = vpop.f32.mrf.mxu0
        %v3327 = vadd.f32 0.0, %v3326
        %3328 = vmatmul.bf16.gmra.mxu0 %v3264
        %v3329 = vpop.f32.mrf.mxu0
        %v3330 = vadd.f32 0.0, %v3329
        %v3331 = vpop.f32.mrf.mxu0
        %v3332 = vadd.f32 0.0, %v3331
        %3333 = vmatmul.bf16.gmra.mxu0 %v3265
        %v3334 = vpop.f32.mrf.mxu0
        %v3335 = vadd.f32 0.0, %v3334
        %v3336 = vpop.f32.mrf.mxu0
        %v3337 = vadd.f32 0.0, %v3336
        %3338 = vmatmul.bf16.gmra.mxu0 %v3266
        %v3339 = vpop.f32.mrf.mxu0
        %v3340 = vadd.f32 0.0, %v3339
        %v3341 = vpop.f32.mrf.mxu0
        %v3342 = vadd.f32 0.0, %v3341
        %3343 = vmatmul.bf16.gmra.mxu0 %v3267
        %v3344 = vpop.f32.mrf.mxu0
        %v3345 = vadd.f32 0.0, %v3344
        %v3346 = vpop.f32.mrf.mxu0
        %v3347 = vadd.f32 0.0, %v3346
        %3348 = vdwg.mxu0
        %3365 = vrot.lane.b32.xlu0 %v2040, 8
        %v3366 = vpop.permute.xlu0 %3365
        %3367 = vrot.lane.b32.xlu0 %v2042, 8
        %v3368 = vpop.permute.xlu0 %3367
        %3369 = vrot.lane.b32.xlu0 %v2045, 8
        %v3370 = vpop.permute.xlu0 %3369
        %3371 = vrot.lane.b32.xlu0 %v2047, 8
        %v3372 = vpop.permute.xlu0 %3371
        %3373 = vrot.lane.b32.xlu0 %v2050, 8
        %v3374 = vpop.permute.xlu0 %3373
        %3375 = vrot.lane.b32.xlu0 %v2052, 8
        %v3376 = vpop.permute.xlu0 %3375
        %3377 = vrot.lane.b32.xlu0 %v2055, 8
        %v3378 = vpop.permute.xlu0 %3377
        %3379 = vrot.lane.b32.xlu0 %v2057, 8
        %v3380 = vpop.permute.xlu0 %3379
        %3381 = vrot.lane.b32.xlu0 %v2060, 8
        %v3382 = vpop.permute.xlu0 %3381
        %3383 = vrot.lane.b32.xlu0 %v2062, 8
        %v3384 = vpop.permute.xlu0 %3383
        %3385 = vrot.lane.b32.xlu0 %v2065, 8
        %v3386 = vpop.permute.xlu0 %3385
        %3387 = vrot.lane.b32.xlu0 %v2067, 8
        %v3388 = vpop.permute.xlu0 %3387
        %3389 = vrot.lane.b32.xlu0 %v2070, 8
        %v3390 = vpop.permute.xlu0 %3389
        %3391 = vrot.lane.b32.xlu0 %v2072, 8
        %v3392 = vpop.permute.xlu0 %3391
        %3393 = vrot.lane.b32.xlu0 %v2075, 8
        %v3394 = vpop.permute.xlu0 %3393
        %3395 = vrot.lane.b32.xlu0 %v2077, 8
        %v3396 = vpop.permute.xlu0 %3395
        %3429 = vrot.lane.b32.xlu0 %v2675, 16
        %v3430 = vpop.permute.xlu0 %3429
        %3431 = vrot.lane.b32.xlu0 %v2677, 16
        %v3432 = vpop.permute.xlu0 %3431
        %3433 = vrot.lane.b32.xlu0 %v2680, 16
        %v3434 = vpop.permute.xlu0 %3433
        %3435 = vrot.lane.b32.xlu0 %v2682, 16
        %v3436 = vpop.permute.xlu0 %3435
        %3437 = vrot.lane.b32.xlu0 %v2685, 16
        %v3438 = vpop.permute.xlu0 %3437
        %3439 = vrot.lane.b32.xlu0 %v2687, 16
        %v3440 = vpop.permute.xlu0 %3439
        %3441 = vrot.lane.b32.xlu0 %v2690, 16
        %v3442 = vpop.permute.xlu0 %3441
        %3443 = vrot.lane.b32.xlu0 %v2692, 16
        %v3444 = vpop.permute.xlu0 %3443
        %3445 = vrot.lane.b32.xlu0 %v2695, 16
        %v3446 = vpop.permute.xlu0 %3445
        %3447 = vrot.lane.b32.xlu0 %v2697, 16
        %v3448 = vpop.permute.xlu0 %3447
        %3449 = vrot.lane.b32.xlu0 %v2700, 16
        %v3450 = vpop.permute.xlu0 %3449
        %3451 = vrot.lane.b32.xlu0 %v2702, 16
        %v3452 = vpop.permute.xlu0 %3451
        %3453 = vrot.lane.b32.xlu0 %v2705, 16
        %v3454 = vpop.permute.xlu0 %3453
        %3455 = vrot.lane.b32.xlu0 %v2707, 16
        %v3456 = vpop.permute.xlu0 %3455
        %3457 = vrot.lane.b32.xlu0 %v2710, 16
        %v3458 = vpop.permute.xlu0 %3457
        %3459 = vrot.lane.b32.xlu0 %v2712, 16
        %v3460 = vpop.permute.xlu0 %3459
        %3493 = vrot.lane.b32.xlu0 %v3310, 24
        %v3494 = vpop.permute.xlu0 %3493
        %3495 = vrot.lane.b32.xlu0 %v3312, 24
        %v3496 = vpop.permute.xlu0 %3495
        %3497 = vrot.lane.b32.xlu0 %v3315, 24
        %v3498 = vpop.permute.xlu0 %3497
        %3499 = vrot.lane.b32.xlu0 %v3317, 24
        %v3500 = vpop.permute.xlu0 %3499
        %3501 = vrot.lane.b32.xlu0 %v3320, 24
        %v3502 = vpop.permute.xlu0 %3501
        %3503 = vrot.lane.b32.xlu0 %v3322, 24
        %v3504 = vpop.permute.xlu0 %3503
        %3505 = vrot.lane.b32.xlu0 %v3325, 24
        %v3506 = vpop.permute.xlu0 %3505
        %3507 = vrot.lane.b32.xlu0 %v3327, 24
        %v3508 = vpop.permute.xlu0 %3507
        %3509 = vrot.lane.b32.xlu0 %v3330, 24
        %v3510 = vpop.permute.xlu0 %3509
        %3511 = vrot.lane.b32.xlu0 %v3332, 24
        %v3512 = vpop.permute.xlu0 %3511
        %3513 = vrot.lane.b32.xlu0 %v3335, 24
        %v3514 = vpop.permute.xlu0 %3513
        %3515 = vrot.lane.b32.xlu0 %v3337, 24
        %v3516 = vpop.permute.xlu0 %3515
        %3517 = vrot.lane.b32.xlu0 %v3340, 24
        %v3518 = vpop.permute.xlu0 %3517
        %3519 = vrot.lane.b32.xlu0 %v3342, 24
        %v3520 = vpop.permute.xlu0 %3519
        %3521 = vrot.lane.b32.xlu0 %v3345, 24
        %v3522 = vpop.permute.xlu0 %3521
        %3523 = vrot.lane.b32.xlu0 %v3347, 24
        %v3524 = vpop.permute.xlu0 %3523
        %v3541 = vsel %vm817, %v1405, %v3366
        %v3542 = vsel %vm817, %v1407, %v3368
        %v3543 = vsel %vm817, %v1410, %v3370
        %v3544 = vsel %vm817, %v1412, %v3372
        %v3545 = vsel %vm817, %v1415, %v3374
        %v3546 = vsel %vm817, %v1417, %v3376
        %v3547 = vsel %vm817, %v1420, %v3378
        %v3548 = vsel %vm817, %v1422, %v3380
        %v3549 = vsel %vm817, %v1425, %v3382
        %v3550 = vsel %vm817, %v1427, %v3384
        %v3551 = vsel %vm817, %v1430, %v3386
        %v3552 = vsel %vm817, %v1432, %v3388
        %v3553 = vsel %vm817, %v1435, %v3390
        %v3554 = vsel %vm817, %v1437, %v3392
        %v3555 = vsel %vm817, %v1440, %v3394
        %v3556 = vsel %vm817, %v1442, %v3396
        %vm3557 = vcmask 130048
        %v3558 = vsel %vm3557, %v3541, %v3430
        %v3559 = vsel %vm3557, %v3542, %v3432
        %v3560 = vsel %vm3557, %v3543, %v3434
        %v3561 = vsel %vm3557, %v3544, %v3436
        %v3562 = vsel %vm3557, %v3545, %v3438
        %v3563 = vsel %vm3557, %v3546, %v3440
        %v3564 = vsel %vm3557, %v3547, %v3442
        %v3565 = vsel %vm3557, %v3548, %v3444
        %v3566 = vsel %vm3557, %v3549, %v3446
        %v3567 = vsel %vm3557, %v3550, %v3448
        %v3568 = vsel %vm3557, %v3551, %v3450
        %v3569 = vsel %vm3557, %v3552, %v3452
        %v3570 = vsel %vm3557, %v3553, %v3454
        %v3571 = vsel %vm3557, %v3554, %v3456
        %v3572 = vsel %vm3557, %v3555, %v3458
        %v3573 = vsel %vm3557, %v3556, %v3460
        %vm3574 = vcmask 195584
        %v3575 = vsel %vm3574, %v3558, %v3494
        %v3576 = vsel %vm3574, %v3559, %v3496
        %v3577 = vsel %vm3574, %v3560, %v3498
        %v3578 = vsel %vm3574, %v3561, %v3500
        %v3579 = vsel %vm3574, %v3562, %v3502
        %v3580 = vsel %vm3574, %v3563, %v3504
        %v3581 = vsel %vm3574, %v3564, %v3506
        %v3582 = vsel %vm3574, %v3565, %v3508
        %v3583 = vsel %vm3574, %v3566, %v3510
        %v3584 = vsel %vm3574, %v3567, %v3512
        %v3585 = vsel %vm3574, %v3568, %v3514
        %v3586 = vsel %vm3574, %v3569, %v3516
        %v3587 = vsel %vm3574, %v3570, %v3518
        %v3588 = vsel %vm3574, %v3571, %v3520
        %v3589 = vsel %vm3574, %v3572, %v3522
        %v3590 = vsel %vm3574, %v3573, %v3524
        %v3591 = vpack.c.bf16 %v3576, %v3575
        %v3592 = vpack.c.bf16 %v3578, %v3577
        %v3593 = vpack.c.bf16 %v3580, %v3579
        %v3594 = vpack.c.bf16 %v3582, %v3581
        %v3595 = vpack.c.bf16 %v3584, %v3583
        %v3596 = vpack.c.bf16 %v3586, %v3585
        %v3597 = vpack.c.bf16 %v3588, %v3587
        %v3598 = vpack.c.bf16 %v3590, %v3589
        %v3599 = vld [vmem:[%s296] sm:$0xff]
        %v3600 = vld [vmem:[%s296 + $0x8] sm:$0xff]
        %v3601 = vld [vmem:[%s296 + $0x10] sm:$0xff]
        %v3602 = vld [vmem:[%s296 + $0x18] sm:$0xff]
        %v3603 = vld [vmem:[%s296 + $0x20] sm:$0xff]
        %v3604 = vld [vmem:[%s296 + $0x28] sm:$0xff]
        %v3605 = vld [vmem:[%s296 + $0x30] sm:$0xff]
        %v3606 = vld [vmem:[%s296 + $0x38] sm:$0xff]
        %v3607 = vld [vmem:[%s296 + $0x40] sm:$0xff]
        %v3608 = vld [vmem:[%s296 + $0x48] sm:$0xff]
        %v3609 = vld [vmem:[%s296 + $0x50] sm:$0xff]
        %v3610 = vld [vmem:[%s296 + $0x58] sm:$0xff]
        %v3611 = vld [vmem:[%s296 + $0x60] sm:$0xff]
        %v3612 = vld [vmem:[%s296 + $0x68] sm:$0xff]
        %v3613 = vld [vmem:[%s296 + $0x70] sm:$0xff]
        %v3614 = vld [vmem:[%s296 + $0x78] sm:$0xff]
        %v3615 = vld [vmem:[%s291] sm:$0xf]
        %v3616 = vld [vmem:[%s291 + $0x4] sm:$0xf]
        %v3617 = vld [vmem:[%s291 + $0x8] sm:$0xf]
        %v3618 = vld [vmem:[%s291 + $0xc] sm:$0xf]
        %v3623 = vunpack.c.l.b16 %v3615
        %v3624 = vunpack.c.l.b16 %v3616
        %v3625 = vunpack.c.l.b16 %v3617
        %v3626 = vunpack.c.l.b16 %v3618
        %v3627 = vpack.c.b16 %v3624, %v3623
        %v3628 = vpack.c.b16 %v3626, %v3625
        %vm3631 = vcmask 261120
        %v3633 = vsel %vm3631, %v3591, 0
        %v3636 = vsel %vm3631, %v3592, 0
        %v3639 = vsel %vm3631, %v3593, 0
        %v3642 = vsel %vm3631, %v3594, 0
        %v3645 = vsel %vm3631, %v3595, 0
        %v3648 = vsel %vm3631, %v3596, 0
        %v3651 = vsel %vm3631, %v3597, 0
        %v3654 = vsel %vm3631, %v3598, 0
        %3656 = vmatpush.bf16.msra.mxu0 0
        %3657 = vmatpush.bf16.msra.mxu0 0
        %3658 = vmatpush.bf16.msra.mxu0 0
        %3659 = vmatpush.bf16.msra.mxu0 0
        %3660 = vmatpush.bf16.msra.mxu0 0
        %3661 = vmatpush.bf16.msra.mxu0 0
        %3662 = vmatpush.bf16.msra.mxu0 %v3628
        %3663 = vmatpush.bf16.msra.mxu0 %v3627
        %3664 = vmatmul.bf16.gmra.mxu0 %v3633
        %v3665 = vpop.f32.mrf.mxu0
        %v3666 = vadd.f32 0.0, %v3665
        %v3667 = vpop.f32.mrf.mxu0
        %v3668 = vadd.f32 0.0, %v3667
        %3669 = vmatmul.bf16.gmra.mxu0 %v3636
        %v3670 = vpop.f32.mrf.mxu0
        %v3671 = vadd.f32 0.0, %v3670
        %v3672 = vpop.f32.mrf.mxu0
        %v3673 = vadd.f32 0.0, %v3672
        %3674 = vmatmul.bf16.gmra.mxu0 %v3639
        %v3675 = vpop.f32.mrf.mxu0
        %v3676 = vadd.f32 0.0, %v3675
        %v3677 = vpop.f32.mrf.mxu0
        %v3678 = vadd.f32 0.0, %v3677
        %3679 = vmatmul.bf16.gmra.mxu0 %v3642
        %v3680 = vpop.f32.mrf.mxu0
        %v3681 = vadd.f32 0.0, %v3680
        %v3682 = vpop.f32.mrf.mxu0
        %v3683 = vadd.f32 0.0, %v3682
        %3684 = vmatmul.bf16.gmra.mxu0 %v3645
        %v3685 = vpop.f32.mrf.mxu0
        %v3686 = vadd.f32 0.0, %v3685
        %v3687 = vpop.f32.mrf.mxu0
        %v3688 = vadd.f32 0.0, %v3687
        %3689 = vmatmul.bf16.gmra.mxu0 %v3648
        %v3690 = vpop.f32.mrf.mxu0
        %v3691 = vadd.f32 0.0, %v3690
        %v3692 = vpop.f32.mrf.mxu0
        %v3693 = vadd.f32 0.0, %v3692
        %3694 = vmatmul.bf16.gmra.mxu0 %v3651
        %v3695 = vpop.f32.mrf.mxu0
        %v3696 = vadd.f32 0.0, %v3695
        %v3697 = vpop.f32.mrf.mxu0
        %v3698 = vadd.f32 0.0, %v3697
        %3699 = vmatmul.bf16.gmra.mxu0 %v3654
        %v3700 = vpop.f32.mrf.mxu0
        %v3701 = vadd.f32 0.0, %v3700
        %v3702 = vpop.f32.mrf.mxu0
        %v3703 = vadd.f32 0.0, %v3702
        %3704 = vdwg.mxu0
        %v3705 = vadd.f32 %v3599, %v3666
        %v3706 = vadd.f32 %v3600, %v3668
        %v3707 = vadd.f32 %v3601, %v3671
        %v3708 = vadd.f32 %v3602, %v3673
        %v3709 = vadd.f32 %v3603, %v3676
        %v3710 = vadd.f32 %v3604, %v3678
        %v3711 = vadd.f32 %v3605, %v3681
        %v3712 = vadd.f32 %v3606, %v3683
        %v3713 = vadd.f32 %v3607, %v3686
        %v3714 = vadd.f32 %v3608, %v3688
        %v3715 = vadd.f32 %v3609, %v3691
        %v3716 = vadd.f32 %v3610, %v3693
        %v3717 = vadd.f32 %v3611, %v3696
        %v3718 = vadd.f32 %v3612, %v3698
        %v3719 = vadd.f32 %v3613, %v3701
        %v3720 = vadd.f32 %v3614, %v3703
        %3721 = vst.msk [vmem:[%s296] sm:$0xff] %vm3631, %v3705
        %3722 = vst.msk [vmem:[%s296 + $0x8] sm:$0xff] %vm3631, %v3706
        %3723 = vst.msk [vmem:[%s296 + $0x10] sm:$0xff] %vm3631, %v3707
        %3724 = vst.msk [vmem:[%s296 + $0x18] sm:$0xff] %vm3631, %v3708
        %3725 = vst.msk [vmem:[%s296 + $0x20] sm:$0xff] %vm3631, %v3709
        %3726 = vst.msk [vmem:[%s296 + $0x28] sm:$0xff] %vm3631, %v3710
        %3727 = vst.msk [vmem:[%s296 + $0x30] sm:$0xff] %vm3631, %v3711
        %3728 = vst.msk [vmem:[%s296 + $0x38] sm:$0xff] %vm3631, %v3712
        %3729 = vst.msk [vmem:[%s296 + $0x40] sm:$0xff] %vm3631, %v3713
        %3730 = vst.msk [vmem:[%s296 + $0x48] sm:$0xff] %vm3631, %v3714
        %3731 = vst.msk [vmem:[%s296 + $0x50] sm:$0xff] %vm3631, %v3715
        %3732 = vst.msk [vmem:[%s296 + $0x58] sm:$0xff] %vm3631, %v3716
        %3733 = vst.msk [vmem:[%s296 + $0x60] sm:$0xff] %vm3631, %v3717
        %3734 = vst.msk [vmem:[%s296 + $0x68] sm:$0xff] %vm3631, %v3718
        %3735 = vst.msk [vmem:[%s296 + $0x70] sm:$0xff] %vm3631, %v3719
        %3736 = vst.msk [vmem:[%s296 + $0x78] sm:$0xff] %vm3631, %v3720
        // Predicated region
        $region45: #{tpu_custom_call.1} parent=39 // pred_check
          %p3737 = pneg %p299
        $region46: #{tpu_custom_call.1} parent=39 // pred_check_branch
          %3739 = sbr.rel (%p3737) target = $region48
        $region47: #{tpu_custom_call.1} parent=39 // pred_region
          %v3740 = vld [vmem:[%s296] sm:$0xff]
          %v3741 = vld [vmem:[%s296 + $0x8] sm:$0xff]
          %v3742 = vld [vmem:[%s296 + $0x10] sm:$0xff]
          %v3743 = vld [vmem:[%s296 + $0x18] sm:$0xff]
          %v3744 = vld [vmem:[%s296 + $0x20] sm:$0xff]
          %v3745 = vld [vmem:[%s296 + $0x28] sm:$0xff]
          %v3746 = vld [vmem:[%s296 + $0x30] sm:$0xff]
          %v3747 = vld [vmem:[%s296 + $0x38] sm:$0xff]
          %v3748 = vld [vmem:[%s296 + $0x40] sm:$0xff]
          %v3749 = vld [vmem:[%s296 + $0x48] sm:$0xff]
          %v3750 = vld [vmem:[%s296 + $0x50] sm:$0xff]
          %v3751 = vld [vmem:[%s296 + $0x58] sm:$0xff]
          %v3752 = vld [vmem:[%s296 + $0x60] sm:$0xff]
          %v3753 = vld [vmem:[%s296 + $0x68] sm:$0xff]
          %v3754 = vld [vmem:[%s296 + $0x70] sm:$0xff]
          %v3755 = vld [vmem:[%s296 + $0x78] sm:$0xff]
          %v3756 = vld [vmem:[%s4] sm:$0x1]
          %v3758 = vperm.slane %v3756, 0
          %v3760 = vadd.f32 %v3740, %v3758
          %v3761 = vadd.f32 %v3741, %v3758
          %v3762 = vadd.f32 %v3742, %v3758
          %v3763 = vadd.f32 %v3743, %v3758
          %v3764 = vadd.f32 %v3744, %v3758
          %v3765 = vadd.f32 %v3745, %v3758
          %v3766 = vadd.f32 %v3746, %v3758
          %v3767 = vadd.f32 %v3747, %v3758
          %v3768 = vadd.f32 %v3748, %v3758
          %v3769 = vadd.f32 %v3749, %v3758
          %v3770 = vadd.f32 %v3750, %v3758
          %v3771 = vadd.f32 %v3751, %v3758
          %v3772 = vadd.f32 %v3752, %v3758
          %v3773 = vadd.f32 %v3753, %v3758
          %v3774 = vadd.f32 %v3754, %v3758
          %v3775 = vadd.f32 %v3755, %v3758
          %3776 = vst.msk [vmem:[%s296] sm:$0xff] %vm3631, %v3760
          %3777 = vst.msk [vmem:[%s296 + $0x8] sm:$0xff] %vm3631, %v3761
          %3778 = vst.msk [vmem:[%s296 + $0x10] sm:$0xff] %vm3631, %v3762
          %3779 = vst.msk [vmem:[%s296 + $0x18] sm:$0xff] %vm3631, %v3763
          %3780 = vst.msk [vmem:[%s296 + $0x20] sm:$0xff] %vm3631, %v3764
          %3781 = vst.msk [vmem:[%s296 + $0x28] sm:$0xff] %vm3631, %v3765
          %3782 = vst.msk [vmem:[%s296 + $0x30] sm:$0xff] %vm3631, %v3766
          %3783 = vst.msk [vmem:[%s296 + $0x38] sm:$0xff] %vm3631, %v3767
          %3784 = vst.msk [vmem:[%s296 + $0x40] sm:$0xff] %vm3631, %v3768
          %3785 = vst.msk [vmem:[%s296 + $0x48] sm:$0xff] %vm3631, %v3769
          %3786 = vst.msk [vmem:[%s296 + $0x50] sm:$0xff] %vm3631, %v3770
          %3787 = vst.msk [vmem:[%s296 + $0x58] sm:$0xff] %vm3631, %v3771
          %3788 = vst.msk [vmem:[%s296 + $0x60] sm:$0xff] %vm3631, %v3772
          %3789 = vst.msk [vmem:[%s296 + $0x68] sm:$0xff] %vm3631, %v3773
          %3790 = vst.msk [vmem:[%s296 + $0x70] sm:$0xff] %vm3631, %v3774
          %3791 = vst.msk [vmem:[%s296 + $0x78] sm:$0xff] %vm3631, %v3775
        $region48: #{tpu_custom_call.1} parent=39 // pred_fallthru
          _
        %p3792 = scmp.lt.s32.totalorder %s25, 1
        %s3793 = scalar_select %p3792, %s25, 1
        %s3794 = smul.addr %s3793, 16
        %s3795 = smul.addr %s3794, 8
        %s3796 = scalar_lea.vmem %s5, %s3795
        %s3797 = sand.u32 %s184, 1
        %s3798 = scalar_lea.sflag [#allocation6], %s3797
        %s3799 = sand.u32 %s184, 1
        %s3800 = smul.addr %s3799, 256
        %s3801 = scalar_lea.vmem [#allocation5], %s3800
        // Predicated region
        $region49: #{tpu_custom_call.1} parent=39 // pred_check
          %p3802 = pneg %p166
        $region50: #{tpu_custom_call.1} parent=39 // pred_check_branch
          %3804 = sbr.rel (%p3802) target = $region52
        $region51: #{tpu_custom_call.1} parent=39 // pred_region
          _
        $region52: #{tpu_custom_call.1} parent=39 // pred_fallthru
          _
        // Predicated region
        $region53: #{tpu_custom_call.1} parent=39 // pred_check
          %p3805 = pneg %p194
        $region54: #{tpu_custom_call.1} parent=39 // pred_check_branch
          %3807 = sbr.rel (%p3805) target = $region56
        $region55: #{tpu_custom_call.1} parent=39 // pred_region
          %s3808 = smul.u32 4, %s26
          %3810 = vsyncadd %s3798, 0
          %s3811 = smul.addr %s3808, 16
          %s3812 = smul.addr %s25, 64
          %s3813 = sadd.s32 %s3811, %s3812
          %s3814 = smul.addr %s3813, 4
          %s3815 = scalar_lea.hbm %s6, %s3814
          %s3816 = sshll.u32 %s3801, 4
          %s3817 = int_to_ptr.vmem [resolvable:$true] %s3816
          %s3818 = sshll.u32 %s3815, 4
          %s3819 = int_to_ptr.hbm [resolvable:$true] %s3818
          %3824 = dma.vmem_to_hbm [thread:$0]  %s3817, 4096, %s3819, %s3798, 64, 64, 4
        $region56: #{tpu_custom_call.1} parent=39 // pred_fallthru
          _
      $region40: #{tpu_custom_call.1} parent=5 // pred_fallthru
        _
      %p3825 = scmp.le.s32.totalorder 2, %s16
      // Predicated region
      $region57: #{tpu_custom_call.1} parent=5 // pred_check
        %p3826 = pneg %p3825
      $region58: #{tpu_custom_call.1} parent=5 // pred_check_branch
        %3828 = sbr.rel (%p3826) target = $region60
      $region59: #{tpu_custom_call.1} parent=5 // pred_region
        %s3829 = ssub.s32 %s16, 2
        // Predicated region
        $region61: #{tpu_custom_call.1} parent=59 // pred_check
          %p3830 = pneg %p172
        $region62: #{tpu_custom_call.1} parent=59 // pred_check_branch
          %3832 = sbr.rel (%p3830) target = $region64
        $region63: #{tpu_custom_call.1} parent=59 // pred_region
          %p3833 = scmp.lt.s32.totalorder %s27, 1
          %s3834 = scalar_select %p3833, %s27, 1
          %s3835 = smul.addr %s3834, 16
          %s3836 = smul.addr %s3835, 8
          %s3837 = scalar_lea.vmem %s5, %s3836
        $region64: #{tpu_custom_call.1} parent=59 // pred_fallthru
          _
        // Predicated region
        $region65: #{tpu_custom_call.1} parent=59 // pred_check
          %p3838 = pneg %p200
        $region66: #{tpu_custom_call.1} parent=59 // pred_check_branch
          %3840 = sbr.rel (%p3838) target = $region68
        $region67: #{tpu_custom_call.1} parent=59 // pred_region
          %s3841 = sand.u32 %s185, 1
          %s3842 = scalar_lea.sflag [#allocation6], %s3841
          %s3843 = sand.u32 %s185, 1
          %s3844 = smul.addr %s3843, 256
          %s3845 = scalar_lea.vmem [#allocation5], %s3844
          %3847 = dma.done %s3842, 4096
        $region68: #{tpu_custom_call.1} parent=59 // pred_fallthru
          _
      $region60: #{tpu_custom_call.1} parent=5 // pred_fallthru
        _
    $region6: #{tpu_custom_call.1} parent=1 // loop_footer
      %s20 = sadd.s32 1, %s16
    $region7: #{tpu_custom_call.1} parent=1 // loop_footer_branch
      %15 = sbr.rel target = $region3
    $region8: #{tpu_custom_call.1} parent=1 // loop_exit
      _
    %3848 = vsyncpa [#allocation6], 1
    %s3849 = scalar_lea.sflag [#allocation6], 1
    %3850 = vsyncpa %s3849, 1

</llo_original>
